<compile_context>
chip_gen: v7x
topology: tpu7x:2x2x1
jax: 0.10.0
libtpu: 0.0.40
codegen_flags: <defaults>
</compile_context>

<pallas_src>
import functools

import jax
import jax.numpy as jnp
from jax.experimental import pallas as pl
from jax.experimental.pallas import tpu as pltpu


CFG = dict(vocab=100, hidden=32, layers=2, heads=4, ffn=64, max_pos=16,
           out_dim=5, out_pad=128)


# ----------------------------- kernel helpers -------------------------------

def _layer_norm(x, g, b):
    # LayerNorm over the hidden axis, eps = 1e-12 (BERT). Stats kept in f32.
    mu = jnp.mean(x, axis=-1, keepdims=True)
    xc = x - mu
    var = jnp.mean(xc * xc, axis=-1, keepdims=True)
    return xc * jax.lax.rsqrt(var + 1e-12) * g + b


def _gelu(y):
    # tanh-approx GELU (EUP tanh).
    # TODO(synk): HF BERT's default hidden_act is exact erf GELU; the tanh
    # approximation differs at the ~1e-3 level.
    return 0.5 * y * (1.0 + jnp.tanh(0.7978845608028654 *
                                     (y + 0.044715 * y * y * y)))


# ----------------------------- fused kernel ---------------------------------

def _bert_tagger_kernel(x_ref, emb_g_ref, emb_b_ref,
                        wqkv_ref, bqkv_ref, wo_ref, bo_ref,
                        ln1_g_ref, ln1_b_ref,
                        w1_ref, b1_ref, w2_ref, b2_ref,
                        ln2_g_ref, ln2_b_ref,
                        cls_w_ref, cls_b_ref,
                        out_ref, *, batch, seq, heads, layers, hidden):
    dh = hidden // heads
    scale = 1.0 / jnp.sqrt(jnp.float32(dh))

    # Embedding LayerNorm (word + position embeddings summed by the wrapper).
    x = _layer_norm(x_ref[...], emb_g_ref[...], emb_b_ref[...])

    for l in range(layers):                      # static unroll, layers == 2
        # ---- fused QKV projection: (B*S, H) @ (H, 3H) on the MXU ----------
        qkv = jnp.dot(x, wqkv_ref[l],
                      preferred_element_type=jnp.float32) + bqkv_ref[l]

        # ---- multi-head self-attention, all in VMEM -----------------------
        # Static (batch, head) unroll; each block is a tiny (S, Dh) matmul.
        # No (B*heads, S, Dh) tensor is ever materialized in HBM and no XLA
        # transposes are needed.
        batch_ctx = []
        for b in range(batch):
            r0 = b * seq
            head_ctx = []
            for h in range(heads):
                c0 = h * dh
                q = qkv[r0:r0 + seq, c0:c0 + dh]
                k = qkv[r0:r0 + seq, hidden + c0:hidden + c0 + dh]
                v = qkv[r0:r0 + seq, 2 * hidden + c0:2 * hidden + c0 + dh]
                s = jnp.einsum("qd,kd->qk", q, k,
                               preferred_element_type=jnp.float32) * scale
                m = jnp.max(s, axis=-1, keepdims=True)
                p = jnp.exp(s - m)
                # EUP reciprocal instead of a VALU divide (~1e-3 rel drift).
                p = p * pl.reciprocal(jnp.sum(p, axis=-1, keepdims=True),
                                      approx=True)
                head_ctx.append(jnp.einsum("qk,kd->qd", p, v,
                                           preferred_element_type=jnp.float32))
            batch_ctx.append(jnp.concatenate(head_ctx, axis=-1))   # (S, H)
        ctx = jnp.concatenate(batch_ctx, axis=0)                   # (B*S, H)

        # ---- output projection + residual + LayerNorm (fused) -------------
        attn = jnp.dot(ctx, wo_ref[l],
                       preferred_element_type=jnp.float32) + bo_ref[l]
        x = _layer_norm(attn + x, ln1_g_ref[l], ln1_b_ref[l])

        # ---- FFN (GELU) + residual + LayerNorm (fused) ---------------------
        ff = _gelu(jnp.dot(x, w1_ref[l],
                           preferred_element_type=jnp.float32) + b1_ref[l])
        ff = jnp.dot(ff, w2_ref[l],
                     preferred_element_type=jnp.float32) + b2_ref[l]
        x = _layer_norm(ff + x, ln2_g_ref[l], ln2_b_ref[l])

    # ---- classifier into a lane-dense padded slab (128 wide) ---------------
    out_ref[...] = (jnp.dot(x, cls_w_ref[...],
                            preferred_element_type=jnp.float32)
                    + cls_b_ref[...])


# ----------------------------- wrapper / glue -------------------------------

def _full_spec(shape):
    # Whole-array block; grid is empty so index_map takes no args.
    return pl.BlockSpec(shape, lambda: (0,) * len(shape))


def bert_tagger_forward(params, token_ids):
    batch, seq = token_ids.shape
    h = CFG["hidden"]

    # Embedding gather is data-dependent glue; everything else is one fused
    # VMEM-resident Pallas kernel.
    x_emb = (params["word_emb"][token_ids] +
             params["pos_emb"][:seq][None]).reshape(batch * seq, h)
    x_emb = x_emb.astype(jnp.float32)

    operands = (
        x_emb,
        params["emb_ln_g"], params["emb_ln_b"],
        params["wqkv"], params["bqkv"], params["wo"], params["bo"],
        params["ln1_g"], params["ln1_b"],
        params["w1"], params["b1"], params["w2"], params["b2"],
        params["ln2_g"], params["ln2_b"],
        params["cls_w_pad"], params["cls_b_pad"],
    )

    out = pl.pallas_call(
        functools.partial(_bert_tagger_kernel, batch=batch, seq=seq,
                          heads=CFG["heads"], layers=CFG["layers"], hidden=h),
        out_shape=jax.ShapeDtypeStruct((batch * seq, CFG["out_pad"]),
                                       jnp.float32),
        in_specs=[_full_spec(op.shape) for op in operands],
        out_specs=_full_spec((batch * seq, CFG["out_pad"])),
        compiler_params=pltpu.CompilerParams(vmem_limit_bytes=32 * 1024 * 1024),
    )(*operands)

    # Slice the padded lane-dense slab back to the true output width.
    return out[:, :CFG["out_dim"]].reshape(batch, seq, CFG["out_dim"])


# ----------------------------- parameters -----------------------------------

def init_params(key):
    h, f, o, L = CFG["hidden"], CFG["ffn"], CFG["out_dim"], CFG["layers"]
    keys = iter(jax.random.split(key, 64))

    def w(shape, scale=0.02):
        return (scale * jax.random.normal(next(keys), shape)).astype(jnp.float32)

    def ones(shape):
        return jnp.ones(shape, jnp.float32)

    def zeros(shape):
        return jnp.zeros(shape, jnp.float32)

    # Per-layer weights: QKV fused into a single (H, 3H) matmul and all
    # layers stacked on a leading axis so the entire encoder's parameters
    # ride into one pallas_call and stay VMEM-resident.
    wq = [w((h, h)) for _ in range(L)]
    wk = [w((h, h)) for _ in range(L)]
    wv = [w((h, h)) for _ in range(L)]

    params = {
        "word_emb": w((CFG["vocab"], h)),
        "pos_emb": w((CFG["max_pos"], h)),
        "emb_ln_g": ones((1, h)), "emb_ln_b": zeros((1, h)),
        "wqkv": jnp.stack([jnp.concatenate([wq[l], wk[l], wv[l]], axis=1)
                           for l in range(L)]),                 # (L, H, 3H)
        "bqkv": zeros((L, 1, 3 * h)),
        "wo": jnp.stack([w((h, h)) for _ in range(L)]),
        "bo": zeros((L, 1, h)),
        "ln1_g": ones((L, 1, h)), "ln1_b": zeros((L, 1, h)),
        "w1": jnp.stack([w((h, f)) for _ in range(L)]),
        "b1": zeros((L, 1, f)),
        "w2": jnp.stack([w((f, h)) for _ in range(L)]),
        "b2": zeros((L, 1, h)),
        "ln2_g": ones((L, 1, h)), "ln2_b": zeros((L, 1, h)),
    }

    # Lane-dense classifier: zero-pad the 5-wide projection to 128 lanes so
    # the output store is an unmasked full-lane vst.
    cls_w = w((h, o))
    params["cls_w_pad"] = jnp.zeros((h, CFG["out_pad"]),
                                    jnp.float32).at[:, :o].set(cls_w)
    params["cls_b_pad"] = jnp.zeros((1, CFG["out_pad"]), jnp.float32)
    return params


# --------------------------------- main --------------------------------------

if __name__ == "__main__":
    key = jax.random.PRNGKey(0)
    key_tok, key_params = jax.random.split(key)

    batch, seq = 2, 8
    token_ids = jax.random.randint(key_tok, (batch, seq), 0, CFG["vocab"],
                                   dtype=jnp.int32)
    params = init_params(key_params)

    logits = jax.jit(bert_tagger_forward)(params, token_ids)
    jax.block_until_ready(logits)

    assert logits.shape == (batch, seq, CFG["out_dim"])
    assert logits.dtype == jnp.float32
    print("KERNEL_OK")
</pallas_src>

<mosaic_0001>
module attributes {stable_mosaic.version = 11 : i64} {
  func.func @_bert_tagger_kernel(%arg0: memref<16x32xf32, #tpu.memory_space<vmem>>, %arg1: memref<1x32xf32, #tpu.memory_space<vmem>>, %arg2: memref<1x32xf32, #tpu.memory_space<vmem>>, %arg3: memref<2x32x96xf32, #tpu.memory_space<vmem>>, %arg4: memref<2x1x96xf32, #tpu.memory_space<vmem>>, %arg5: memref<2x32x32xf32, #tpu.memory_space<vmem>>, %arg6: memref<2x1x32xf32, #tpu.memory_space<vmem>>, %arg7: memref<2x1x32xf32, #tpu.memory_space<vmem>>, %arg8: memref<2x1x32xf32, #tpu.memory_space<vmem>>, %arg9: memref<2x32x64xf32, #tpu.memory_space<vmem>>, %arg10: memref<2x1x64xf32, #tpu.memory_space<vmem>>, %arg11: memref<2x64x32xf32, #tpu.memory_space<vmem>>, %arg12: memref<2x1x32xf32, #tpu.memory_space<vmem>>, %arg13: memref<2x1x32xf32, #tpu.memory_space<vmem>>, %arg14: memref<2x1x32xf32, #tpu.memory_space<vmem>>, %arg15: memref<32x128xf32, #tpu.memory_space<vmem>>, %arg16: memref<1x128xf32, #tpu.memory_space<vmem>>, %arg17: memref<16x128xf32, #tpu.memory_space<vmem>>) attributes {dimension_semantics = [], scalar_prefetch = 0 : i64, scratch_operands = 0 : i64, tpu.core_type = #tpu.core_type<tc>} {
    %cst = arith.constant 8.000000e+00 : f32
    %0 = math.sqrt %cst : f32
    %cst_0 = arith.constant 1.000000e+00 : f32
    %1 = arith.divf %cst_0, %0 : f32
    %c0 = arith.constant 0 : index
    %c0_1 = arith.constant 0 : index
    %2 = vector.load %arg0[%c0, %c0_1] : memref<16x32xf32, #tpu.memory_space<vmem>>, vector<16x32xf32>
    %c0_2 = arith.constant 0 : index
    %c0_3 = arith.constant 0 : index
    %3 = vector.load %arg1[%c0_2, %c0_3] : memref<1x32xf32, #tpu.memory_space<vmem>>, vector<1x32xf32>
    %c0_4 = arith.constant 0 : index
    %c0_5 = arith.constant 0 : index
    %4 = vector.load %arg2[%c0_4, %c0_5] : memref<1x32xf32, #tpu.memory_space<vmem>>, vector<1x32xf32>
    %cst_6 = arith.constant dense<0.000000e+00> : vector<16xf32>
    %5 = vector.multi_reduction <add>, %2, %cst_6 [1] : vector<16x32xf32> to vector<16xf32>
    %6 = vector.shape_cast %5 : vector<16xf32> to vector<16x1xf32>
    %cst_7 = arith.constant 3.200000e+01 : f32
    %7 = vector.broadcast %cst_7 : f32 to vector<16x1xf32>
    %8 = arith.divf %6, %7 : vector<16x1xf32>
    %9 = vector.broadcast %8 : vector<16x1xf32> to vector<16x32xf32>
    %10 = arith.subf %2, %9 : vector<16x32xf32>
    %11 = arith.mulf %10, %10 : vector<16x32xf32>
    %cst_8 = arith.constant dense<0.000000e+00> : vector<16xf32>
    %12 = vector.multi_reduction <add>, %11, %cst_8 [1] : vector<16x32xf32> to vector<16xf32>
    %13 = vector.shape_cast %12 : vector<16xf32> to vector<16x1xf32>
    %cst_9 = arith.constant 3.200000e+01 : f32
    %14 = vector.broadcast %cst_9 : f32 to vector<16x1xf32>
    %15 = arith.divf %13, %14 : vector<16x1xf32>
    %cst_10 = arith.constant 9.99999996E-13 : f32
    %16 = vector.broadcast %cst_10 : f32 to vector<16x1xf32>
    %17 = arith.addf %15, %16 : vector<16x1xf32>
    %18 = math.rsqrt %17 : vector<16x1xf32>
    %19 = vector.broadcast %18 : vector<16x1xf32> to vector<16x32xf32>
    %20 = arith.mulf %10, %19 : vector<16x32xf32>
    %21 = vector.broadcast %3 : vector<1x32xf32> to vector<16x32xf32>
    %22 = arith.mulf %20, %21 : vector<16x32xf32>
    %23 = vector.broadcast %4 : vector<1x32xf32> to vector<16x32xf32>
    %24 = arith.addf %22, %23 : vector<16x32xf32>
    %c0_11 = arith.constant 0 : index
    %c0_12 = arith.constant 0 : index
    %c0_13 = arith.constant 0 : index
    %25 = vector.load %arg3[%c0_11, %c0_12, %c0_13] : memref<2x32x96xf32, #tpu.memory_space<vmem>>, vector<1x32x96xf32>
    %26 = vector.shape_cast %25 : vector<1x32x96xf32> to vector<32x96xf32>
    %cst_14 = arith.constant dense<0.000000e+00> : vector<16x96xf32>
    %27 = tpu.matmul %24, %26, %cst_14 {dimension_numbers = #tpu.dot_dimension_numbers<[1], [0], [0], [1], [0, 0, 1, 1], [], []>} : vector<16x32xf32>, vector<32x96xf32>, vector<16x96xf32> -> vector<16x96xf32>
    %c0_15 = arith.constant 0 : index
    %c0_16 = arith.constant 0 : index
    %c0_17 = arith.constant 0 : index
    %28 = vector.load %arg4[%c0_15, %c0_16, %c0_17] : memref<2x1x96xf32, #tpu.memory_space<vmem>>, vector<1x1x96xf32>
    %29 = vector.shape_cast %28 : vector<1x1x96xf32> to vector<1x96xf32>
    %30 = vector.broadcast %29 : vector<1x96xf32> to vector<16x96xf32>
    %31 = arith.addf %27, %30 : vector<16x96xf32>
    %32 = vector.extract_strided_slice %31 {offsets = [0, 0], sizes = [8, 8], strides = [1, 1]} : vector<16x96xf32> to vector<8x8xf32>
    %33 = vector.extract_strided_slice %31 {offsets = [0, 32], sizes = [8, 8], strides = [1, 1]} : vector<16x96xf32> to vector<8x8xf32>
    %34 = vector.extract_strided_slice %31 {offsets = [0, 64], sizes = [8, 8], strides = [1, 1]} : vector<16x96xf32> to vector<8x8xf32>
    "tpu.trace_start"() <{level = 10 : i32, message = "qd,kd->qk"}> : () -> ()
    %cst_18 = arith.constant dense<0.000000e+00> : vector<8x8xf32>
    %35 = tpu.matmul %32, %33, %cst_18 {dimension_numbers = #tpu.dot_dimension_numbers<[1], [1], [0], [0], [0, 0, 1, 0], [], []>} : vector<8x8xf32>, vector<8x8xf32>, vector<8x8xf32> -> vector<8x8xf32>
    "tpu.trace_stop"() : () -> ()
    %36 = vector.broadcast %1 : f32 to vector<8x8xf32>
    %37 = arith.mulf %35, %36 : vector<8x8xf32>
    %cst_19 = arith.constant dense<0xFF800000> : vector<8xf32>
    %38 = vector.multi_reduction <maximumf>, %37, %cst_19 [1] : vector<8x8xf32> to vector<8xf32>
    %39 = vector.shape_cast %38 : vector<8xf32> to vector<8x1xf32>
    %40 = vector.broadcast %39 : vector<8x1xf32> to vector<8x8xf32>
    %41 = arith.subf %37, %40 : vector<8x8xf32>
    %42 = math.exp %41 : vector<8x8xf32>
    %cst_20 = arith.constant dense<0.000000e+00> : vector<8xf32>
    %43 = vector.multi_reduction <add>, %42, %cst_20 [1] : vector<8x8xf32> to vector<8xf32>
    %44 = vector.shape_cast %43 : vector<8xf32> to vector<8x1xf32>
    %45 = tpu.reciprocal %44 {approx = true} : vector<8x1xf32> -> vector<8x1xf32>
    %46 = vector.broadcast %45 : vector<8x1xf32> to vector<8x8xf32>
    %47 = arith.mulf %42, %46 : vector<8x8xf32>
    "tpu.trace_start"() <{level = 10 : i32, message = "qk,kd->qd"}> : () -> ()
    %cst_21 = arith.constant dense<0.000000e+00> : vector<8x8xf32>
    %48 = tpu.matmul %47, %34, %cst_21 {dimension_numbers = #tpu.dot_dimension_numbers<[1], [0], [0], [1], [0, 0, 1, 1], [], []>} : vector<8x8xf32>, vector<8x8xf32>, vector<8x8xf32> -> vector<8x8xf32>
    "tpu.trace_stop"() : () -> ()
    %49 = vector.extract_strided_slice %31 {offsets = [0, 8], sizes = [8, 8], strides = [1, 1]} : vector<16x96xf32> to vector<8x8xf32>
    %50 = vector.extract_strided_slice %31 {offsets = [0, 40], sizes = [8, 8], strides = [1, 1]} : vector<16x96xf32> to vector<8x8xf32>
    %51 = vector.extract_strided_slice %31 {offsets = [0, 72], sizes = [8, 8], strides = [1, 1]} : vector<16x96xf32> to vector<8x8xf32>
    "tpu.trace_start"() <{level = 10 : i32, message = "qd,kd->qk"}> : () -> ()
    %cst_22 = arith.constant dense<0.000000e+00> : vector<8x8xf32>
    %52 = tpu.matmul %49, %50, %cst_22 {dimension_numbers = #tpu.dot_dimension_numbers<[1], [1], [0], [0], [0, 0, 1, 0], [], []>} : vector<8x8xf32>, vector<8x8xf32>, vector<8x8xf32> -> vector<8x8xf32>
    "tpu.trace_stop"() : () -> ()
    %53 = vector.broadcast %1 : f32 to vector<8x8xf32>
    %54 = arith.mulf %52, %53 : vector<8x8xf32>
    %cst_23 = arith.constant dense<0xFF800000> : vector<8xf32>
    %55 = vector.multi_reduction <maximumf>, %54, %cst_23 [1] : vector<8x8xf32> to vector<8xf32>
    %56 = vector.shape_cast %55 : vector<8xf32> to vector<8x1xf32>
    %57 = vector.broadcast %56 : vector<8x1xf32> to vector<8x8xf32>
    %58 = arith.subf %54, %57 : vector<8x8xf32>
    %59 = math.exp %58 : vector<8x8xf32>
    %cst_24 = arith.constant dense<0.000000e+00> : vector<8xf32>
    %60 = vector.multi_reduction <add>, %59, %cst_24 [1] : vector<8x8xf32> to vector<8xf32>
    %61 = vector.shape_cast %60 : vector<8xf32> to vector<8x1xf32>
    %62 = tpu.reciprocal %61 {approx = true} : vector<8x1xf32> -> vector<8x1xf32>
    %63 = vector.broadcast %62 : vector<8x1xf32> to vector<8x8xf32>
    %64 = arith.mulf %59, %63 : vector<8x8xf32>
    "tpu.trace_start"() <{level = 10 : i32, message = "qk,kd->qd"}> : () -> ()
    %cst_25 = arith.constant dense<0.000000e+00> : vector<8x8xf32>
    %65 = tpu.matmul %64, %51, %cst_25 {dimension_numbers = #tpu.dot_dimension_numbers<[1], [0], [0], [1], [0, 0, 1, 1], [], []>} : vector<8x8xf32>, vector<8x8xf32>, vector<8x8xf32> -> vector<8x8xf32>
    "tpu.trace_stop"() : () -> ()
    %66 = vector.extract_strided_slice %31 {offsets = [0, 16], sizes = [8, 8], strides = [1, 1]} : vector<16x96xf32> to vector<8x8xf32>
    %67 = vector.extract_strided_slice %31 {offsets = [0, 48], sizes = [8, 8], strides = [1, 1]} : vector<16x96xf32> to vector<8x8xf32>
    %68 = vector.extract_strided_slice %31 {offsets = [0, 80], sizes = [8, 8], strides = [1, 1]} : vector<16x96xf32> to vector<8x8xf32>
    "tpu.trace_start"() <{level = 10 : i32, message = "qd,kd->qk"}> : () -> ()
    %cst_26 = arith.constant dense<0.000000e+00> : vector<8x8xf32>
    %69 = tpu.matmul %66, %67, %cst_26 {dimension_numbers = #tpu.dot_dimension_numbers<[1], [1], [0], [0], [0, 0, 1, 0], [], []>} : vector<8x8xf32>, vector<8x8xf32>, vector<8x8xf32> -> vector<8x8xf32>
    "tpu.trace_stop"() : () -> ()
    %70 = vector.broadcast %1 : f32 to vector<8x8xf32>
    %71 = arith.mulf %69, %70 : vector<8x8xf32>
    %cst_27 = arith.constant dense<0xFF800000> : vector<8xf32>
    %72 = vector.multi_reduction <maximumf>, %71, %cst_27 [1] : vector<8x8xf32> to vector<8xf32>
    %73 = vector.shape_cast %72 : vector<8xf32> to vector<8x1xf32>
    %74 = vector.broadcast %73 : vector<8x1xf32> to vector<8x8xf32>
    %75 = arith.subf %71, %74 : vector<8x8xf32>
    %76 = math.exp %75 : vector<8x8xf32>
    %cst_28 = arith.constant dense<0.000000e+00> : vector<8xf32>
    %77 = vector.multi_reduction <add>, %76, %cst_28 [1] : vector<8x8xf32> to vector<8xf32>
    %78 = vector.shape_cast %77 : vector<8xf32> to vector<8x1xf32>
    %79 = tpu.reciprocal %78 {approx = true} : vector<8x1xf32> -> vector<8x1xf32>
    %80 = vector.broadcast %79 : vector<8x1xf32> to vector<8x8xf32>
    %81 = arith.mulf %76, %80 : vector<8x8xf32>
    "tpu.trace_start"() <{level = 10 : i32, message = "qk,kd->qd"}> : () -> ()
    %cst_29 = arith.constant dense<0.000000e+00> : vector<8x8xf32>
    %82 = tpu.matmul %81, %68, %cst_29 {dimension_numbers = #tpu.dot_dimension_numbers<[1], [0], [0], [1], [0, 0, 1, 1], [], []>} : vector<8x8xf32>, vector<8x8xf32>, vector<8x8xf32> -> vector<8x8xf32>
    "tpu.trace_stop"() : () -> ()
    %83 = vector.extract_strided_slice %31 {offsets = [0, 24], sizes = [8, 8], strides = [1, 1]} : vector<16x96xf32> to vector<8x8xf32>
    %84 = vector.extract_strided_slice %31 {offsets = [0, 56], sizes = [8, 8], strides = [1, 1]} : vector<16x96xf32> to vector<8x8xf32>
    %85 = vector.extract_strided_slice %31 {offsets = [0, 88], sizes = [8, 8], strides = [1, 1]} : vector<16x96xf32> to vector<8x8xf32>
    "tpu.trace_start"() <{level = 10 : i32, message = "qd,kd->qk"}> : () -> ()
    %cst_30 = arith.constant dense<0.000000e+00> : vector<8x8xf32>
    %86 = tpu.matmul %83, %84, %cst_30 {dimension_numbers = #tpu.dot_dimension_numbers<[1], [1], [0], [0], [0, 0, 1, 0], [], []>} : vector<8x8xf32>, vector<8x8xf32>, vector<8x8xf32> -> vector<8x8xf32>
    "tpu.trace_stop"() : () -> ()
    %87 = vector.broadcast %1 : f32 to vector<8x8xf32>
    %88 = arith.mulf %86, %87 : vector<8x8xf32>
    %cst_31 = arith.constant dense<0xFF800000> : vector<8xf32>
    %89 = vector.multi_reduction <maximumf>, %88, %cst_31 [1] : vector<8x8xf32> to vector<8xf32>
    %90 = vector.shape_cast %89 : vector<8xf32> to vector<8x1xf32>
    %91 = vector.broadcast %90 : vector<8x1xf32> to vector<8x8xf32>
    %92 = arith.subf %88, %91 : vector<8x8xf32>
    %93 = math.exp %92 : vector<8x8xf32>
    %cst_32 = arith.constant dense<0.000000e+00> : vector<8xf32>
    %94 = vector.multi_reduction <add>, %93, %cst_32 [1] : vector<8x8xf32> to vector<8xf32>
    %95 = vector.shape_cast %94 : vector<8xf32> to vector<8x1xf32>
    %96 = tpu.reciprocal %95 {approx = true} : vector<8x1xf32> -> vector<8x1xf32>
    %97 = vector.broadcast %96 : vector<8x1xf32> to vector<8x8xf32>
    %98 = arith.mulf %93, %97 : vector<8x8xf32>
    "tpu.trace_start"() <{level = 10 : i32, message = "qk,kd->qd"}> : () -> ()
    %cst_33 = arith.constant dense<0.000000e+00> : vector<8x8xf32>
    %99 = tpu.matmul %98, %85, %cst_33 {dimension_numbers = #tpu.dot_dimension_numbers<[1], [0], [0], [1], [0, 0, 1, 1], [], []>} : vector<8x8xf32>, vector<8x8xf32>, vector<8x8xf32> -> vector<8x8xf32>
    "tpu.trace_stop"() : () -> ()
    %100 = tpu.concatenate %48, %65, %82, %99 in 1 : vector<8x8xf32>, vector<8x8xf32>, vector<8x8xf32>, vector<8x8xf32> -> vector<8x32xf32>
    %101 = vector.extract_strided_slice %31 {offsets = [8, 0], sizes = [8, 8], strides = [1, 1]} : vector<16x96xf32> to vector<8x8xf32>
    %102 = vector.extract_strided_slice %31 {offsets = [8, 32], sizes = [8, 8], strides = [1, 1]} : vector<16x96xf32> to vector<8x8xf32>
    %103 = vector.extract_strided_slice %31 {offsets = [8, 64], sizes = [8, 8], strides = [1, 1]} : vector<16x96xf32> to vector<8x8xf32>
    "tpu.trace_start"() <{level = 10 : i32, message = "qd,kd->qk"}> : () -> ()
    %cst_34 = arith.constant dense<0.000000e+00> : vector<8x8xf32>
    %104 = tpu.matmul %101, %102, %cst_34 {dimension_numbers = #tpu.dot_dimension_numbers<[1], [1], [0], [0], [0, 0, 1, 0], [], []>} : vector<8x8xf32>, vector<8x8xf32>, vector<8x8xf32> -> vector<8x8xf32>
    "tpu.trace_stop"() : () -> ()
    %105 = vector.broadcast %1 : f32 to vector<8x8xf32>
    %106 = arith.mulf %104, %105 : vector<8x8xf32>
    %cst_35 = arith.constant dense<0xFF800000> : vector<8xf32>
    %107 = vector.multi_reduction <maximumf>, %106, %cst_35 [1] : vector<8x8xf32> to vector<8xf32>
    %108 = vector.shape_cast %107 : vector<8xf32> to vector<8x1xf32>
    %109 = vector.broadcast %108 : vector<8x1xf32> to vector<8x8xf32>
    %110 = arith.subf %106, %109 : vector<8x8xf32>
    %111 = math.exp %110 : vector<8x8xf32>
    %cst_36 = arith.constant dense<0.000000e+00> : vector<8xf32>
    %112 = vector.multi_reduction <add>, %111, %cst_36 [1] : vector<8x8xf32> to vector<8xf32>
    %113 = vector.shape_cast %112 : vector<8xf32> to vector<8x1xf32>
    %114 = tpu.reciprocal %113 {approx = true} : vector<8x1xf32> -> vector<8x1xf32>
    %115 = vector.broadcast %114 : vector<8x1xf32> to vector<8x8xf32>
    %116 = arith.mulf %111, %115 : vector<8x8xf32>
    "tpu.trace_start"() <{level = 10 : i32, message = "qk,kd->qd"}> : () -> ()
    %cst_37 = arith.constant dense<0.000000e+00> : vector<8x8xf32>
    %117 = tpu.matmul %116, %103, %cst_37 {dimension_numbers = #tpu.dot_dimension_numbers<[1], [0], [0], [1], [0, 0, 1, 1], [], []>} : vector<8x8xf32>, vector<8x8xf32>, vector<8x8xf32> -> vector<8x8xf32>
    "tpu.trace_stop"() : () -> ()
    %118 = vector.extract_strided_slice %31 {offsets = [8, 8], sizes = [8, 8], strides = [1, 1]} : vector<16x96xf32> to vector<8x8xf32>
    %119 = vector.extract_strided_slice %31 {offsets = [8, 40], sizes = [8, 8], strides = [1, 1]} : vector<16x96xf32> to vector<8x8xf32>
    %120 = vector.extract_strided_slice %31 {offsets = [8, 72], sizes = [8, 8], strides = [1, 1]} : vector<16x96xf32> to vector<8x8xf32>
    "tpu.trace_start"() <{level = 10 : i32, message = "qd,kd->qk"}> : () -> ()
    %cst_38 = arith.constant dense<0.000000e+00> : vector<8x8xf32>
    %121 = tpu.matmul %118, %119, %cst_38 {dimension_numbers = #tpu.dot_dimension_numbers<[1], [1], [0], [0], [0, 0, 1, 0], [], []>} : vector<8x8xf32>, vector<8x8xf32>, vector<8x8xf32> -> vector<8x8xf32>
    "tpu.trace_stop"() : () -> ()
    %122 = vector.broadcast %1 : f32 to vector<8x8xf32>
    %123 = arith.mulf %121, %122 : vector<8x8xf32>
    %cst_39 = arith.constant dense<0xFF800000> : vector<8xf32>
    %124 = vector.multi_reduction <maximumf>, %123, %cst_39 [1] : vector<8x8xf32> to vector<8xf32>
    %125 = vector.shape_cast %124 : vector<8xf32> to vector<8x1xf32>
    %126 = vector.broadcast %125 : vector<8x1xf32> to vector<8x8xf32>
    %127 = arith.subf %123, %126 : vector<8x8xf32>
    %128 = math.exp %127 : vector<8x8xf32>
    %cst_40 = arith.constant dense<0.000000e+00> : vector<8xf32>
    %129 = vector.multi_reduction <add>, %128, %cst_40 [1] : vector<8x8xf32> to vector<8xf32>
    %130 = vector.shape_cast %129 : vector<8xf32> to vector<8x1xf32>
    %131 = tpu.reciprocal %130 {approx = true} : vector<8x1xf32> -> vector<8x1xf32>
    %132 = vector.broadcast %131 : vector<8x1xf32> to vector<8x8xf32>
    %133 = arith.mulf %128, %132 : vector<8x8xf32>
    "tpu.trace_start"() <{level = 10 : i32, message = "qk,kd->qd"}> : () -> ()
    %cst_41 = arith.constant dense<0.000000e+00> : vector<8x8xf32>
    %134 = tpu.matmul %133, %120, %cst_41 {dimension_numbers = #tpu.dot_dimension_numbers<[1], [0], [0], [1], [0, 0, 1, 1], [], []>} : vector<8x8xf32>, vector<8x8xf32>, vector<8x8xf32> -> vector<8x8xf32>
    "tpu.trace_stop"() : () -> ()
    %135 = vector.extract_strided_slice %31 {offsets = [8, 16], sizes = [8, 8], strides = [1, 1]} : vector<16x96xf32> to vector<8x8xf32>
    %136 = vector.extract_strided_slice %31 {offsets = [8, 48], sizes = [8, 8], strides = [1, 1]} : vector<16x96xf32> to vector<8x8xf32>
    %137 = vector.extract_strided_slice %31 {offsets = [8, 80], sizes = [8, 8], strides = [1, 1]} : vector<16x96xf32> to vector<8x8xf32>
    "tpu.trace_start"() <{level = 10 : i32, message = "qd,kd->qk"}> : () -> ()
    %cst_42 = arith.constant dense<0.000000e+00> : vector<8x8xf32>
    %138 = tpu.matmul %135, %136, %cst_42 {dimension_numbers = #tpu.dot_dimension_numbers<[1], [1], [0], [0], [0, 0, 1, 0], [], []>} : vector<8x8xf32>, vector<8x8xf32>, vector<8x8xf32> -> vector<8x8xf32>
    "tpu.trace_stop"() : () -> ()
    %139 = vector.broadcast %1 : f32 to vector<8x8xf32>
    %140 = arith.mulf %138, %139 : vector<8x8xf32>
    %cst_43 = arith.constant dense<0xFF800000> : vector<8xf32>
    %141 = vector.multi_reduction <maximumf>, %140, %cst_43 [1] : vector<8x8xf32> to vector<8xf32>
    %142 = vector.shape_cast %141 : vector<8xf32> to vector<8x1xf32>
    %143 = vector.broadcast %142 : vector<8x1xf32> to vector<8x8xf32>
    %144 = arith.subf %140, %143 : vector<8x8xf32>
    %145 = math.exp %144 : vector<8x8xf32>
    %cst_44 = arith.constant dense<0.000000e+00> : vector<8xf32>
    %146 = vector.multi_reduction <add>, %145, %cst_44 [1] : vector<8x8xf32> to vector<8xf32>
    %147 = vector.shape_cast %146 : vector<8xf32> to vector<8x1xf32>
    %148 = tpu.reciprocal %147 {approx = true} : vector<8x1xf32> -> vector<8x1xf32>
    %149 = vector.broadcast %148 : vector<8x1xf32> to vector<8x8xf32>
    %150 = arith.mulf %145, %149 : vector<8x8xf32>
    "tpu.trace_start"() <{level = 10 : i32, message = "qk,kd->qd"}> : () -> ()
    %cst_45 = arith.constant dense<0.000000e+00> : vector<8x8xf32>
    %151 = tpu.matmul %150, %137, %cst_45 {dimension_numbers = #tpu.dot_dimension_numbers<[1], [0], [0], [1], [0, 0, 1, 1], [], []>} : vector<8x8xf32>, vector<8x8xf32>, vector<8x8xf32> -> vector<8x8xf32>
    "tpu.trace_stop"() : () -> ()
    %152 = vector.extract_strided_slice %31 {offsets = [8, 24], sizes = [8, 8], strides = [1, 1]} : vector<16x96xf32> to vector<8x8xf32>
    %153 = vector.extract_strided_slice %31 {offsets = [8, 56], sizes = [8, 8], strides = [1, 1]} : vector<16x96xf32> to vector<8x8xf32>
    %154 = vector.extract_strided_slice %31 {offsets = [8, 88], sizes = [8, 8], strides = [1, 1]} : vector<16x96xf32> to vector<8x8xf32>
    "tpu.trace_start"() <{level = 10 : i32, message = "qd,kd->qk"}> : () -> ()
    %cst_46 = arith.constant dense<0.000000e+00> : vector<8x8xf32>
    %155 = tpu.matmul %152, %153, %cst_46 {dimension_numbers = #tpu.dot_dimension_numbers<[1], [1], [0], [0], [0, 0, 1, 0], [], []>} : vector<8x8xf32>, vector<8x8xf32>, vector<8x8xf32> -> vector<8x8xf32>
    "tpu.trace_stop"() : () -> ()
    %156 = vector.broadcast %1 : f32 to vector<8x8xf32>
    %157 = arith.mulf %155, %156 : vector<8x8xf32>
    %cst_47 = arith.constant dense<0xFF800000> : vector<8xf32>
    %158 = vector.multi_reduction <maximumf>, %157, %cst_47 [1] : vector<8x8xf32> to vector<8xf32>
    %159 = vector.shape_cast %158 : vector<8xf32> to vector<8x1xf32>
    %160 = vector.broadcast %159 : vector<8x1xf32> to vector<8x8xf32>
    %161 = arith.subf %157, %160 : vector<8x8xf32>
    %162 = math.exp %161 : vector<8x8xf32>
    %cst_48 = arith.constant dense<0.000000e+00> : vector<8xf32>
    %163 = vector.multi_reduction <add>, %162, %cst_48 [1] : vector<8x8xf32> to vector<8xf32>
    %164 = vector.shape_cast %163 : vector<8xf32> to vector<8x1xf32>
    %165 = tpu.reciprocal %164 {approx = true} : vector<8x1xf32> -> vector<8x1xf32>
    %166 = vector.broadcast %165 : vector<8x1xf32> to vector<8x8xf32>
    %167 = arith.mulf %162, %166 : vector<8x8xf32>
    "tpu.trace_start"() <{level = 10 : i32, message = "qk,kd->qd"}> : () -> ()
    %cst_49 = arith.constant dense<0.000000e+00> : vector<8x8xf32>
    %168 = tpu.matmul %167, %154, %cst_49 {dimension_numbers = #tpu.dot_dimension_numbers<[1], [0], [0], [1], [0, 0, 1, 1], [], []>} : vector<8x8xf32>, vector<8x8xf32>, vector<8x8xf32> -> vector<8x8xf32>
    "tpu.trace_stop"() : () -> ()
    %169 = tpu.concatenate %117, %134, %151, %168 in 1 : vector<8x8xf32>, vector<8x8xf32>, vector<8x8xf32>, vector<8x8xf32> -> vector<8x32xf32>
    %170 = tpu.concatenate %100, %169 in 0 : vector<8x32xf32>, vector<8x32xf32> -> vector<16x32xf32>
    %c0_50 = arith.constant 0 : index
    %c0_51 = arith.constant 0 : index
    %c0_52 = arith.constant 0 : index
    %171 = vector.load %arg5[%c0_50, %c0_51, %c0_52] : memref<2x32x32xf32, #tpu.memory_space<vmem>>, vector<1x32x32xf32>
    %172 = vector.shape_cast %171 : vector<1x32x32xf32> to vector<32x32xf32>
    %cst_53 = arith.constant dense<0.000000e+00> : vector<16x32xf32>
    %173 = tpu.matmul %170, %172, %cst_53 {dimension_numbers = #tpu.dot_dimension_numbers<[1], [0], [0], [1], [0, 0, 1, 1], [], []>} : vector<16x32xf32>, vector<32x32xf32>, vector<16x32xf32> -> vector<16x32xf32>
    %c0_54 = arith.constant 0 : index
    %c0_55 = arith.constant 0 : index
    %c0_56 = arith.constant 0 : index
    %174 = vector.load %arg6[%c0_54, %c0_55, %c0_56] : memref<2x1x32xf32, #tpu.memory_space<vmem>>, vector<1x1x32xf32>
    %175 = vector.shape_cast %174 : vector<1x1x32xf32> to vector<1x32xf32>
    %176 = vector.broadcast %175 : vector<1x32xf32> to vector<16x32xf32>
    %177 = arith.addf %173, %176 : vector<16x32xf32>
    %178 = arith.addf %177, %24 : vector<16x32xf32>
    %c0_57 = arith.constant 0 : index
    %c0_58 = arith.constant 0 : index
    %c0_59 = arith.constant 0 : index
    %179 = vector.load %arg7[%c0_57, %c0_58, %c0_59] : memref<2x1x32xf32, #tpu.memory_space<vmem>>, vector<1x1x32xf32>
    %180 = vector.shape_cast %179 : vector<1x1x32xf32> to vector<1x32xf32>
    %c0_60 = arith.constant 0 : index
    %c0_61 = arith.constant 0 : index
    %c0_62 = arith.constant 0 : index
    %181 = vector.load %arg8[%c0_60, %c0_61, %c0_62] : memref<2x1x32xf32, #tpu.memory_space<vmem>>, vector<1x1x32xf32>
    %182 = vector.shape_cast %181 : vector<1x1x32xf32> to vector<1x32xf32>
    %cst_63 = arith.constant dense<0.000000e+00> : vector<16xf32>
    %183 = vector.multi_reduction <add>, %178, %cst_63 [1] : vector<16x32xf32> to vector<16xf32>
    %184 = vector.shape_cast %183 : vector<16xf32> to vector<16x1xf32>
    %cst_64 = arith.constant 3.200000e+01 : f32
    %185 = vector.broadcast %cst_64 : f32 to vector<16x1xf32>
    %186 = arith.divf %184, %185 : vector<16x1xf32>
    %187 = vector.broadcast %186 : vector<16x1xf32> to vector<16x32xf32>
    %188 = arith.subf %178, %187 : vector<16x32xf32>
    %189 = arith.mulf %188, %188 : vector<16x32xf32>
    %cst_65 = arith.constant dense<0.000000e+00> : vector<16xf32>
    %190 = vector.multi_reduction <add>, %189, %cst_65 [1] : vector<16x32xf32> to vector<16xf32>
    %191 = vector.shape_cast %190 : vector<16xf32> to vector<16x1xf32>
    %cst_66 = arith.constant 3.200000e+01 : f32
    %192 = vector.broadcast %cst_66 : f32 to vector<16x1xf32>
    %193 = arith.divf %191, %192 : vector<16x1xf32>
    %cst_67 = arith.constant 9.99999996E-13 : f32
    %194 = vector.broadcast %cst_67 : f32 to vector<16x1xf32>
    %195 = arith.addf %193, %194 : vector<16x1xf32>
    %196 = math.rsqrt %195 : vector<16x1xf32>
    %197 = vector.broadcast %196 : vector<16x1xf32> to vector<16x32xf32>
    %198 = arith.mulf %188, %197 : vector<16x32xf32>
    %199 = vector.broadcast %180 : vector<1x32xf32> to vector<16x32xf32>
    %200 = arith.mulf %198, %199 : vector<16x32xf32>
    %201 = vector.broadcast %182 : vector<1x32xf32> to vector<16x32xf32>
    %202 = arith.addf %200, %201 : vector<16x32xf32>
    %c0_68 = arith.constant 0 : index
    %c0_69 = arith.constant 0 : index
    %c0_70 = arith.constant 0 : index
    %203 = vector.load %arg9[%c0_68, %c0_69, %c0_70] : memref<2x32x64xf32, #tpu.memory_space<vmem>>, vector<1x32x64xf32>
    %204 = vector.shape_cast %203 : vector<1x32x64xf32> to vector<32x64xf32>
    %cst_71 = arith.constant dense<0.000000e+00> : vector<16x64xf32>
    %205 = tpu.matmul %202, %204, %cst_71 {dimension_numbers = #tpu.dot_dimension_numbers<[1], [0], [0], [1], [0, 0, 1, 1], [], []>} : vector<16x32xf32>, vector<32x64xf32>, vector<16x64xf32> -> vector<16x64xf32>
    %c0_72 = arith.constant 0 : index
    %c0_73 = arith.constant 0 : index
    %c0_74 = arith.constant 0 : index
    %206 = vector.load %arg10[%c0_72, %c0_73, %c0_74] : memref<2x1x64xf32, #tpu.memory_space<vmem>>, vector<1x1x64xf32>
    %207 = vector.shape_cast %206 : vector<1x1x64xf32> to vector<1x64xf32>
    %208 = vector.broadcast %207 : vector<1x64xf32> to vector<16x64xf32>
    %209 = arith.addf %205, %208 : vector<16x64xf32>
    %cst_75 = arith.constant 5.000000e-01 : f32
    %210 = vector.broadcast %cst_75 : f32 to vector<16x64xf32>
    %211 = arith.mulf %210, %209 : vector<16x64xf32>
    %cst_76 = arith.constant 4.471500e-02 : f32
    %212 = vector.broadcast %cst_76 : f32 to vector<16x64xf32>
    %213 = arith.mulf %212, %209 : vector<16x64xf32>
    %214 = arith.mulf %213, %209 : vector<16x64xf32>
    %215 = arith.mulf %214, %209 : vector<16x64xf32>
    %216 = arith.addf %209, %215 : vector<16x64xf32>
    %cst_77 = arith.constant 0.797884583 : f32
    %217 = vector.broadcast %cst_77 : f32 to vector<16x64xf32>
    %218 = arith.mulf %217, %216 : vector<16x64xf32>
    %219 = math.tanh %218 : vector<16x64xf32>
    %cst_78 = arith.constant 1.000000e+00 : f32
    %220 = vector.broadcast %cst_78 : f32 to vector<16x64xf32>
    %221 = arith.addf %220, %219 : vector<16x64xf32>
    %222 = arith.mulf %211, %221 : vector<16x64xf32>
    %c0_79 = arith.constant 0 : index
    %c0_80 = arith.constant 0 : index
    %c0_81 = arith.constant 0 : index
    %223 = vector.load %arg11[%c0_79, %c0_80, %c0_81] : memref<2x64x32xf32, #tpu.memory_space<vmem>>, vector<1x64x32xf32>
    %224 = vector.shape_cast %223 : vector<1x64x32xf32> to vector<64x32xf32>
    %cst_82 = arith.constant dense<0.000000e+00> : vector<16x32xf32>
    %225 = tpu.matmul %222, %224, %cst_82 {dimension_numbers = #tpu.dot_dimension_numbers<[1], [0], [0], [1], [0, 0, 1, 1], [], []>} : vector<16x64xf32>, vector<64x32xf32>, vector<16x32xf32> -> vector<16x32xf32>
    %c0_83 = arith.constant 0 : index
    %c0_84 = arith.constant 0 : index
    %c0_85 = arith.constant 0 : index
    %226 = vector.load %arg12[%c0_83, %c0_84, %c0_85] : memref<2x1x32xf32, #tpu.memory_space<vmem>>, vector<1x1x32xf32>
    %227 = vector.shape_cast %226 : vector<1x1x32xf32> to vector<1x32xf32>
    %228 = vector.broadcast %227 : vector<1x32xf32> to vector<16x32xf32>
    %229 = arith.addf %225, %228 : vector<16x32xf32>
    %230 = arith.addf %229, %202 : vector<16x32xf32>
    %c0_86 = arith.constant 0 : index
    %c0_87 = arith.constant 0 : index
    %c0_88 = arith.constant 0 : index
    %231 = vector.load %arg13[%c0_86, %c0_87, %c0_88] : memref<2x1x32xf32, #tpu.memory_space<vmem>>, vector<1x1x32xf32>
    %232 = vector.shape_cast %231 : vector<1x1x32xf32> to vector<1x32xf32>
    %c0_89 = arith.constant 0 : index
    %c0_90 = arith.constant 0 : index
    %c0_91 = arith.constant 0 : index
    %233 = vector.load %arg14[%c0_89, %c0_90, %c0_91] : memref<2x1x32xf32, #tpu.memory_space<vmem>>, vector<1x1x32xf32>
    %234 = vector.shape_cast %233 : vector<1x1x32xf32> to vector<1x32xf32>
    %cst_92 = arith.constant dense<0.000000e+00> : vector<16xf32>
    %235 = vector.multi_reduction <add>, %230, %cst_92 [1] : vector<16x32xf32> to vector<16xf32>
    %236 = vector.shape_cast %235 : vector<16xf32> to vector<16x1xf32>
    %cst_93 = arith.constant 3.200000e+01 : f32
    %237 = vector.broadcast %cst_93 : f32 to vector<16x1xf32>
    %238 = arith.divf %236, %237 : vector<16x1xf32>
    %239 = vector.broadcast %238 : vector<16x1xf32> to vector<16x32xf32>
    %240 = arith.subf %230, %239 : vector<16x32xf32>
    %241 = arith.mulf %240, %240 : vector<16x32xf32>
    %cst_94 = arith.constant dense<0.000000e+00> : vector<16xf32>
    %242 = vector.multi_reduction <add>, %241, %cst_94 [1] : vector<16x32xf32> to vector<16xf32>
    %243 = vector.shape_cast %242 : vector<16xf32> to vector<16x1xf32>
    %cst_95 = arith.constant 3.200000e+01 : f32
    %244 = vector.broadcast %cst_95 : f32 to vector<16x1xf32>
    %245 = arith.divf %243, %244 : vector<16x1xf32>
    %cst_96 = arith.constant 9.99999996E-13 : f32
    %246 = vector.broadcast %cst_96 : f32 to vector<16x1xf32>
    %247 = arith.addf %245, %246 : vector<16x1xf32>
    %248 = math.rsqrt %247 : vector<16x1xf32>
    %249 = vector.broadcast %248 : vector<16x1xf32> to vector<16x32xf32>
    %250 = arith.mulf %240, %249 : vector<16x32xf32>
    %251 = vector.broadcast %232 : vector<1x32xf32> to vector<16x32xf32>
    %252 = arith.mulf %250, %251 : vector<16x32xf32>
    %253 = vector.broadcast %234 : vector<1x32xf32> to vector<16x32xf32>
    %254 = arith.addf %252, %253 : vector<16x32xf32>
    %c1 = arith.constant 1 : index
    %c0_97 = arith.constant 0 : index
    %c0_98 = arith.constant 0 : index
    %255 = vector.load %arg3[%c1, %c0_97, %c0_98] : memref<2x32x96xf32, #tpu.memory_space<vmem>>, vector<1x32x96xf32>
    %256 = vector.shape_cast %255 : vector<1x32x96xf32> to vector<32x96xf32>
    %cst_99 = arith.constant dense<0.000000e+00> : vector<16x96xf32>
    %257 = tpu.matmul %254, %256, %cst_99 {dimension_numbers = #tpu.dot_dimension_numbers<[1], [0], [0], [1], [0, 0, 1, 1], [], []>} : vector<16x32xf32>, vector<32x96xf32>, vector<16x96xf32> -> vector<16x96xf32>
    %c1_100 = arith.constant 1 : index
    %c0_101 = arith.constant 0 : index
    %c0_102 = arith.constant 0 : index
    %258 = vector.load %arg4[%c1_100, %c0_101, %c0_102] : memref<2x1x96xf32, #tpu.memory_space<vmem>>, vector<1x1x96xf32>
    %259 = vector.shape_cast %258 : vector<1x1x96xf32> to vector<1x96xf32>
    %260 = vector.broadcast %259 : vector<1x96xf32> to vector<16x96xf32>
    %261 = arith.addf %257, %260 : vector<16x96xf32>
    %262 = vector.extract_strided_slice %261 {offsets = [0, 0], sizes = [8, 8], strides = [1, 1]} : vector<16x96xf32> to vector<8x8xf32>
    %263 = vector.extract_strided_slice %261 {offsets = [0, 32], sizes = [8, 8], strides = [1, 1]} : vector<16x96xf32> to vector<8x8xf32>
    %264 = vector.extract_strided_slice %261 {offsets = [0, 64], sizes = [8, 8], strides = [1, 1]} : vector<16x96xf32> to vector<8x8xf32>
    "tpu.trace_start"() <{level = 10 : i32, message = "qd,kd->qk"}> : () -> ()
    %cst_103 = arith.constant dense<0.000000e+00> : vector<8x8xf32>
    %265 = tpu.matmul %262, %263, %cst_103 {dimension_numbers = #tpu.dot_dimension_numbers<[1], [1], [0], [0], [0, 0, 1, 0], [], []>} : vector<8x8xf32>, vector<8x8xf32>, vector<8x8xf32> -> vector<8x8xf32>
    "tpu.trace_stop"() : () -> ()
    %266 = vector.broadcast %1 : f32 to vector<8x8xf32>
    %267 = arith.mulf %265, %266 : vector<8x8xf32>
    %cst_104 = arith.constant dense<0xFF800000> : vector<8xf32>
    %268 = vector.multi_reduction <maximumf>, %267, %cst_104 [1] : vector<8x8xf32> to vector<8xf32>
    %269 = vector.shape_cast %268 : vector<8xf32> to vector<8x1xf32>
    %270 = vector.broadcast %269 : vector<8x1xf32> to vector<8x8xf32>
    %271 = arith.subf %267, %270 : vector<8x8xf32>
    %272 = math.exp %271 : vector<8x8xf32>
    %cst_105 = arith.constant dense<0.000000e+00> : vector<8xf32>
    %273 = vector.multi_reduction <add>, %272, %cst_105 [1] : vector<8x8xf32> to vector<8xf32>
    %274 = vector.shape_cast %273 : vector<8xf32> to vector<8x1xf32>
    %275 = tpu.reciprocal %274 {approx = true} : vector<8x1xf32> -> vector<8x1xf32>
    %276 = vector.broadcast %275 : vector<8x1xf32> to vector<8x8xf32>
    %277 = arith.mulf %272, %276 : vector<8x8xf32>
    "tpu.trace_start"() <{level = 10 : i32, message = "qk,kd->qd"}> : () -> ()
    %cst_106 = arith.constant dense<0.000000e+00> : vector<8x8xf32>
    %278 = tpu.matmul %277, %264, %cst_106 {dimension_numbers = #tpu.dot_dimension_numbers<[1], [0], [0], [1], [0, 0, 1, 1], [], []>} : vector<8x8xf32>, vector<8x8xf32>, vector<8x8xf32> -> vector<8x8xf32>
    "tpu.trace_stop"() : () -> ()
    %279 = vector.extract_strided_slice %261 {offsets = [0, 8], sizes = [8, 8], strides = [1, 1]} : vector<16x96xf32> to vector<8x8xf32>
    %280 = vector.extract_strided_slice %261 {offsets = [0, 40], sizes = [8, 8], strides = [1, 1]} : vector<16x96xf32> to vector<8x8xf32>
    %281 = vector.extract_strided_slice %261 {offsets = [0, 72], sizes = [8, 8], strides = [1, 1]} : vector<16x96xf32> to vector<8x8xf32>
    "tpu.trace_start"() <{level = 10 : i32, message = "qd,kd->qk"}> : () -> ()
    %cst_107 = arith.constant dense<0.000000e+00> : vector<8x8xf32>
    %282 = tpu.matmul %279, %280, %cst_107 {dimension_numbers = #tpu.dot_dimension_numbers<[1], [1], [0], [0], [0, 0, 1, 0], [], []>} : vector<8x8xf32>, vector<8x8xf32>, vector<8x8xf32> -> vector<8x8xf32>
    "tpu.trace_stop"() : () -> ()
    %283 = vector.broadcast %1 : f32 to vector<8x8xf32>
    %284 = arith.mulf %282, %283 : vector<8x8xf32>
    %cst_108 = arith.constant dense<0xFF800000> : vector<8xf32>
    %285 = vector.multi_reduction <maximumf>, %284, %cst_108 [1] : vector<8x8xf32> to vector<8xf32>
    %286 = vector.shape_cast %285 : vector<8xf32> to vector<8x1xf32>
    %287 = vector.broadcast %286 : vector<8x1xf32> to vector<8x8xf32>
    %288 = arith.subf %284, %287 : vector<8x8xf32>
    %289 = math.exp %288 : vector<8x8xf32>
    %cst_109 = arith.constant dense<0.000000e+00> : vector<8xf32>
    %290 = vector.multi_reduction <add>, %289, %cst_109 [1] : vector<8x8xf32> to vector<8xf32>
    %291 = vector.shape_cast %290 : vector<8xf32> to vector<8x1xf32>
    %292 = tpu.reciprocal %291 {approx = true} : vector<8x1xf32> -> vector<8x1xf32>
    %293 = vector.broadcast %292 : vector<8x1xf32> to vector<8x8xf32>
    %294 = arith.mulf %289, %293 : vector<8x8xf32>
    "tpu.trace_start"() <{level = 10 : i32, message = "qk,kd->qd"}> : () -> ()
    %cst_110 = arith.constant dense<0.000000e+00> : vector<8x8xf32>
    %295 = tpu.matmul %294, %281, %cst_110 {dimension_numbers = #tpu.dot_dimension_numbers<[1], [0], [0], [1], [0, 0, 1, 1], [], []>} : vector<8x8xf32>, vector<8x8xf32>, vector<8x8xf32> -> vector<8x8xf32>
    "tpu.trace_stop"() : () -> ()
    %296 = vector.extract_strided_slice %261 {offsets = [0, 16], sizes = [8, 8], strides = [1, 1]} : vector<16x96xf32> to vector<8x8xf32>
    %297 = vector.extract_strided_slice %261 {offsets = [0, 48], sizes = [8, 8], strides = [1, 1]} : vector<16x96xf32> to vector<8x8xf32>
    %298 = vector.extract_strided_slice %261 {offsets = [0, 80], sizes = [8, 8], strides = [1, 1]} : vector<16x96xf32> to vector<8x8xf32>
    "tpu.trace_start"() <{level = 10 : i32, message = "qd,kd->qk"}> : () -> ()
    %cst_111 = arith.constant dense<0.000000e+00> : vector<8x8xf32>
    %299 = tpu.matmul %296, %297, %cst_111 {dimension_numbers = #tpu.dot_dimension_numbers<[1], [1], [0], [0], [0, 0, 1, 0], [], []>} : vector<8x8xf32>, vector<8x8xf32>, vector<8x8xf32> -> vector<8x8xf32>
    "tpu.trace_stop"() : () -> ()
    %300 = vector.broadcast %1 : f32 to vector<8x8xf32>
    %301 = arith.mulf %299, %300 : vector<8x8xf32>
    %cst_112 = arith.constant dense<0xFF800000> : vector<8xf32>
    %302 = vector.multi_reduction <maximumf>, %301, %cst_112 [1] : vector<8x8xf32> to vector<8xf32>
    %303 = vector.shape_cast %302 : vector<8xf32> to vector<8x1xf32>
    %304 = vector.broadcast %303 : vector<8x1xf32> to vector<8x8xf32>
    %305 = arith.subf %301, %304 : vector<8x8xf32>
    %306 = math.exp %305 : vector<8x8xf32>
    %cst_113 = arith.constant dense<0.000000e+00> : vector<8xf32>
    %307 = vector.multi_reduction <add>, %306, %cst_113 [1] : vector<8x8xf32> to vector<8xf32>
    %308 = vector.shape_cast %307 : vector<8xf32> to vector<8x1xf32>
    %309 = tpu.reciprocal %308 {approx = true} : vector<8x1xf32> -> vector<8x1xf32>
    %310 = vector.broadcast %309 : vector<8x1xf32> to vector<8x8xf32>
    %311 = arith.mulf %306, %310 : vector<8x8xf32>
    "tpu.trace_start"() <{level = 10 : i32, message = "qk,kd->qd"}> : () -> ()
    %cst_114 = arith.constant dense<0.000000e+00> : vector<8x8xf32>
    %312 = tpu.matmul %311, %298, %cst_114 {dimension_numbers = #tpu.dot_dimension_numbers<[1], [0], [0], [1], [0, 0, 1, 1], [], []>} : vector<8x8xf32>, vector<8x8xf32>, vector<8x8xf32> -> vector<8x8xf32>
    "tpu.trace_stop"() : () -> ()
    %313 = vector.extract_strided_slice %261 {offsets = [0, 24], sizes = [8, 8], strides = [1, 1]} : vector<16x96xf32> to vector<8x8xf32>
    %314 = vector.extract_strided_slice %261 {offsets = [0, 56], sizes = [8, 8], strides = [1, 1]} : vector<16x96xf32> to vector<8x8xf32>
    %315 = vector.extract_strided_slice %261 {offsets = [0, 88], sizes = [8, 8], strides = [1, 1]} : vector<16x96xf32> to vector<8x8xf32>
    "tpu.trace_start"() <{level = 10 : i32, message = "qd,kd->qk"}> : () -> ()
    %cst_115 = arith.constant dense<0.000000e+00> : vector<8x8xf32>
    %316 = tpu.matmul %313, %314, %cst_115 {dimension_numbers = #tpu.dot_dimension_numbers<[1], [1], [0], [0], [0, 0, 1, 0], [], []>} : vector<8x8xf32>, vector<8x8xf32>, vector<8x8xf32> -> vector<8x8xf32>
    "tpu.trace_stop"() : () -> ()
    %317 = vector.broadcast %1 : f32 to vector<8x8xf32>
    %318 = arith.mulf %316, %317 : vector<8x8xf32>
    %cst_116 = arith.constant dense<0xFF800000> : vector<8xf32>
    %319 = vector.multi_reduction <maximumf>, %318, %cst_116 [1] : vector<8x8xf32> to vector<8xf32>
    %320 = vector.shape_cast %319 : vector<8xf32> to vector<8x1xf32>
    %321 = vector.broadcast %320 : vector<8x1xf32> to vector<8x8xf32>
    %322 = arith.subf %318, %321 : vector<8x8xf32>
    %323 = math.exp %322 : vector<8x8xf32>
    %cst_117 = arith.constant dense<0.000000e+00> : vector<8xf32>
    %324 = vector.multi_reduction <add>, %323, %cst_117 [1] : vector<8x8xf32> to vector<8xf32>
    %325 = vector.shape_cast %324 : vector<8xf32> to vector<8x1xf32>
    %326 = tpu.reciprocal %325 {approx = true} : vector<8x1xf32> -> vector<8x1xf32>
    %327 = vector.broadcast %326 : vector<8x1xf32> to vector<8x8xf32>
    %328 = arith.mulf %323, %327 : vector<8x8xf32>
    "tpu.trace_start"() <{level = 10 : i32, message = "qk,kd->qd"}> : () -> ()
    %cst_118 = arith.constant dense<0.000000e+00> : vector<8x8xf32>
    %329 = tpu.matmul %328, %315, %cst_118 {dimension_numbers = #tpu.dot_dimension_numbers<[1], [0], [0], [1], [0, 0, 1, 1], [], []>} : vector<8x8xf32>, vector<8x8xf32>, vector<8x8xf32> -> vector<8x8xf32>
    "tpu.trace_stop"() : () -> ()
    %330 = tpu.concatenate %278, %295, %312, %329 in 1 : vector<8x8xf32>, vector<8x8xf32>, vector<8x8xf32>, vector<8x8xf32> -> vector<8x32xf32>
    %331 = vector.extract_strided_slice %261 {offsets = [8, 0], sizes = [8, 8], strides = [1, 1]} : vector<16x96xf32> to vector<8x8xf32>
    %332 = vector.extract_strided_slice %261 {offsets = [8, 32], sizes = [8, 8], strides = [1, 1]} : vector<16x96xf32> to vector<8x8xf32>
    %333 = vector.extract_strided_slice %261 {offsets = [8, 64], sizes = [8, 8], strides = [1, 1]} : vector<16x96xf32> to vector<8x8xf32>
    "tpu.trace_start"() <{level = 10 : i32, message = "qd,kd->qk"}> : () -> ()
    %cst_119 = arith.constant dense<0.000000e+00> : vector<8x8xf32>
    %334 = tpu.matmul %331, %332, %cst_119 {dimension_numbers = #tpu.dot_dimension_numbers<[1], [1], [0], [0], [0, 0, 1, 0], [], []>} : vector<8x8xf32>, vector<8x8xf32>, vector<8x8xf32> -> vector<8x8xf32>
    "tpu.trace_stop"() : () -> ()
    %335 = vector.broadcast %1 : f32 to vector<8x8xf32>
    %336 = arith.mulf %334, %335 : vector<8x8xf32>
    %cst_120 = arith.constant dense<0xFF800000> : vector<8xf32>
    %337 = vector.multi_reduction <maximumf>, %336, %cst_120 [1] : vector<8x8xf32> to vector<8xf32>
    %338 = vector.shape_cast %337 : vector<8xf32> to vector<8x1xf32>
    %339 = vector.broadcast %338 : vector<8x1xf32> to vector<8x8xf32>
    %340 = arith.subf %336, %339 : vector<8x8xf32>
    %341 = math.exp %340 : vector<8x8xf32>
    %cst_121 = arith.constant dense<0.000000e+00> : vector<8xf32>
    %342 = vector.multi_reduction <add>, %341, %cst_121 [1] : vector<8x8xf32> to vector<8xf32>
    %343 = vector.shape_cast %342 : vector<8xf32> to vector<8x1xf32>
    %344 = tpu.reciprocal %343 {approx = true} : vector<8x1xf32> -> vector<8x1xf32>
    %345 = vector.broadcast %344 : vector<8x1xf32> to vector<8x8xf32>
    %346 = arith.mulf %341, %345 : vector<8x8xf32>
    "tpu.trace_start"() <{level = 10 : i32, message = "qk,kd->qd"}> : () -> ()
    %cst_122 = arith.constant dense<0.000000e+00> : vector<8x8xf32>
    %347 = tpu.matmul %346, %333, %cst_122 {dimension_numbers = #tpu.dot_dimension_numbers<[1], [0], [0], [1], [0, 0, 1, 1], [], []>} : vector<8x8xf32>, vector<8x8xf32>, vector<8x8xf32> -> vector<8x8xf32>
    "tpu.trace_stop"() : () -> ()
    %348 = vector.extract_strided_slice %261 {offsets = [8, 8], sizes = [8, 8], strides = [1, 1]} : vector<16x96xf32> to vector<8x8xf32>
    %349 = vector.extract_strided_slice %261 {offsets = [8, 40], sizes = [8, 8], strides = [1, 1]} : vector<16x96xf32> to vector<8x8xf32>
    %350 = vector.extract_strided_slice %261 {offsets = [8, 72], sizes = [8, 8], strides = [1, 1]} : vector<16x96xf32> to vector<8x8xf32>
    "tpu.trace_start"() <{level = 10 : i32, message = "qd,kd->qk"}> : () -> ()
    %cst_123 = arith.constant dense<0.000000e+00> : vector<8x8xf32>
    %351 = tpu.matmul %348, %349, %cst_123 {dimension_numbers = #tpu.dot_dimension_numbers<[1], [1], [0], [0], [0, 0, 1, 0], [], []>} : vector<8x8xf32>, vector<8x8xf32>, vector<8x8xf32> -> vector<8x8xf32>
    "tpu.trace_stop"() : () -> ()
    %352 = vector.broadcast %1 : f32 to vector<8x8xf32>
    %353 = arith.mulf %351, %352 : vector<8x8xf32>
    %cst_124 = arith.constant dense<0xFF800000> : vector<8xf32>
    %354 = vector.multi_reduction <maximumf>, %353, %cst_124 [1] : vector<8x8xf32> to vector<8xf32>
    %355 = vector.shape_cast %354 : vector<8xf32> to vector<8x1xf32>
    %356 = vector.broadcast %355 : vector<8x1xf32> to vector<8x8xf32>
    %357 = arith.subf %353, %356 : vector<8x8xf32>
    %358 = math.exp %357 : vector<8x8xf32>
    %cst_125 = arith.constant dense<0.000000e+00> : vector<8xf32>
    %359 = vector.multi_reduction <add>, %358, %cst_125 [1] : vector<8x8xf32> to vector<8xf32>
    %360 = vector.shape_cast %359 : vector<8xf32> to vector<8x1xf32>
    %361 = tpu.reciprocal %360 {approx = true} : vector<8x1xf32> -> vector<8x1xf32>
    %362 = vector.broadcast %361 : vector<8x1xf32> to vector<8x8xf32>
    %363 = arith.mulf %358, %362 : vector<8x8xf32>
    "tpu.trace_start"() <{level = 10 : i32, message = "qk,kd->qd"}> : () -> ()
    %cst_126 = arith.constant dense<0.000000e+00> : vector<8x8xf32>
    %364 = tpu.matmul %363, %350, %cst_126 {dimension_numbers = #tpu.dot_dimension_numbers<[1], [0], [0], [1], [0, 0, 1, 1], [], []>} : vector<8x8xf32>, vector<8x8xf32>, vector<8x8xf32> -> vector<8x8xf32>
    "tpu.trace_stop"() : () -> ()
    %365 = vector.extract_strided_slice %261 {offsets = [8, 16], sizes = [8, 8], strides = [1, 1]} : vector<16x96xf32> to vector<8x8xf32>
    %366 = vector.extract_strided_slice %261 {offsets = [8, 48], sizes = [8, 8], strides = [1, 1]} : vector<16x96xf32> to vector<8x8xf32>
    %367 = vector.extract_strided_slice %261 {offsets = [8, 80], sizes = [8, 8], strides = [1, 1]} : vector<16x96xf32> to vector<8x8xf32>
    "tpu.trace_start"() <{level = 10 : i32, message = "qd,kd->qk"}> : () -> ()
    %cst_127 = arith.constant dense<0.000000e+00> : vector<8x8xf32>
    %368 = tpu.matmul %365, %366, %cst_127 {dimension_numbers = #tpu.dot_dimension_numbers<[1], [1], [0], [0], [0, 0, 1, 0], [], []>} : vector<8x8xf32>, vector<8x8xf32>, vector<8x8xf32> -> vector<8x8xf32>
    "tpu.trace_stop"() : () -> ()
    %369 = vector.broadcast %1 : f32 to vector<8x8xf32>
    %370 = arith.mulf %368, %369 : vector<8x8xf32>
    %cst_128 = arith.constant dense<0xFF800000> : vector<8xf32>
    %371 = vector.multi_reduction <maximumf>, %370, %cst_128 [1] : vector<8x8xf32> to vector<8xf32>
    %372 = vector.shape_cast %371 : vector<8xf32> to vector<8x1xf32>
    %373 = vector.broadcast %372 : vector<8x1xf32> to vector<8x8xf32>
    %374 = arith.subf %370, %373 : vector<8x8xf32>
    %375 = math.exp %374 : vector<8x8xf32>
    %cst_129 = arith.constant dense<0.000000e+00> : vector<8xf32>
    %376 = vector.multi_reduction <add>, %375, %cst_129 [1] : vector<8x8xf32> to vector<8xf32>
    %377 = vector.shape_cast %376 : vector<8xf32> to vector<8x1xf32>
    %378 = tpu.reciprocal %377 {approx = true} : vector<8x1xf32> -> vector<8x1xf32>
    %379 = vector.broadcast %378 : vector<8x1xf32> to vector<8x8xf32>
    %380 = arith.mulf %375, %379 : vector<8x8xf32>
    "tpu.trace_start"() <{level = 10 : i32, message = "qk,kd->qd"}> : () -> ()
    %cst_130 = arith.constant dense<0.000000e+00> : vector<8x8xf32>
    %381 = tpu.matmul %380, %367, %cst_130 {dimension_numbers = #tpu.dot_dimension_numbers<[1], [0], [0], [1], [0, 0, 1, 1], [], []>} : vector<8x8xf32>, vector<8x8xf32>, vector<8x8xf32> -> vector<8x8xf32>
    "tpu.trace_stop"() : () -> ()
    %382 = vector.extract_strided_slice %261 {offsets = [8, 24], sizes = [8, 8], strides = [1, 1]} : vector<16x96xf32> to vector<8x8xf32>
    %383 = vector.extract_strided_slice %261 {offsets = [8, 56], sizes = [8, 8], strides = [1, 1]} : vector<16x96xf32> to vector<8x8xf32>
    %384 = vector.extract_strided_slice %261 {offsets = [8, 88], sizes = [8, 8], strides = [1, 1]} : vector<16x96xf32> to vector<8x8xf32>
    "tpu.trace_start"() <{level = 10 : i32, message = "qd,kd->qk"}> : () -> ()
    %cst_131 = arith.constant dense<0.000000e+00> : vector<8x8xf32>
    %385 = tpu.matmul %382, %383, %cst_131 {dimension_numbers = #tpu.dot_dimension_numbers<[1], [1], [0], [0], [0, 0, 1, 0], [], []>} : vector<8x8xf32>, vector<8x8xf32>, vector<8x8xf32> -> vector<8x8xf32>
    "tpu.trace_stop"() : () -> ()
    %386 = vector.broadcast %1 : f32 to vector<8x8xf32>
    %387 = arith.mulf %385, %386 : vector<8x8xf32>
    %cst_132 = arith.constant dense<0xFF800000> : vector<8xf32>
    %388 = vector.multi_reduction <maximumf>, %387, %cst_132 [1] : vector<8x8xf32> to vector<8xf32>
    %389 = vector.shape_cast %388 : vector<8xf32> to vector<8x1xf32>
    %390 = vector.broadcast %389 : vector<8x1xf32> to vector<8x8xf32>
    %391 = arith.subf %387, %390 : vector<8x8xf32>
    %392 = math.exp %391 : vector<8x8xf32>
    %cst_133 = arith.constant dense<0.000000e+00> : vector<8xf32>
    %393 = vector.multi_reduction <add>, %392, %cst_133 [1] : vector<8x8xf32> to vector<8xf32>
    %394 = vector.shape_cast %393 : vector<8xf32> to vector<8x1xf32>
    %395 = tpu.reciprocal %394 {approx = true} : vector<8x1xf32> -> vector<8x1xf32>
    %396 = vector.broadcast %395 : vector<8x1xf32> to vector<8x8xf32>
    %397 = arith.mulf %392, %396 : vector<8x8xf32>
    "tpu.trace_start"() <{level = 10 : i32, message = "qk,kd->qd"}> : () -> ()
    %cst_134 = arith.constant dense<0.000000e+00> : vector<8x8xf32>
    %398 = tpu.matmul %397, %384, %cst_134 {dimension_numbers = #tpu.dot_dimension_numbers<[1], [0], [0], [1], [0, 0, 1, 1], [], []>} : vector<8x8xf32>, vector<8x8xf32>, vector<8x8xf32> -> vector<8x8xf32>
    "tpu.trace_stop"() : () -> ()
    %399 = tpu.concatenate %347, %364, %381, %398 in 1 : vector<8x8xf32>, vector<8x8xf32>, vector<8x8xf32>, vector<8x8xf32> -> vector<8x32xf32>
    %400 = tpu.concatenate %330, %399 in 0 : vector<8x32xf32>, vector<8x32xf32> -> vector<16x32xf32>
    %c1_135 = arith.constant 1 : index
    %c0_136 = arith.constant 0 : index
    %c0_137 = arith.constant 0 : index
    %401 = vector.load %arg5[%c1_135, %c0_136, %c0_137] : memref<2x32x32xf32, #tpu.memory_space<vmem>>, vector<1x32x32xf32>
    %402 = vector.shape_cast %401 : vector<1x32x32xf32> to vector<32x32xf32>
    %cst_138 = arith.constant dense<0.000000e+00> : vector<16x32xf32>
    %403 = tpu.matmul %400, %402, %cst_138 {dimension_numbers = #tpu.dot_dimension_numbers<[1], [0], [0], [1], [0, 0, 1, 1], [], []>} : vector<16x32xf32>, vector<32x32xf32>, vector<16x32xf32> -> vector<16x32xf32>
    %c1_139 = arith.constant 1 : index
    %c0_140 = arith.constant 0 : index
    %c0_141 = arith.constant 0 : index
    %404 = vector.load %arg6[%c1_139, %c0_140, %c0_141] : memref<2x1x32xf32, #tpu.memory_space<vmem>>, vector<1x1x32xf32>
    %405 = vector.shape_cast %404 : vector<1x1x32xf32> to vector<1x32xf32>
    %406 = vector.broadcast %405 : vector<1x32xf32> to vector<16x32xf32>
    %407 = arith.addf %403, %406 : vector<16x32xf32>
    %408 = arith.addf %407, %254 : vector<16x32xf32>
    %c1_142 = arith.constant 1 : index
    %c0_143 = arith.constant 0 : index
    %c0_144 = arith.constant 0 : index
    %409 = vector.load %arg7[%c1_142, %c0_143, %c0_144] : memref<2x1x32xf32, #tpu.memory_space<vmem>>, vector<1x1x32xf32>
    %410 = vector.shape_cast %409 : vector<1x1x32xf32> to vector<1x32xf32>
    %c1_145 = arith.constant 1 : index
    %c0_146 = arith.constant 0 : index
    %c0_147 = arith.constant 0 : index
    %411 = vector.load %arg8[%c1_145, %c0_146, %c0_147] : memref<2x1x32xf32, #tpu.memory_space<vmem>>, vector<1x1x32xf32>
    %412 = vector.shape_cast %411 : vector<1x1x32xf32> to vector<1x32xf32>
    %cst_148 = arith.constant dense<0.000000e+00> : vector<16xf32>
    %413 = vector.multi_reduction <add>, %408, %cst_148 [1] : vector<16x32xf32> to vector<16xf32>
    %414 = vector.shape_cast %413 : vector<16xf32> to vector<16x1xf32>
    %cst_149 = arith.constant 3.200000e+01 : f32
    %415 = vector.broadcast %cst_149 : f32 to vector<16x1xf32>
    %416 = arith.divf %414, %415 : vector<16x1xf32>
    %417 = vector.broadcast %416 : vector<16x1xf32> to vector<16x32xf32>
    %418 = arith.subf %408, %417 : vector<16x32xf32>
    %419 = arith.mulf %418, %418 : vector<16x32xf32>
    %cst_150 = arith.constant dense<0.000000e+00> : vector<16xf32>
    %420 = vector.multi_reduction <add>, %419, %cst_150 [1] : vector<16x32xf32> to vector<16xf32>
    %421 = vector.shape_cast %420 : vector<16xf32> to vector<16x1xf32>
    %cst_151 = arith.constant 3.200000e+01 : f32
    %422 = vector.broadcast %cst_151 : f32 to vector<16x1xf32>
    %423 = arith.divf %421, %422 : vector<16x1xf32>
    %cst_152 = arith.constant 9.99999996E-13 : f32
    %424 = vector.broadcast %cst_152 : f32 to vector<16x1xf32>
    %425 = arith.addf %423, %424 : vector<16x1xf32>
    %426 = math.rsqrt %425 : vector<16x1xf32>
    %427 = vector.broadcast %426 : vector<16x1xf32> to vector<16x32xf32>
    %428 = arith.mulf %418, %427 : vector<16x32xf32>
    %429 = vector.broadcast %410 : vector<1x32xf32> to vector<16x32xf32>
    %430 = arith.mulf %428, %429 : vector<16x32xf32>
    %431 = vector.broadcast %412 : vector<1x32xf32> to vector<16x32xf32>
    %432 = arith.addf %430, %431 : vector<16x32xf32>
    %c1_153 = arith.constant 1 : index
    %c0_154 = arith.constant 0 : index
    %c0_155 = arith.constant 0 : index
    %433 = vector.load %arg9[%c1_153, %c0_154, %c0_155] : memref<2x32x64xf32, #tpu.memory_space<vmem>>, vector<1x32x64xf32>
    %434 = vector.shape_cast %433 : vector<1x32x64xf32> to vector<32x64xf32>
    %cst_156 = arith.constant dense<0.000000e+00> : vector<16x64xf32>
    %435 = tpu.matmul %432, %434, %cst_156 {dimension_numbers = #tpu.dot_dimension_numbers<[1], [0], [0], [1], [0, 0, 1, 1], [], []>} : vector<16x32xf32>, vector<32x64xf32>, vector<16x64xf32> -> vector<16x64xf32>
    %c1_157 = arith.constant 1 : index
    %c0_158 = arith.constant 0 : index
    %c0_159 = arith.constant 0 : index
    %436 = vector.load %arg10[%c1_157, %c0_158, %c0_159] : memref<2x1x64xf32, #tpu.memory_space<vmem>>, vector<1x1x64xf32>
    %437 = vector.shape_cast %436 : vector<1x1x64xf32> to vector<1x64xf32>
    %438 = vector.broadcast %437 : vector<1x64xf32> to vector<16x64xf32>
    %439 = arith.addf %435, %438 : vector<16x64xf32>
    %cst_160 = arith.constant 5.000000e-01 : f32
    %440 = vector.broadcast %cst_160 : f32 to vector<16x64xf32>
    %441 = arith.mulf %440, %439 : vector<16x64xf32>
    %cst_161 = arith.constant 4.471500e-02 : f32
    %442 = vector.broadcast %cst_161 : f32 to vector<16x64xf32>
    %443 = arith.mulf %442, %439 : vector<16x64xf32>
    %444 = arith.mulf %443, %439 : vector<16x64xf32>
    %445 = arith.mulf %444, %439 : vector<16x64xf32>
    %446 = arith.addf %439, %445 : vector<16x64xf32>
    %cst_162 = arith.constant 0.797884583 : f32
    %447 = vector.broadcast %cst_162 : f32 to vector<16x64xf32>
    %448 = arith.mulf %447, %446 : vector<16x64xf32>
    %449 = math.tanh %448 : vector<16x64xf32>
    %cst_163 = arith.constant 1.000000e+00 : f32
    %450 = vector.broadcast %cst_163 : f32 to vector<16x64xf32>
    %451 = arith.addf %450, %449 : vector<16x64xf32>
    %452 = arith.mulf %441, %451 : vector<16x64xf32>
    %c1_164 = arith.constant 1 : index
    %c0_165 = arith.constant 0 : index
    %c0_166 = arith.constant 0 : index
    %453 = vector.load %arg11[%c1_164, %c0_165, %c0_166] : memref<2x64x32xf32, #tpu.memory_space<vmem>>, vector<1x64x32xf32>
    %454 = vector.shape_cast %453 : vector<1x64x32xf32> to vector<64x32xf32>
    %cst_167 = arith.constant dense<0.000000e+00> : vector<16x32xf32>
    %455 = tpu.matmul %452, %454, %cst_167 {dimension_numbers = #tpu.dot_dimension_numbers<[1], [0], [0], [1], [0, 0, 1, 1], [], []>} : vector<16x64xf32>, vector<64x32xf32>, vector<16x32xf32> -> vector<16x32xf32>
    %c1_168 = arith.constant 1 : index
    %c0_169 = arith.constant 0 : index
    %c0_170 = arith.constant 0 : index
    %456 = vector.load %arg12[%c1_168, %c0_169, %c0_170] : memref<2x1x32xf32, #tpu.memory_space<vmem>>, vector<1x1x32xf32>
    %457 = vector.shape_cast %456 : vector<1x1x32xf32> to vector<1x32xf32>
    %458 = vector.broadcast %457 : vector<1x32xf32> to vector<16x32xf32>
    %459 = arith.addf %455, %458 : vector<16x32xf32>
    %460 = arith.addf %459, %432 : vector<16x32xf32>
    %c1_171 = arith.constant 1 : index
    %c0_172 = arith.constant 0 : index
    %c0_173 = arith.constant 0 : index
    %461 = vector.load %arg13[%c1_171, %c0_172, %c0_173] : memref<2x1x32xf32, #tpu.memory_space<vmem>>, vector<1x1x32xf32>
    %462 = vector.shape_cast %461 : vector<1x1x32xf32> to vector<1x32xf32>
    %c1_174 = arith.constant 1 : index
    %c0_175 = arith.constant 0 : index
    %c0_176 = arith.constant 0 : index
    %463 = vector.load %arg14[%c1_174, %c0_175, %c0_176] : memref<2x1x32xf32, #tpu.memory_space<vmem>>, vector<1x1x32xf32>
    %464 = vector.shape_cast %463 : vector<1x1x32xf32> to vector<1x32xf32>
    %cst_177 = arith.constant dense<0.000000e+00> : vector<16xf32>
    %465 = vector.multi_reduction <add>, %460, %cst_177 [1] : vector<16x32xf32> to vector<16xf32>
    %466 = vector.shape_cast %465 : vector<16xf32> to vector<16x1xf32>
    %cst_178 = arith.constant 3.200000e+01 : f32
    %467 = vector.broadcast %cst_178 : f32 to vector<16x1xf32>
    %468 = arith.divf %466, %467 : vector<16x1xf32>
    %469 = vector.broadcast %468 : vector<16x1xf32> to vector<16x32xf32>
    %470 = arith.subf %460, %469 : vector<16x32xf32>
    %471 = arith.mulf %470, %470 : vector<16x32xf32>
    %cst_179 = arith.constant dense<0.000000e+00> : vector<16xf32>
    %472 = vector.multi_reduction <add>, %471, %cst_179 [1] : vector<16x32xf32> to vector<16xf32>
    %473 = vector.shape_cast %472 : vector<16xf32> to vector<16x1xf32>
    %cst_180 = arith.constant 3.200000e+01 : f32
    %474 = vector.broadcast %cst_180 : f32 to vector<16x1xf32>
    %475 = arith.divf %473, %474 : vector<16x1xf32>
    %cst_181 = arith.constant 9.99999996E-13 : f32
    %476 = vector.broadcast %cst_181 : f32 to vector<16x1xf32>
    %477 = arith.addf %475, %476 : vector<16x1xf32>
    %478 = math.rsqrt %477 : vector<16x1xf32>
    %479 = vector.broadcast %478 : vector<16x1xf32> to vector<16x32xf32>
    %480 = arith.mulf %470, %479 : vector<16x32xf32>
    %481 = vector.broadcast %462 : vector<1x32xf32> to vector<16x32xf32>
    %482 = arith.mulf %480, %481 : vector<16x32xf32>
    %483 = vector.broadcast %464 : vector<1x32xf32> to vector<16x32xf32>
    %484 = arith.addf %482, %483 : vector<16x32xf32>
    %c0_182 = arith.constant 0 : index
    %c0_183 = arith.constant 0 : index
    %485 = vector.load %arg15[%c0_182, %c0_183] : memref<32x128xf32, #tpu.memory_space<vmem>>, vector<32x128xf32>
    %cst_184 = arith.constant dense<0.000000e+00> : vector<16x128xf32>
    %486 = tpu.matmul %484, %485, %cst_184 {dimension_numbers = #tpu.dot_dimension_numbers<[1], [0], [0], [1], [0, 0, 1, 1], [], []>} : vector<16x32xf32>, vector<32x128xf32>, vector<16x128xf32> -> vector<16x128xf32>
    %c0_185 = arith.constant 0 : index
    %c0_186 = arith.constant 0 : index
    %487 = vector.load %arg16[%c0_185, %c0_186] : memref<1x128xf32, #tpu.memory_space<vmem>>, vector<1x128xf32>
    %488 = vector.broadcast %487 : vector<1x128xf32> to vector<16x128xf32>
    %489 = arith.addf %486, %488 : vector<16x128xf32>
    %c0_187 = arith.constant 0 : index
    %c0_188 = arith.constant 0 : index
    %490 = vector.load %arg17[%c0_187, %c0_188] : memref<16x128xf32, #tpu.memory_space<vmem>>, vector<16x128xf32>
    tpu.vector_store %arg17[%c0_187, %c0_188], %489 {strides = array<i32>} : memref<16x128xf32, #tpu.memory_space<vmem>>, vector<16x128xf32>,
    return
  }
}

</mosaic_0001>

<llo_original>
// kernel: bert_tagger_forward.1
$region0: #{bert_tagger_forward.1}
  #allocation0 [shape = 'u32[]', space=smem, size = 0x4, offset = 0x4, fixed_abs, tag = 'smem constant byte address 0x4 - core index']
  #allocation1 [shape = 'u32[144,128]{1,0:T(1,128)}', space=vmem, size = 0x12000, scoped, tag = 'internal scratch']
  %s0 = inlined_call_operand.vmem [shape: f32[16,32], index: 0, kind: input, shape index: {}]
  %s1 = inlined_call_operand.vmem [shape: f32[1,32], index: 1, kind: input, shape index: {}]
  %s2 = inlined_call_operand.vmem [shape: f32[1,32], index: 2, kind: input, shape index: {}]
  %s3 = inlined_call_operand.vmem [shape: f32[2,32,96], index: 3, kind: input, shape index: {}]
  %s4 = inlined_call_operand.vmem [shape: f32[2,1,96], index: 4, kind: input, shape index: {}]
  %s5 = inlined_call_operand.vmem [shape: f32[2,32,32], index: 5, kind: input, shape index: {}]
  %s6 = inlined_call_operand.vmem [shape: f32[2,1,32], index: 6, kind: input, shape index: {}]
  %s7 = inlined_call_operand.vmem [shape: f32[2,1,32], index: 7, kind: input, shape index: {}]
  %s8 = inlined_call_operand.vmem [shape: f32[2,1,32], index: 8, kind: input, shape index: {}]
  %s9 = inlined_call_operand.vmem [shape: f32[2,32,64], index: 9, kind: input, shape index: {}]
  %s10 = inlined_call_operand.vmem [shape: f32[2,1,64], index: 10, kind: input, shape index: {}]
  %s11 = inlined_call_operand.vmem [shape: f32[2,64,32], index: 11, kind: input, shape index: {}]
  %s12 = inlined_call_operand.vmem [shape: f32[2,1,32], index: 12, kind: input, shape index: {}]
  %s13 = inlined_call_operand.vmem [shape: f32[2,1,32], index: 13, kind: input, shape index: {}]
  %s14 = inlined_call_operand.vmem [shape: f32[2,1,32], index: 14, kind: input, shape index: {}]
  %s15 = inlined_call_operand.vmem [shape: f32[32,128], index: 15, kind: input, shape index: {}]
  %s16 = inlined_call_operand.vmem [shape: f32[1,128], index: 16, kind: input, shape index: {}]
  %s17 = inlined_call_operand.vmem [shape: f32[16,128], index: 17, kind: output, shape index: {}]
  %s18 = sld [smem:[#allocation0]]
  $region78: #{bert_tagger_forward.1} parent=0
    _
  %s20 = ssub.s32 1, %s18
  %s21 = scalar_select 0, %s20, %s18
  // Predicated region
  $region2: #{bert_tagger_forward.1} parent=0 // pred_check
    _
  $region3: #{bert_tagger_forward.1} parent=0 // pred_check_branch
    %23 = sbr.rel (0) target = $region5
  $region4: #{bert_tagger_forward.1} parent=0 // pred_region
    _
  $region5: #{bert_tagger_forward.1} parent=0 // pred_fallthru
    _
  // Predicated region
  $region6: #{bert_tagger_forward.1} parent=0 // pred_check
    _
  $region7: #{bert_tagger_forward.1} parent=0 // pred_check_branch
    %25 = sbr.rel (0) target = $region9
  $region8: #{bert_tagger_forward.1} parent=0 // pred_region
    _
  $region9: #{bert_tagger_forward.1} parent=0 // pred_fallthru
    _
  // Predicated region
  $region10: #{bert_tagger_forward.1} parent=0 // pred_check
    _
  $region11: #{bert_tagger_forward.1} parent=0 // pred_check_branch
    %27 = sbr.rel (0) target = $region13
  $region12: #{bert_tagger_forward.1} parent=0 // pred_region
    _
  $region13: #{bert_tagger_forward.1} parent=0 // pred_fallthru
    _
  // Predicated region
  $region14: #{bert_tagger_forward.1} parent=0 // pred_check
    _
  $region15: #{bert_tagger_forward.1} parent=0 // pred_check_branch
    %29 = sbr.rel (0) target = $region17
  $region16: #{bert_tagger_forward.1} parent=0 // pred_region
    _
  $region17: #{bert_tagger_forward.1} parent=0 // pred_fallthru
    _
  // Predicated region
  $region18: #{bert_tagger_forward.1} parent=0 // pred_check
    _
  $region19: #{bert_tagger_forward.1} parent=0 // pred_check_branch
    %31 = sbr.rel (0) target = $region21
  $region20: #{bert_tagger_forward.1} parent=0 // pred_region
    _
  $region21: #{bert_tagger_forward.1} parent=0 // pred_fallthru
    _
  // Predicated region
  $region22: #{bert_tagger_forward.1} parent=0 // pred_check
    _
  $region23: #{bert_tagger_forward.1} parent=0 // pred_check_branch
    %33 = sbr.rel (0) target = $region25
  $region24: #{bert_tagger_forward.1} parent=0 // pred_region
    _
  $region25: #{bert_tagger_forward.1} parent=0 // pred_fallthru
    _
  // Predicated region
  $region26: #{bert_tagger_forward.1} parent=0 // pred_check
    _
  $region27: #{bert_tagger_forward.1} parent=0 // pred_check_branch
    %35 = sbr.rel (0) target = $region29
  $region28: #{bert_tagger_forward.1} parent=0 // pred_region
    _
  $region29: #{bert_tagger_forward.1} parent=0 // pred_fallthru
    _
  // Predicated region
  $region30: #{bert_tagger_forward.1} parent=0 // pred_check
    _
  $region31: #{bert_tagger_forward.1} parent=0 // pred_check_branch
    %37 = sbr.rel (0) target = $region33
  $region32: #{bert_tagger_forward.1} parent=0 // pred_region
    _
  $region33: #{bert_tagger_forward.1} parent=0 // pred_fallthru
    _
  // Predicated region
  $region34: #{bert_tagger_forward.1} parent=0 // pred_check
    _
  $region35: #{bert_tagger_forward.1} parent=0 // pred_check_branch
    %39 = sbr.rel (0) target = $region37
  $region36: #{bert_tagger_forward.1} parent=0 // pred_region
    _
  $region37: #{bert_tagger_forward.1} parent=0 // pred_fallthru
    _
  // Predicated region
  $region38: #{bert_tagger_forward.1} parent=0 // pred_check
    _
  $region39: #{bert_tagger_forward.1} parent=0 // pred_check_branch
    %41 = sbr.rel (0) target = $region41
  $region40: #{bert_tagger_forward.1} parent=0 // pred_region
    _
  $region41: #{bert_tagger_forward.1} parent=0 // pred_fallthru
    _
  // Predicated region
  $region42: #{bert_tagger_forward.1} parent=0 // pred_check
    _
  $region43: #{bert_tagger_forward.1} parent=0 // pred_check_branch
    %43 = sbr.rel (0) target = $region45
  $region44: #{bert_tagger_forward.1} parent=0 // pred_region
    _
  $region45: #{bert_tagger_forward.1} parent=0 // pred_fallthru
    _
  // Predicated region
  $region46: #{bert_tagger_forward.1} parent=0 // pred_check
    _
  $region47: #{bert_tagger_forward.1} parent=0 // pred_check_branch
    %45 = sbr.rel (0) target = $region49
  $region48: #{bert_tagger_forward.1} parent=0 // pred_region
    _
  $region49: #{bert_tagger_forward.1} parent=0 // pred_fallthru
    _
  // Predicated region
  $region50: #{bert_tagger_forward.1} parent=0 // pred_check
    _
  $region51: #{bert_tagger_forward.1} parent=0 // pred_check_branch
    %47 = sbr.rel (0) target = $region53
  $region52: #{bert_tagger_forward.1} parent=0 // pred_region
    _
  $region53: #{bert_tagger_forward.1} parent=0 // pred_fallthru
    _
  // Predicated region
  $region54: #{bert_tagger_forward.1} parent=0 // pred_check
    _
  $region55: #{bert_tagger_forward.1} parent=0 // pred_check_branch
    %49 = sbr.rel (0) target = $region57
  $region56: #{bert_tagger_forward.1} parent=0 // pred_region
    _
  $region57: #{bert_tagger_forward.1} parent=0 // pred_fallthru
    _
  // Predicated region
  $region58: #{bert_tagger_forward.1} parent=0 // pred_check
    _
  $region59: #{bert_tagger_forward.1} parent=0 // pred_check_branch
    %51 = sbr.rel (0) target = $region61
  $region60: #{bert_tagger_forward.1} parent=0 // pred_region
    _
  $region61: #{bert_tagger_forward.1} parent=0 // pred_fallthru
    _
  // Predicated region
  $region62: #{bert_tagger_forward.1} parent=0 // pred_check
    _
  $region63: #{bert_tagger_forward.1} parent=0 // pred_check_branch
    %53 = sbr.rel (0) target = $region65
  $region64: #{bert_tagger_forward.1} parent=0 // pred_region
    _
  $region65: #{bert_tagger_forward.1} parent=0 // pred_fallthru
    _
  // Predicated region
  $region66: #{bert_tagger_forward.1} parent=0 // pred_check
    _
  $region67: #{bert_tagger_forward.1} parent=0 // pred_check_branch
    %55 = sbr.rel (0) target = $region69
  $region68: #{bert_tagger_forward.1} parent=0 // pred_region
    _
  $region69: #{bert_tagger_forward.1} parent=0 // pred_fallthru
    _
  %v56 = vld [vmem:[%s0] sm:$0xff]
  %v57 = vld [vmem:[%s0 + $0x8] sm:$0xff]
  %v58 = vld [vmem:[%s1] sm:$0x1]
  %v59 = vld [vmem:[%s2] sm:$0x1]
  %vm60 = vcmask 261120
  %v61 = vsel %vm60, %v56, 0.0
  %62 = vadd.xlane.f32.xlu0 %v61
  %v63 = vpop.xlane.xlu0 %62
  %v64 = vsel %vm60, %v57, 0.0
  %65 = vadd.xlane.f32.xlu0 %v64
  %v66 = vpop.xlane.xlu0 %65
  %v67 = vrcp.pop 32.0
  %v68 = vmul.f32 %v63, %v67
  %v69 = vmul.f32 %v66, %v67
  %v70 = vsub.f32 %v56, %v68
  %v71 = vsub.f32 %v57, %v69
  %v72 = vmul.f32 %v70, %v70
  %v73 = vmul.f32 %v71, %v71
  %v74 = vsel %vm60, %v72, 0.0
  %75 = vadd.xlane.f32.xlu0 %v74
  %v76 = vpop.xlane.xlu0 %75
  %v77 = vsel %vm60, %v73, 0.0
  %78 = vadd.xlane.f32.xlu0 %v77
  %v79 = vpop.xlane.xlu0 %78
  %v80 = vmul.f32 %v76, %v67
  %v81 = vmul.f32 %v79, %v67
  %v82 = vadd.f32 %v80, 1e-12
  %v83 = vadd.f32 %v81, 1e-12
  %v84 = vrsqrt.pop %v82
  %v85 = vrsqrt.pop %v83
  %v86 = vmul.f32 %v70, %v84
  %v87 = vmul.f32 %v71, %v85
  %v89 = vlaneseq
  %v90 = vshrl.u32 %v89, 7
  %v91 = vsub.s32 0, %v90
  %v92 = vrot.slane %v58, %v91
  %v94 = vmul.f32 %v86, %v92
  %v95 = vmul.f32 %v87, %v92
  %v97 = vlaneseq
  %v98 = vshrl.u32 %v97, 7
  %v99 = vsub.s32 0, %v98
  %v100 = vrot.slane %v59, %v99
  %v102 = vadd.f32 %v94, %v100
  %v103 = vadd.f32 %v95, %v100
  %v104 = vld [vmem:[%s3] sm:$0xff]
  %v105 = vld [vmem:[%s3 + $0x8] sm:$0xff]
  %v106 = vld [vmem:[%s3 + $0x10] sm:$0xff]
  %v107 = vld [vmem:[%s3 + $0x18] sm:$0xff]
  %v108 = vld [vmem:[%s4] sm:$0x1]
  %v110 = vlaneseq
  %v111 = vshrl.u32 %v110, 7
  %v112 = vsub.s32 0, %v111
  %v113 = vrot.slane %v108, %v112
  %v116 = vsel %vm60, %v102, 0
  %v119 = vsel %vm60, %v103, 0
  %121 = vmatprep.subr.mxu0 0.0
  %122 = vmatpush1.msra.mxu0 %v104
  %123 = vmatprep.subr.mxu0 0.0
  %124 = vmatpush1.msra.mxu0 %v105
  %125 = vmatprep.subr.mxu0 0.0
  %126 = vmatpush1.msra.mxu0 %v106
  %127 = vmatprep.subr.mxu0 0.0
  %128 = vmatpush1.msra.mxu0 %v107
  %129 = vmatprep.subr.mxu0 0.0
  %130 = vmatpush1.msra.mxu0 0.0
  %131 = vmatprep.subr.mxu0 0.0
  %132 = vmatpush1.msra.mxu0 0.0
  %133 = vmatprep.subr.mxu0 0.0
  %134 = vmatpush1.msra.mxu0 0.0
  %135 = vmatprep.subr.mxu0 0.0
  %136 = vmatpush1.msra.mxu0 0.0
  %137 = vmatprep.subr.mxu0 0.0
  %138 = vmatpush1.msra.mxu0 0.0
  %139 = vmatprep.subr.mxu0 0.0
  %140 = vmatpush1.msra.mxu0 0.0
  %141 = vmatprep.subr.mxu0 0.0
  %142 = vmatpush1.msra.mxu0 0.0
  %143 = vmatprep.subr.mxu0 0.0
  %144 = vmatpush1.msra.mxu0 0.0
  %145 = vmatprep.subr.mxu0 0.0
  %146 = vmatpush1.msra.mxu0 0.0
  %147 = vmatprep.subr.mxu0 0.0
  %148 = vmatpush1.msra.mxu0 0.0
  %149 = vmatprep.subr.mxu0 0.0
  %150 = vmatpush1.msra.mxu0 0.0
  %151 = vmatprep.subr.mxu0 0.0
  %152 = vmatpush1.msra.mxu0 0.0
  %153 = vmatprep.subr.mxu0 0.0
  %154 = vmatpush1.msra.mxu0 0.0
  %155 = vmatprep.subr.mxu0 0.0
  %156 = vmatpush1.msra.mxu0 0.0
  %157 = vmatprep.subr.mxu0 0.0
  %158 = vmatpush1.msra.mxu0 0.0
  %159 = vmatprep.subr.mxu0 0.0
  %160 = vmatpush1.msra.mxu0 0.0
  %161 = vmatprep.subr.mxu0 0.0
  %162 = vmatpush1.msra.mxu0 0.0
  %163 = vmatprep.subr.mxu0 0.0
  %164 = vmatpush1.msra.mxu0 0.0
  %165 = vmatprep.subr.mxu0 0.0
  %166 = vmatpush1.msra.mxu0 0.0
  %167 = vmatprep.subr.mxu0 0.0
  %168 = vmatpush1.msra.mxu0 0.0
  %169 = vmatprep.subr.mxu0 0.0
  %170 = vmatpush1.msra.mxu0 0.0
  %171 = vmatprep.subr.mxu0 0.0
  %172 = vmatpush1.msra.mxu0 0.0
  %173 = vmatprep.subr.mxu0 0.0
  %174 = vmatpush1.msra.mxu0 0.0
  %175 = vmatprep.subr.mxu0 0.0
  %176 = vmatpush1.msra.mxu0 0.0
  %177 = vmatprep.subr.mxu0 0.0
  %178 = vmatpush1.msra.mxu0 0.0
  %179 = vmatprep.subr.mxu0 0.0
  %180 = vmatpush1.msra.mxu0 0.0
  %181 = vmatprep.subr.mxu0 0.0
  %182 = vmatpush1.msra.mxu0 0.0
  %183 = vmatprep.subr.mxu0 0.0
  %184 = vmatpush1.msra.mxu0 0.0
  %185 = vmatprep.mubr.f32.mxu0 0.0
  %186 = vmatmul.mubr.f32.gmra.mrb[0].mxu0 %v116
  %v187 = vpop.f32.mrb[0].mxu0
  %v188 = vadd.f32 %v113, %v187
  %v189 = vpop.f32.mrb[0].mxu0
  %190 = vmatprep.mubr.f32.mxu0 0.0
  %191 = vmatmul.mubr.f32.gmra.mrb[0].mxu0 %v119
  %v192 = vpop.f32.mrb[0].mxu0
  %v193 = vadd.f32 %v113, %v192
  %v194 = vpop.f32.mrb[0].mxu0
  %195 = vdwg.mxu0
  %197 = vrot.lane.b32.xlu0 %v188, 96
  %v198 = vpop.permute.xlu0 %197
  %vm199 = vcmask 64512
  %v200 = vsel %vm199, %v188, 0
  %v202 = vsel %vm199, %v198, 0
  %204 = vmatprep.subr.mxu0 0.0
  %205 = vmatpush1.xpose.msra.mxu0 %v202
  %206 = vmatprep.subr.mxu0 0.0
  %207 = vmatpush1.xpose.msra.mxu0 0.0
  %208 = vmatprep.subr.mxu0 0.0
  %209 = vmatpush1.xpose.msra.mxu0 0.0
  %210 = vmatprep.subr.mxu0 0.0
  %211 = vmatpush1.xpose.msra.mxu0 0.0
  %212 = vmatprep.subr.mxu0 0.0
  %213 = vmatpush1.xpose.msra.mxu0 0.0
  %214 = vmatprep.subr.mxu0 0.0
  %215 = vmatpush1.xpose.msra.mxu0 0.0
  %216 = vmatprep.subr.mxu0 0.0
  %217 = vmatpush1.xpose.msra.mxu0 0.0
  %218 = vmatprep.subr.mxu0 0.0
  %219 = vmatpush1.xpose.msra.mxu0 0.0
  %220 = vmatprep.subr.mxu0 0.0
  %221 = vmatpush1.xpose.msra.mxu0 0.0
  %222 = vmatprep.subr.mxu0 0.0
  %223 = vmatpush1.xpose.msra.mxu0 0.0
  %224 = vmatprep.subr.mxu0 0.0
  %225 = vmatpush1.xpose.msra.mxu0 0.0
  %226 = vmatprep.subr.mxu0 0.0
  %227 = vmatpush1.xpose.msra.mxu0 0.0
  %228 = vmatprep.subr.mxu0 0.0
  %229 = vmatpush1.xpose.msra.mxu0 0.0
  %230 = vmatprep.subr.mxu0 0.0
  %231 = vmatpush1.xpose.msra.mxu0 0.0
  %232 = vmatprep.subr.mxu0 0.0
  %233 = vmatpush1.xpose.msra.mxu0 0.0
  %234 = vmatprep.subr.mxu0 0.0
  %235 = vmatpush1.xpose.msra.mxu0 0.0
  %236 = vmatprep.subr.mxu0 0.0
  %237 = vmatpush1.xpose.msra.mxu0 0.0
  %238 = vmatprep.subr.mxu0 0.0
  %239 = vmatpush1.xpose.msra.mxu0 0.0
  %240 = vmatprep.subr.mxu0 0.0
  %241 = vmatpush1.xpose.msra.mxu0 0.0
  %242 = vmatprep.subr.mxu0 0.0
  %243 = vmatpush1.xpose.msra.mxu0 0.0
  %244 = vmatprep.subr.mxu0 0.0
  %245 = vmatpush1.xpose.msra.mxu0 0.0
  %246 = vmatprep.subr.mxu0 0.0
  %247 = vmatpush1.xpose.msra.mxu0 0.0
  %248 = vmatprep.subr.mxu0 0.0
  %249 = vmatpush1.xpose.msra.mxu0 0.0
  %250 = vmatprep.subr.mxu0 0.0
  %251 = vmatpush1.xpose.msra.mxu0 0.0
  %252 = vmatprep.subr.mxu0 0.0
  %253 = vmatpush1.xpose.msra.mxu0 0.0
  %254 = vmatprep.subr.mxu0 0.0
  %255 = vmatpush1.xpose.msra.mxu0 0.0
  %256 = vmatprep.subr.mxu0 0.0
  %257 = vmatpush1.xpose.msra.mxu0 0.0
  %258 = vmatprep.subr.mxu0 0.0
  %259 = vmatpush1.xpose.msra.mxu0 0.0
  %260 = vmatprep.subr.mxu0 0.0
  %261 = vmatpush1.xpose.msra.mxu0 0.0
  %262 = vmatprep.subr.mxu0 0.0
  %263 = vmatpush1.xpose.msra.mxu0 0.0
  %264 = vmatprep.subr.mxu0 0.0
  %265 = vmatpush1.xpose.msra.mxu0 0.0
  %266 = vmatprep.subr.mxu0 0.0
  %267 = vmatpush1.xpose.msra.mxu0 0.0
  %268 = vmatprep.mubr.f32.mxu0 0.0
  %269 = vmatmul.mubr.f32.gmra.mrb[0].mxu0 %v200
  %v270 = vpop.f32.mrb[0].mxu0
  %v271 = vadd.f32 0.0, %v270
  %v272 = vpop.f32.mrb[0].mxu0
  %273 = vdwg.mxu0
  %v274 = vmul.f32 %v271, 0.35355338
  %v275 = vsel %vm199, %v274, -inf
  %276 = vmax.xlane.f32.xlu0 %v275
  %v277 = vpop.xlane.xlu0 %276
  %v278 = vsub.f32 %v274, %v277
  %v279 = vmul.f32 %v278, 1.442695
  %v280 = vpow.pop %v279
  %v281 = vsel %vm199, %v280, 0.0
  %282 = vadd.xlane.f32.xlu0 %v281
  %v283 = vpop.xlane.xlu0 %282
  %v284 = vrcp.pop %v283
  %v285 = vmul.f32 %v280, %v284
  %286 = vrot.lane.b32.xlu0 %v188, 64
  %v287 = vpop.permute.xlu0 %286
  %v290 = vsel %vm199, %v285, 0
  %292 = vmatprep.subr.mxu0 0.0
  %293 = vmatpush1.msra.mxu0 %v287
  %294 = vmatprep.subr.mxu0 0.0
  %295 = vmatpush1.msra.mxu0 0.0
  %296 = vmatprep.subr.mxu0 0.0
  %297 = vmatpush1.msra.mxu0 0.0
  %298 = vmatprep.subr.mxu0 0.0
  %299 = vmatpush1.msra.mxu0 0.0
  %300 = vmatprep.subr.mxu0 0.0
  %301 = vmatpush1.msra.mxu0 0.0
  %302 = vmatprep.subr.mxu0 0.0
  %303 = vmatpush1.msra.mxu0 0.0
  %304 = vmatprep.subr.mxu0 0.0
  %305 = vmatpush1.msra.mxu0 0.0
  %306 = vmatprep.subr.mxu0 0.0
  %307 = vmatpush1.msra.mxu0 0.0
  %308 = vmatprep.subr.mxu0 0.0
  %309 = vmatpush1.msra.mxu0 0.0
  %310 = vmatprep.subr.mxu0 0.0
  %311 = vmatpush1.msra.mxu0 0.0
  %312 = vmatprep.subr.mxu0 0.0
  %313 = vmatpush1.msra.mxu0 0.0
  %314 = vmatprep.subr.mxu0 0.0
  %315 = vmatpush1.msra.mxu0 0.0
  %316 = vmatprep.subr.mxu0 0.0
  %317 = vmatpush1.msra.mxu0 0.0
  %318 = vmatprep.subr.mxu0 0.0
  %319 = vmatpush1.msra.mxu0 0.0
  %320 = vmatprep.subr.mxu0 0.0
  %321 = vmatpush1.msra.mxu0 0.0
  %322 = vmatprep.subr.mxu0 0.0
  %323 = vmatpush1.msra.mxu0 0.0
  %324 = vmatprep.subr.mxu0 0.0
  %325 = vmatpush1.msra.mxu0 0.0
  %326 = vmatprep.subr.mxu0 0.0
  %327 = vmatpush1.msra.mxu0 0.0
  %328 = vmatprep.subr.mxu0 0.0
  %329 = vmatpush1.msra.mxu0 0.0
  %330 = vmatprep.subr.mxu0 0.0
  %331 = vmatpush1.msra.mxu0 0.0
  %332 = vmatprep.subr.mxu0 0.0
  %333 = vmatpush1.msra.mxu0 0.0
  %334 = vmatprep.subr.mxu0 0.0
  %335 = vmatpush1.msra.mxu0 0.0
  %336 = vmatprep.subr.mxu0 0.0
  %337 = vmatpush1.msra.mxu0 0.0
  %338 = vmatprep.subr.mxu0 0.0
  %339 = vmatpush1.msra.mxu0 0.0
  %340 = vmatprep.subr.mxu0 0.0
  %341 = vmatpush1.msra.mxu0 0.0
  %342 = vmatprep.subr.mxu0 0.0
  %343 = vmatpush1.msra.mxu0 0.0
  %344 = vmatprep.subr.mxu0 0.0
  %345 = vmatpush1.msra.mxu0 0.0
  %346 = vmatprep.subr.mxu0 0.0
  %347 = vmatpush1.msra.mxu0 0.0
  %348 = vmatprep.subr.mxu0 0.0
  %349 = vmatpush1.msra.mxu0 0.0
  %350 = vmatprep.subr.mxu0 0.0
  %351 = vmatpush1.msra.mxu0 0.0
  %352 = vmatprep.subr.mxu0 0.0
  %353 = vmatpush1.msra.mxu0 0.0
  %354 = vmatprep.subr.mxu0 0.0
  %355 = vmatpush1.msra.mxu0 0.0
  %356 = vmatprep.mubr.f32.mxu0 0.0
  %357 = vmatmul.mubr.f32.gmra.mrb[0].mxu0 %v290
  %v358 = vpop.f32.mrb[0].mxu0
  %v359 = vadd.f32 0.0, %v358
  %v360 = vpop.f32.mrb[0].mxu0
  %361 = vdwg.mxu0
  %362 = vrot.lane.b32.xlu0 %v188, 120
  %v363 = vpop.permute.xlu0 %362
  %364 = vrot.lane.b32.xlu0 %v188, 88
  %v365 = vpop.permute.xlu0 %364
  %v366 = vsel %vm199, %v363, 0
  %v368 = vsel %vm199, %v365, 0
  %370 = vmatprep.subr.mxu0 0.0
  %371 = vmatpush1.xpose.msra.mxu0 %v368
  %372 = vmatprep.subr.mxu0 0.0
  %373 = vmatpush1.xpose.msra.mxu0 0.0
  %374 = vmatprep.subr.mxu0 0.0
  %375 = vmatpush1.xpose.msra.mxu0 0.0
  %376 = vmatprep.subr.mxu0 0.0
  %377 = vmatpush1.xpose.msra.mxu0 0.0
  %378 = vmatprep.subr.mxu0 0.0
  %379 = vmatpush1.xpose.msra.mxu0 0.0
  %380 = vmatprep.subr.mxu0 0.0
  %381 = vmatpush1.xpose.msra.mxu0 0.0
  %382 = vmatprep.subr.mxu0 0.0
  %383 = vmatpush1.xpose.msra.mxu0 0.0
  %384 = vmatprep.subr.mxu0 0.0
  %385 = vmatpush1.xpose.msra.mxu0 0.0
  %386 = vmatprep.subr.mxu0 0.0
  %387 = vmatpush1.xpose.msra.mxu0 0.0
  %388 = vmatprep.subr.mxu0 0.0
  %389 = vmatpush1.xpose.msra.mxu0 0.0
  %390 = vmatprep.subr.mxu0 0.0
  %391 = vmatpush1.xpose.msra.mxu0 0.0
  %392 = vmatprep.subr.mxu0 0.0
  %393 = vmatpush1.xpose.msra.mxu0 0.0
  %394 = vmatprep.subr.mxu0 0.0
  %395 = vmatpush1.xpose.msra.mxu0 0.0
  %396 = vmatprep.subr.mxu0 0.0
  %397 = vmatpush1.xpose.msra.mxu0 0.0
  %398 = vmatprep.subr.mxu0 0.0
  %399 = vmatpush1.xpose.msra.mxu0 0.0
  %400 = vmatprep.subr.mxu0 0.0
  %401 = vmatpush1.xpose.msra.mxu0 0.0
  %402 = vmatprep.subr.mxu0 0.0
  %403 = vmatpush1.xpose.msra.mxu0 0.0
  %404 = vmatprep.subr.mxu0 0.0
  %405 = vmatpush1.xpose.msra.mxu0 0.0
  %406 = vmatprep.subr.mxu0 0.0
  %407 = vmatpush1.xpose.msra.mxu0 0.0
  %408 = vmatprep.subr.mxu0 0.0
  %409 = vmatpush1.xpose.msra.mxu0 0.0
  %410 = vmatprep.subr.mxu0 0.0
  %411 = vmatpush1.xpose.msra.mxu0 0.0
  %412 = vmatprep.subr.mxu0 0.0
  %413 = vmatpush1.xpose.msra.mxu0 0.0
  %414 = vmatprep.subr.mxu0 0.0
  %415 = vmatpush1.xpose.msra.mxu0 0.0
  %416 = vmatprep.subr.mxu0 0.0
  %417 = vmatpush1.xpose.msra.mxu0 0.0
  %418 = vmatprep.subr.mxu0 0.0
  %419 = vmatpush1.xpose.msra.mxu0 0.0
  %420 = vmatprep.subr.mxu0 0.0
  %421 = vmatpush1.xpose.msra.mxu0 0.0
  %422 = vmatprep.subr.mxu0 0.0
  %423 = vmatpush1.xpose.msra.mxu0 0.0
  %424 = vmatprep.subr.mxu0 0.0
  %425 = vmatpush1.xpose.msra.mxu0 0.0
  %426 = vmatprep.subr.mxu0 0.0
  %427 = vmatpush1.xpose.msra.mxu0 0.0
  %428 = vmatprep.subr.mxu0 0.0
  %429 = vmatpush1.xpose.msra.mxu0 0.0
  %430 = vmatprep.subr.mxu0 0.0
  %431 = vmatpush1.xpose.msra.mxu0 0.0
  %432 = vmatprep.subr.mxu0 0.0
  %433 = vmatpush1.xpose.msra.mxu0 0.0
  %434 = vmatprep.mubr.f32.mxu0 0.0
  %435 = vmatmul.mubr.f32.gmra.mrb[0].mxu0 %v366
  %v436 = vpop.f32.mrb[0].mxu0
  %v437 = vadd.f32 0.0, %v436
  %v438 = vpop.f32.mrb[0].mxu0
  %439 = vdwg.mxu0
  %v440 = vmul.f32 %v437, 0.35355338
  %v441 = vsel %vm199, %v440, -inf
  %442 = vmax.xlane.f32.xlu0 %v441
  %v443 = vpop.xlane.xlu0 %442
  %v444 = vsub.f32 %v440, %v443
  %v445 = vmul.f32 %v444, 1.442695
  %v446 = vpow.pop %v445
  %v447 = vsel %vm199, %v446, 0.0
  %448 = vadd.xlane.f32.xlu0 %v447
  %v449 = vpop.xlane.xlu0 %448
  %v450 = vrcp.pop %v449
  %v451 = vmul.f32 %v446, %v450
  %452 = vrot.lane.b32.xlu0 %v188, 56
  %v453 = vpop.permute.xlu0 %452
  %v456 = vsel %vm199, %v451, 0
  %458 = vmatprep.subr.mxu0 0.0
  %459 = vmatpush1.msra.mxu0 %v453
  %460 = vmatprep.subr.mxu0 0.0
  %461 = vmatpush1.msra.mxu0 0.0
  %462 = vmatprep.subr.mxu0 0.0
  %463 = vmatpush1.msra.mxu0 0.0
  %464 = vmatprep.subr.mxu0 0.0
  %465 = vmatpush1.msra.mxu0 0.0
  %466 = vmatprep.subr.mxu0 0.0
  %467 = vmatpush1.msra.mxu0 0.0
  %468 = vmatprep.subr.mxu0 0.0
  %469 = vmatpush1.msra.mxu0 0.0
  %470 = vmatprep.subr.mxu0 0.0
  %471 = vmatpush1.msra.mxu0 0.0
  %472 = vmatprep.subr.mxu0 0.0
  %473 = vmatpush1.msra.mxu0 0.0
  %474 = vmatprep.subr.mxu0 0.0
  %475 = vmatpush1.msra.mxu0 0.0
  %476 = vmatprep.subr.mxu0 0.0
  %477 = vmatpush1.msra.mxu0 0.0
  %478 = vmatprep.subr.mxu0 0.0
  %479 = vmatpush1.msra.mxu0 0.0
  %480 = vmatprep.subr.mxu0 0.0
  %481 = vmatpush1.msra.mxu0 0.0
  %482 = vmatprep.subr.mxu0 0.0
  %483 = vmatpush1.msra.mxu0 0.0
  %484 = vmatprep.subr.mxu0 0.0
  %485 = vmatpush1.msra.mxu0 0.0
  %486 = vmatprep.subr.mxu0 0.0
  %487 = vmatpush1.msra.mxu0 0.0
  %488 = vmatprep.subr.mxu0 0.0
  %489 = vmatpush1.msra.mxu0 0.0
  %490 = vmatprep.subr.mxu0 0.0
  %491 = vmatpush1.msra.mxu0 0.0
  %492 = vmatprep.subr.mxu0 0.0
  %493 = vmatpush1.msra.mxu0 0.0
  %494 = vmatprep.subr.mxu0 0.0
  %495 = vmatpush1.msra.mxu0 0.0
  %496 = vmatprep.subr.mxu0 0.0
  %497 = vmatpush1.msra.mxu0 0.0
  %498 = vmatprep.subr.mxu0 0.0
  %499 = vmatpush1.msra.mxu0 0.0
  %500 = vmatprep.subr.mxu0 0.0
  %501 = vmatpush1.msra.mxu0 0.0
  %502 = vmatprep.subr.mxu0 0.0
  %503 = vmatpush1.msra.mxu0 0.0
  %504 = vmatprep.subr.mxu0 0.0
  %505 = vmatpush1.msra.mxu0 0.0
  %506 = vmatprep.subr.mxu0 0.0
  %507 = vmatpush1.msra.mxu0 0.0
  %508 = vmatprep.subr.mxu0 0.0
  %509 = vmatpush1.msra.mxu0 0.0
  %510 = vmatprep.subr.mxu0 0.0
  %511 = vmatpush1.msra.mxu0 0.0
  %512 = vmatprep.subr.mxu0 0.0
  %513 = vmatpush1.msra.mxu0 0.0
  %514 = vmatprep.subr.mxu0 0.0
  %515 = vmatpush1.msra.mxu0 0.0
  %516 = vmatprep.subr.mxu0 0.0
  %517 = vmatpush1.msra.mxu0 0.0
  %518 = vmatprep.subr.mxu0 0.0
  %519 = vmatpush1.msra.mxu0 0.0
  %520 = vmatprep.subr.mxu0 0.0
  %521 = vmatpush1.msra.mxu0 0.0
  %522 = vmatprep.mubr.f32.mxu0 0.0
  %523 = vmatmul.mubr.f32.gmra.mrb[0].mxu0 %v456
  %v524 = vpop.f32.mrb[0].mxu0
  %v525 = vadd.f32 0.0, %v524
  %v526 = vpop.f32.mrb[0].mxu0
  %527 = vdwg.mxu0
  %528 = vrot.lane.b32.xlu0 %v188, 112
  %v529 = vpop.permute.xlu0 %528
  %530 = vrot.lane.b32.xlu0 %v188, 80
  %v531 = vpop.permute.xlu0 %530
  %v532 = vsel %vm199, %v529, 0
  %v534 = vsel %vm199, %v531, 0
  %536 = vmatprep.subr.mxu0 0.0
  %537 = vmatpush1.xpose.msra.mxu0 %v534
  %538 = vmatprep.subr.mxu0 0.0
  %539 = vmatpush1.xpose.msra.mxu0 0.0
  %540 = vmatprep.subr.mxu0 0.0
  %541 = vmatpush1.xpose.msra.mxu0 0.0
  %542 = vmatprep.subr.mxu0 0.0
  %543 = vmatpush1.xpose.msra.mxu0 0.0
  %544 = vmatprep.subr.mxu0 0.0
  %545 = vmatpush1.xpose.msra.mxu0 0.0
  %546 = vmatprep.subr.mxu0 0.0
  %547 = vmatpush1.xpose.msra.mxu0 0.0
  %548 = vmatprep.subr.mxu0 0.0
  %549 = vmatpush1.xpose.msra.mxu0 0.0
  %550 = vmatprep.subr.mxu0 0.0
  %551 = vmatpush1.xpose.msra.mxu0 0.0
  %552 = vmatprep.subr.mxu0 0.0
  %553 = vmatpush1.xpose.msra.mxu0 0.0
  %554 = vmatprep.subr.mxu0 0.0
  %555 = vmatpush1.xpose.msra.mxu0 0.0
  %556 = vmatprep.subr.mxu0 0.0
  %557 = vmatpush1.xpose.msra.mxu0 0.0
  %558 = vmatprep.subr.mxu0 0.0
  %559 = vmatpush1.xpose.msra.mxu0 0.0
  %560 = vmatprep.subr.mxu0 0.0
  %561 = vmatpush1.xpose.msra.mxu0 0.0
  %562 = vmatprep.subr.mxu0 0.0
  %563 = vmatpush1.xpose.msra.mxu0 0.0
  %564 = vmatprep.subr.mxu0 0.0
  %565 = vmatpush1.xpose.msra.mxu0 0.0
  %566 = vmatprep.subr.mxu0 0.0
  %567 = vmatpush1.xpose.msra.mxu0 0.0
  %568 = vmatprep.subr.mxu0 0.0
  %569 = vmatpush1.xpose.msra.mxu0 0.0
  %570 = vmatprep.subr.mxu0 0.0
  %571 = vmatpush1.xpose.msra.mxu0 0.0
  %572 = vmatprep.subr.mxu0 0.0
  %573 = vmatpush1.xpose.msra.mxu0 0.0
  %574 = vmatprep.subr.mxu0 0.0
  %575 = vmatpush1.xpose.msra.mxu0 0.0
  %576 = vmatprep.subr.mxu0 0.0
  %577 = vmatpush1.xpose.msra.mxu0 0.0
  %578 = vmatprep.subr.mxu0 0.0
  %579 = vmatpush1.xpose.msra.mxu0 0.0
  %580 = vmatprep.subr.mxu0 0.0
  %581 = vmatpush1.xpose.msra.mxu0 0.0
  %582 = vmatprep.subr.mxu0 0.0
  %583 = vmatpush1.xpose.msra.mxu0 0.0
  %584 = vmatprep.subr.mxu0 0.0
  %585 = vmatpush1.xpose.msra.mxu0 0.0
  %586 = vmatprep.subr.mxu0 0.0
  %587 = vmatpush1.xpose.msra.mxu0 0.0
  %588 = vmatprep.subr.mxu0 0.0
  %589 = vmatpush1.xpose.msra.mxu0 0.0
  %590 = vmatprep.subr.mxu0 0.0
  %591 = vmatpush1.xpose.msra.mxu0 0.0
  %592 = vmatprep.subr.mxu0 0.0
  %593 = vmatpush1.xpose.msra.mxu0 0.0
  %594 = vmatprep.subr.mxu0 0.0
  %595 = vmatpush1.xpose.msra.mxu0 0.0
  %596 = vmatprep.subr.mxu0 0.0
  %597 = vmatpush1.xpose.msra.mxu0 0.0
  %598 = vmatprep.subr.mxu0 0.0
  %599 = vmatpush1.xpose.msra.mxu0 0.0
  %600 = vmatprep.mubr.f32.mxu0 0.0
  %601 = vmatmul.mubr.f32.gmra.mrb[0].mxu0 %v532
  %v602 = vpop.f32.mrb[0].mxu0
  %v603 = vadd.f32 0.0, %v602
  %v604 = vpop.f32.mrb[0].mxu0
  %605 = vdwg.mxu0
  %v606 = vmul.f32 %v603, 0.35355338
  %v607 = vsel %vm199, %v606, -inf
  %608 = vmax.xlane.f32.xlu0 %v607
  %v609 = vpop.xlane.xlu0 %608
  %v610 = vsub.f32 %v606, %v609
  %v611 = vmul.f32 %v610, 1.442695
  %v612 = vpow.pop %v611
  %v613 = vsel %vm199, %v612, 0.0
  %614 = vadd.xlane.f32.xlu0 %v613
  %v615 = vpop.xlane.xlu0 %614
  %v616 = vrcp.pop %v615
  %v617 = vmul.f32 %v612, %v616
  %618 = vrot.lane.b32.xlu0 %v188, 48
  %v619 = vpop.permute.xlu0 %618
  %v622 = vsel %vm199, %v617, 0
  %624 = vmatprep.subr.mxu0 0.0
  %625 = vmatpush1.msra.mxu0 %v619
  %626 = vmatprep.subr.mxu0 0.0
  %627 = vmatpush1.msra.mxu0 0.0
  %628 = vmatprep.subr.mxu0 0.0
  %629 = vmatpush1.msra.mxu0 0.0
  %630 = vmatprep.subr.mxu0 0.0
  %631 = vmatpush1.msra.mxu0 0.0
  %632 = vmatprep.subr.mxu0 0.0
  %633 = vmatpush1.msra.mxu0 0.0
  %634 = vmatprep.subr.mxu0 0.0
  %635 = vmatpush1.msra.mxu0 0.0
  %636 = vmatprep.subr.mxu0 0.0
  %637 = vmatpush1.msra.mxu0 0.0
  %638 = vmatprep.subr.mxu0 0.0
  %639 = vmatpush1.msra.mxu0 0.0
  %640 = vmatprep.subr.mxu0 0.0
  %641 = vmatpush1.msra.mxu0 0.0
  %642 = vmatprep.subr.mxu0 0.0
  %643 = vmatpush1.msra.mxu0 0.0
  %644 = vmatprep.subr.mxu0 0.0
  %645 = vmatpush1.msra.mxu0 0.0
  %646 = vmatprep.subr.mxu0 0.0
  %647 = vmatpush1.msra.mxu0 0.0
  %648 = vmatprep.subr.mxu0 0.0
  %649 = vmatpush1.msra.mxu0 0.0
  %650 = vmatprep.subr.mxu0 0.0
  %651 = vmatpush1.msra.mxu0 0.0
  %652 = vmatprep.subr.mxu0 0.0
  %653 = vmatpush1.msra.mxu0 0.0
  %654 = vmatprep.subr.mxu0 0.0
  %655 = vmatpush1.msra.mxu0 0.0
  %656 = vmatprep.subr.mxu0 0.0
  %657 = vmatpush1.msra.mxu0 0.0
  %658 = vmatprep.subr.mxu0 0.0
  %659 = vmatpush1.msra.mxu0 0.0
  %660 = vmatprep.subr.mxu0 0.0
  %661 = vmatpush1.msra.mxu0 0.0
  %662 = vmatprep.subr.mxu0 0.0
  %663 = vmatpush1.msra.mxu0 0.0
  %664 = vmatprep.subr.mxu0 0.0
  %665 = vmatpush1.msra.mxu0 0.0
  %666 = vmatprep.subr.mxu0 0.0
  %667 = vmatpush1.msra.mxu0 0.0
  %668 = vmatprep.subr.mxu0 0.0
  %669 = vmatpush1.msra.mxu0 0.0
  %670 = vmatprep.subr.mxu0 0.0
  %671 = vmatpush1.msra.mxu0 0.0
  %672 = vmatprep.subr.mxu0 0.0
  %673 = vmatpush1.msra.mxu0 0.0
  %674 = vmatprep.subr.mxu0 0.0
  %675 = vmatpush1.msra.mxu0 0.0
  %676 = vmatprep.subr.mxu0 0.0
  %677 = vmatpush1.msra.mxu0 0.0
  %678 = vmatprep.subr.mxu0 0.0
  %679 = vmatpush1.msra.mxu0 0.0
  %680 = vmatprep.subr.mxu0 0.0
  %681 = vmatpush1.msra.mxu0 0.0
  %682 = vmatprep.subr.mxu0 0.0
  %683 = vmatpush1.msra.mxu0 0.0
  %684 = vmatprep.subr.mxu0 0.0
  %685 = vmatpush1.msra.mxu0 0.0
  %686 = vmatprep.subr.mxu0 0.0
  %687 = vmatpush1.msra.mxu0 0.0
  %688 = vmatprep.mubr.f32.mxu0 0.0
  %689 = vmatmul.mubr.f32.gmra.mrb[0].mxu0 %v622
  %v690 = vpop.f32.mrb[0].mxu0
  %v691 = vadd.f32 0.0, %v690
  %v692 = vpop.f32.mrb[0].mxu0
  %693 = vdwg.mxu0
  %694 = vrot.lane.b32.xlu0 %v188, 104
  %v695 = vpop.permute.xlu0 %694
  %696 = vrot.lane.b32.xlu0 %v188, 72
  %v697 = vpop.permute.xlu0 %696
  %v698 = vsel %vm199, %v695, 0
  %v700 = vsel %vm199, %v697, 0
  %702 = vmatprep.subr.mxu0 0.0
  %703 = vmatpush1.xpose.msra.mxu0 %v700
  %704 = vmatprep.subr.mxu0 0.0
  %705 = vmatpush1.xpose.msra.mxu0 0.0
  %706 = vmatprep.subr.mxu0 0.0
  %707 = vmatpush1.xpose.msra.mxu0 0.0
  %708 = vmatprep.subr.mxu0 0.0
  %709 = vmatpush1.xpose.msra.mxu0 0.0
  %710 = vmatprep.subr.mxu0 0.0
  %711 = vmatpush1.xpose.msra.mxu0 0.0
  %712 = vmatprep.subr.mxu0 0.0
  %713 = vmatpush1.xpose.msra.mxu0 0.0
  %714 = vmatprep.subr.mxu0 0.0
  %715 = vmatpush1.xpose.msra.mxu0 0.0
  %716 = vmatprep.subr.mxu0 0.0
  %717 = vmatpush1.xpose.msra.mxu0 0.0
  %718 = vmatprep.subr.mxu0 0.0
  %719 = vmatpush1.xpose.msra.mxu0 0.0
  %720 = vmatprep.subr.mxu0 0.0
  %721 = vmatpush1.xpose.msra.mxu0 0.0
  %722 = vmatprep.subr.mxu0 0.0
  %723 = vmatpush1.xpose.msra.mxu0 0.0
  %724 = vmatprep.subr.mxu0 0.0
  %725 = vmatpush1.xpose.msra.mxu0 0.0
  %726 = vmatprep.subr.mxu0 0.0
  %727 = vmatpush1.xpose.msra.mxu0 0.0
  %728 = vmatprep.subr.mxu0 0.0
  %729 = vmatpush1.xpose.msra.mxu0 0.0
  %730 = vmatprep.subr.mxu0 0.0
  %731 = vmatpush1.xpose.msra.mxu0 0.0
  %732 = vmatprep.subr.mxu0 0.0
  %733 = vmatpush1.xpose.msra.mxu0 0.0
  %734 = vmatprep.subr.mxu0 0.0
  %735 = vmatpush1.xpose.msra.mxu0 0.0
  %736 = vmatprep.subr.mxu0 0.0
  %737 = vmatpush1.xpose.msra.mxu0 0.0
  %738 = vmatprep.subr.mxu0 0.0
  %739 = vmatpush1.xpose.msra.mxu0 0.0
  %740 = vmatprep.subr.mxu0 0.0
  %741 = vmatpush1.xpose.msra.mxu0 0.0
  %742 = vmatprep.subr.mxu0 0.0
  %743 = vmatpush1.xpose.msra.mxu0 0.0
  %744 = vmatprep.subr.mxu0 0.0
  %745 = vmatpush1.xpose.msra.mxu0 0.0
  %746 = vmatprep.subr.mxu0 0.0
  %747 = vmatpush1.xpose.msra.mxu0 0.0
  %748 = vmatprep.subr.mxu0 0.0
  %749 = vmatpush1.xpose.msra.mxu0 0.0
  %750 = vmatprep.subr.mxu0 0.0
  %751 = vmatpush1.xpose.msra.mxu0 0.0
  %752 = vmatprep.subr.mxu0 0.0
  %753 = vmatpush1.xpose.msra.mxu0 0.0
  %754 = vmatprep.subr.mxu0 0.0
  %755 = vmatpush1.xpose.msra.mxu0 0.0
  %756 = vmatprep.subr.mxu0 0.0
  %757 = vmatpush1.xpose.msra.mxu0 0.0
  %758 = vmatprep.subr.mxu0 0.0
  %759 = vmatpush1.xpose.msra.mxu0 0.0
  %760 = vmatprep.subr.mxu0 0.0
  %761 = vmatpush1.xpose.msra.mxu0 0.0
  %762 = vmatprep.subr.mxu0 0.0
  %763 = vmatpush1.xpose.msra.mxu0 0.0
  %764 = vmatprep.subr.mxu0 0.0
  %765 = vmatpush1.xpose.msra.mxu0 0.0
  %766 = vmatprep.mubr.f32.mxu0 0.0
  %767 = vmatmul.mubr.f32.gmra.mrb[0].mxu0 %v698
  %v768 = vpop.f32.mrb[0].mxu0
  %v769 = vadd.f32 0.0, %v768
  %v770 = vpop.f32.mrb[0].mxu0
  %771 = vdwg.mxu0
  %v772 = vmul.f32 %v769, 0.35355338
  %v773 = vsel %vm199, %v772, -inf
  %774 = vmax.xlane.f32.xlu0 %v773
  %v775 = vpop.xlane.xlu0 %774
  %v776 = vsub.f32 %v772, %v775
  %v777 = vmul.f32 %v776, 1.442695
  %v778 = vpow.pop %v777
  %v779 = vsel %vm199, %v778, 0.0
  %780 = vadd.xlane.f32.xlu0 %v779
  %v781 = vpop.xlane.xlu0 %780
  %v782 = vrcp.pop %v781
  %v783 = vmul.f32 %v778, %v782
  %784 = vrot.lane.b32.xlu0 %v188, 40
  %v785 = vpop.permute.xlu0 %784
  %v788 = vsel %vm199, %v783, 0
  %790 = vmatprep.subr.mxu0 0.0
  %791 = vmatpush1.msra.mxu0 %v785
  %792 = vmatprep.subr.mxu0 0.0
  %793 = vmatpush1.msra.mxu0 0.0
  %794 = vmatprep.subr.mxu0 0.0
  %795 = vmatpush1.msra.mxu0 0.0
  %796 = vmatprep.subr.mxu0 0.0
  %797 = vmatpush1.msra.mxu0 0.0
  %798 = vmatprep.subr.mxu0 0.0
  %799 = vmatpush1.msra.mxu0 0.0
  %800 = vmatprep.subr.mxu0 0.0
  %801 = vmatpush1.msra.mxu0 0.0
  %802 = vmatprep.subr.mxu0 0.0
  %803 = vmatpush1.msra.mxu0 0.0
  %804 = vmatprep.subr.mxu0 0.0
  %805 = vmatpush1.msra.mxu0 0.0
  %806 = vmatprep.subr.mxu0 0.0
  %807 = vmatpush1.msra.mxu0 0.0
  %808 = vmatprep.subr.mxu0 0.0
  %809 = vmatpush1.msra.mxu0 0.0
  %810 = vmatprep.subr.mxu0 0.0
  %811 = vmatpush1.msra.mxu0 0.0
  %812 = vmatprep.subr.mxu0 0.0
  %813 = vmatpush1.msra.mxu0 0.0
  %814 = vmatprep.subr.mxu0 0.0
  %815 = vmatpush1.msra.mxu0 0.0
  %816 = vmatprep.subr.mxu0 0.0
  %817 = vmatpush1.msra.mxu0 0.0
  %818 = vmatprep.subr.mxu0 0.0
  %819 = vmatpush1.msra.mxu0 0.0
  %820 = vmatprep.subr.mxu0 0.0
  %821 = vmatpush1.msra.mxu0 0.0
  %822 = vmatprep.subr.mxu0 0.0
  %823 = vmatpush1.msra.mxu0 0.0
  %824 = vmatprep.subr.mxu0 0.0
  %825 = vmatpush1.msra.mxu0 0.0
  %826 = vmatprep.subr.mxu0 0.0
  %827 = vmatpush1.msra.mxu0 0.0
  %828 = vmatprep.subr.mxu0 0.0
  %829 = vmatpush1.msra.mxu0 0.0
  %830 = vmatprep.subr.mxu0 0.0
  %831 = vmatpush1.msra.mxu0 0.0
  %832 = vmatprep.subr.mxu0 0.0
  %833 = vmatpush1.msra.mxu0 0.0
  %834 = vmatprep.subr.mxu0 0.0
  %835 = vmatpush1.msra.mxu0 0.0
  %836 = vmatprep.subr.mxu0 0.0
  %837 = vmatpush1.msra.mxu0 0.0
  %838 = vmatprep.subr.mxu0 0.0
  %839 = vmatpush1.msra.mxu0 0.0
  %840 = vmatprep.subr.mxu0 0.0
  %841 = vmatpush1.msra.mxu0 0.0
  %842 = vmatprep.subr.mxu0 0.0
  %843 = vmatpush1.msra.mxu0 0.0
  %844 = vmatprep.subr.mxu0 0.0
  %845 = vmatpush1.msra.mxu0 0.0
  %846 = vmatprep.subr.mxu0 0.0
  %847 = vmatpush1.msra.mxu0 0.0
  %848 = vmatprep.subr.mxu0 0.0
  %849 = vmatpush1.msra.mxu0 0.0
  %850 = vmatprep.subr.mxu0 0.0
  %851 = vmatpush1.msra.mxu0 0.0
  %852 = vmatprep.subr.mxu0 0.0
  %853 = vmatpush1.msra.mxu0 0.0
  %854 = vmatprep.mubr.f32.mxu0 0.0
  %855 = vmatmul.mubr.f32.gmra.mrb[0].mxu0 %v788
  %v856 = vpop.f32.mrb[0].mxu0
  %v857 = vadd.f32 0.0, %v856
  %v858 = vpop.f32.mrb[0].mxu0
  %859 = vdwg.mxu0
  %861 = vrot.lane.b32.xlu0 %v525, 8
  %v862 = vpop.permute.xlu0 %861
  %865 = vrot.lane.b32.xlu0 %v691, 16
  %v866 = vpop.permute.xlu0 %865
  %869 = vrot.lane.b32.xlu0 %v857, 24
  %v870 = vpop.permute.xlu0 %869
  %v872 = vsel %vm199, %v359, %v862
  %vm873 = vcmask 130048
  %v874 = vsel %vm873, %v872, %v866
  %vm875 = vcmask 195584
  %v876 = vsel %vm875, %v874, %v870
  %878 = vrot.lane.b32.xlu0 %v193, 96
  %v879 = vpop.permute.xlu0 %878
  %v880 = vsel %vm199, %v193, 0
  %v882 = vsel %vm199, %v879, 0
  %884 = vmatprep.subr.mxu0 0.0
  %885 = vmatpush1.xpose.msra.mxu0 %v882
  %886 = vmatprep.subr.mxu0 0.0
  %887 = vmatpush1.xpose.msra.mxu0 0.0
  %888 = vmatprep.subr.mxu0 0.0
  %889 = vmatpush1.xpose.msra.mxu0 0.0
  %890 = vmatprep.subr.mxu0 0.0
  %891 = vmatpush1.xpose.msra.mxu0 0.0
  %892 = vmatprep.subr.mxu0 0.0
  %893 = vmatpush1.xpose.msra.mxu0 0.0
  %894 = vmatprep.subr.mxu0 0.0
  %895 = vmatpush1.xpose.msra.mxu0 0.0
  %896 = vmatprep.subr.mxu0 0.0
  %897 = vmatpush1.xpose.msra.mxu0 0.0
  %898 = vmatprep.subr.mxu0 0.0
  %899 = vmatpush1.xpose.msra.mxu0 0.0
  %900 = vmatprep.subr.mxu0 0.0
  %901 = vmatpush1.xpose.msra.mxu0 0.0
  %902 = vmatprep.subr.mxu0 0.0
  %903 = vmatpush1.xpose.msra.mxu0 0.0
  %904 = vmatprep.subr.mxu0 0.0
  %905 = vmatpush1.xpose.msra.mxu0 0.0
  %906 = vmatprep.subr.mxu0 0.0
  %907 = vmatpush1.xpose.msra.mxu0 0.0
  %908 = vmatprep.subr.mxu0 0.0
  %909 = vmatpush1.xpose.msra.mxu0 0.0
  %910 = vmatprep.subr.mxu0 0.0
  %911 = vmatpush1.xpose.msra.mxu0 0.0
  %912 = vmatprep.subr.mxu0 0.0
  %913 = vmatpush1.xpose.msra.mxu0 0.0
  %914 = vmatprep.subr.mxu0 0.0
  %915 = vmatpush1.xpose.msra.mxu0 0.0
  %916 = vmatprep.subr.mxu0 0.0
  %917 = vmatpush1.xpose.msra.mxu0 0.0
  %918 = vmatprep.subr.mxu0 0.0
  %919 = vmatpush1.xpose.msra.mxu0 0.0
  %920 = vmatprep.subr.mxu0 0.0
  %921 = vmatpush1.xpose.msra.mxu0 0.0
  %922 = vmatprep.subr.mxu0 0.0
  %923 = vmatpush1.xpose.msra.mxu0 0.0
  %924 = vmatprep.subr.mxu0 0.0
  %925 = vmatpush1.xpose.msra.mxu0 0.0
  %926 = vmatprep.subr.mxu0 0.0
  %927 = vmatpush1.xpose.msra.mxu0 0.0
  %928 = vmatprep.subr.mxu0 0.0
  %929 = vmatpush1.xpose.msra.mxu0 0.0
  %930 = vmatprep.subr.mxu0 0.0
  %931 = vmatpush1.xpose.msra.mxu0 0.0
  %932 = vmatprep.subr.mxu0 0.0
  %933 = vmatpush1.xpose.msra.mxu0 0.0
  %934 = vmatprep.subr.mxu0 0.0
  %935 = vmatpush1.xpose.msra.mxu0 0.0
  %936 = vmatprep.subr.mxu0 0.0
  %937 = vmatpush1.xpose.msra.mxu0 0.0
  %938 = vmatprep.subr.mxu0 0.0
  %939 = vmatpush1.xpose.msra.mxu0 0.0
  %940 = vmatprep.subr.mxu0 0.0
  %941 = vmatpush1.xpose.msra.mxu0 0.0
  %942 = vmatprep.subr.mxu0 0.0
  %943 = vmatpush1.xpose.msra.mxu0 0.0
  %944 = vmatprep.subr.mxu0 0.0
  %945 = vmatpush1.xpose.msra.mxu0 0.0
  %946 = vmatprep.subr.mxu0 0.0
  %947 = vmatpush1.xpose.msra.mxu0 0.0
  %948 = vmatprep.mubr.f32.mxu0 0.0
  %949 = vmatmul.mubr.f32.gmra.mrb[0].mxu0 %v880
  %v950 = vpop.f32.mrb[0].mxu0
  %v951 = vadd.f32 0.0, %v950
  %v952 = vpop.f32.mrb[0].mxu0
  %953 = vdwg.mxu0
  %v954 = vmul.f32 %v951, 0.35355338
  %v955 = vsel %vm199, %v954, -inf
  %956 = vmax.xlane.f32.xlu0 %v955
  %v957 = vpop.xlane.xlu0 %956
  %v958 = vsub.f32 %v954, %v957
  %v959 = vmul.f32 %v958, 1.442695
  %v960 = vpow.pop %v959
  %v961 = vsel %vm199, %v960, 0.0
  %962 = vadd.xlane.f32.xlu0 %v961
  %v963 = vpop.xlane.xlu0 %962
  %v964 = vrcp.pop %v963
  %v965 = vmul.f32 %v960, %v964
  %966 = vrot.lane.b32.xlu0 %v193, 64
  %v967 = vpop.permute.xlu0 %966
  %v970 = vsel %vm199, %v965, 0
  %972 = vmatprep.subr.mxu0 0.0
  %973 = vmatpush1.msra.mxu0 %v967
  %974 = vmatprep.subr.mxu0 0.0
  %975 = vmatpush1.msra.mxu0 0.0
  %976 = vmatprep.subr.mxu0 0.0
  %977 = vmatpush1.msra.mxu0 0.0
  %978 = vmatprep.subr.mxu0 0.0
  %979 = vmatpush1.msra.mxu0 0.0
  %980 = vmatprep.subr.mxu0 0.0
  %981 = vmatpush1.msra.mxu0 0.0
  %982 = vmatprep.subr.mxu0 0.0
  %983 = vmatpush1.msra.mxu0 0.0
  %984 = vmatprep.subr.mxu0 0.0
  %985 = vmatpush1.msra.mxu0 0.0
  %986 = vmatprep.subr.mxu0 0.0
  %987 = vmatpush1.msra.mxu0 0.0
  %988 = vmatprep.subr.mxu0 0.0
  %989 = vmatpush1.msra.mxu0 0.0
  %990 = vmatprep.subr.mxu0 0.0
  %991 = vmatpush1.msra.mxu0 0.0
  %992 = vmatprep.subr.mxu0 0.0
  %993 = vmatpush1.msra.mxu0 0.0
  %994 = vmatprep.subr.mxu0 0.0
  %995 = vmatpush1.msra.mxu0 0.0
  %996 = vmatprep.subr.mxu0 0.0
  %997 = vmatpush1.msra.mxu0 0.0
  %998 = vmatprep.subr.mxu0 0.0
  %999 = vmatpush1.msra.mxu0 0.0
  %1000 = vmatprep.subr.mxu0 0.0
  %1001 = vmatpush1.msra.mxu0 0.0
  %1002 = vmatprep.subr.mxu0 0.0
  %1003 = vmatpush1.msra.mxu0 0.0
  %1004 = vmatprep.subr.mxu0 0.0
  %1005 = vmatpush1.msra.mxu0 0.0
  %1006 = vmatprep.subr.mxu0 0.0
  %1007 = vmatpush1.msra.mxu0 0.0
  %1008 = vmatprep.subr.mxu0 0.0
  %1009 = vmatpush1.msra.mxu0 0.0
  %1010 = vmatprep.subr.mxu0 0.0
  %1011 = vmatpush1.msra.mxu0 0.0
  %1012 = vmatprep.subr.mxu0 0.0
  %1013 = vmatpush1.msra.mxu0 0.0
  %1014 = vmatprep.subr.mxu0 0.0
  %1015 = vmatpush1.msra.mxu0 0.0
  %1016 = vmatprep.subr.mxu0 0.0
  %1017 = vmatpush1.msra.mxu0 0.0
  %1018 = vmatprep.subr.mxu0 0.0
  %1019 = vmatpush1.msra.mxu0 0.0
  %1020 = vmatprep.subr.mxu0 0.0
  %1021 = vmatpush1.msra.mxu0 0.0
  %1022 = vmatprep.subr.mxu0 0.0
  %1023 = vmatpush1.msra.mxu0 0.0
  %1024 = vmatprep.subr.mxu0 0.0
  %1025 = vmatpush1.msra.mxu0 0.0
  %1026 = vmatprep.subr.mxu0 0.0
  %1027 = vmatpush1.msra.mxu0 0.0
  %1028 = vmatprep.subr.mxu0 0.0
  %1029 = vmatpush1.msra.mxu0 0.0
  %1030 = vmatprep.subr.mxu0 0.0
  %1031 = vmatpush1.msra.mxu0 0.0
  %1032 = vmatprep.subr.mxu0 0.0
  %1033 = vmatpush1.msra.mxu0 0.0
  %1034 = vmatprep.subr.mxu0 0.0
  %1035 = vmatpush1.msra.mxu0 0.0
  %1036 = vmatprep.mubr.f32.mxu0 0.0
  %1037 = vmatmul.mubr.f32.gmra.mrb[0].mxu0 %v970
  %v1038 = vpop.f32.mrb[0].mxu0
  %v1039 = vadd.f32 0.0, %v1038
  %v1040 = vpop.f32.mrb[0].mxu0
  %1041 = vdwg.mxu0
  %1042 = vrot.lane.b32.xlu0 %v193, 120
  %v1043 = vpop.permute.xlu0 %1042
  %1044 = vrot.lane.b32.xlu0 %v193, 88
  %v1045 = vpop.permute.xlu0 %1044
  %v1046 = vsel %vm199, %v1043, 0
  %v1048 = vsel %vm199, %v1045, 0
  %1050 = vmatprep.subr.mxu0 0.0
  %1051 = vmatpush1.xpose.msra.mxu0 %v1048
  %1052 = vmatprep.subr.mxu0 0.0
  %1053 = vmatpush1.xpose.msra.mxu0 0.0
  %1054 = vmatprep.subr.mxu0 0.0
  %1055 = vmatpush1.xpose.msra.mxu0 0.0
  %1056 = vmatprep.subr.mxu0 0.0
  %1057 = vmatpush1.xpose.msra.mxu0 0.0
  %1058 = vmatprep.subr.mxu0 0.0
  %1059 = vmatpush1.xpose.msra.mxu0 0.0
  %1060 = vmatprep.subr.mxu0 0.0
  %1061 = vmatpush1.xpose.msra.mxu0 0.0
  %1062 = vmatprep.subr.mxu0 0.0
  %1063 = vmatpush1.xpose.msra.mxu0 0.0
  %1064 = vmatprep.subr.mxu0 0.0
  %1065 = vmatpush1.xpose.msra.mxu0 0.0
  %1066 = vmatprep.subr.mxu0 0.0
  %1067 = vmatpush1.xpose.msra.mxu0 0.0
  %1068 = vmatprep.subr.mxu0 0.0
  %1069 = vmatpush1.xpose.msra.mxu0 0.0
  %1070 = vmatprep.subr.mxu0 0.0
  %1071 = vmatpush1.xpose.msra.mxu0 0.0
  %1072 = vmatprep.subr.mxu0 0.0
  %1073 = vmatpush1.xpose.msra.mxu0 0.0
  %1074 = vmatprep.subr.mxu0 0.0
  %1075 = vmatpush1.xpose.msra.mxu0 0.0
  %1076 = vmatprep.subr.mxu0 0.0
  %1077 = vmatpush1.xpose.msra.mxu0 0.0
  %1078 = vmatprep.subr.mxu0 0.0
  %1079 = vmatpush1.xpose.msra.mxu0 0.0
  %1080 = vmatprep.subr.mxu0 0.0
  %1081 = vmatpush1.xpose.msra.mxu0 0.0
  %1082 = vmatprep.subr.mxu0 0.0
  %1083 = vmatpush1.xpose.msra.mxu0 0.0
  %1084 = vmatprep.subr.mxu0 0.0
  %1085 = vmatpush1.xpose.msra.mxu0 0.0
  %1086 = vmatprep.subr.mxu0 0.0
  %1087 = vmatpush1.xpose.msra.mxu0 0.0
  %1088 = vmatprep.subr.mxu0 0.0
  %1089 = vmatpush1.xpose.msra.mxu0 0.0
  %1090 = vmatprep.subr.mxu0 0.0
  %1091 = vmatpush1.xpose.msra.mxu0 0.0
  %1092 = vmatprep.subr.mxu0 0.0
  %1093 = vmatpush1.xpose.msra.mxu0 0.0
  %1094 = vmatprep.subr.mxu0 0.0
  %1095 = vmatpush1.xpose.msra.mxu0 0.0
  %1096 = vmatprep.subr.mxu0 0.0
  %1097 = vmatpush1.xpose.msra.mxu0 0.0
  %1098 = vmatprep.subr.mxu0 0.0
  %1099 = vmatpush1.xpose.msra.mxu0 0.0
  %1100 = vmatprep.subr.mxu0 0.0
  %1101 = vmatpush1.xpose.msra.mxu0 0.0
  %1102 = vmatprep.subr.mxu0 0.0
  %1103 = vmatpush1.xpose.msra.mxu0 0.0
  %1104 = vmatprep.subr.mxu0 0.0
  %1105 = vmatpush1.xpose.msra.mxu0 0.0
  %1106 = vmatprep.subr.mxu0 0.0
  %1107 = vmatpush1.xpose.msra.mxu0 0.0
  %1108 = vmatprep.subr.mxu0 0.0
  %1109 = vmatpush1.xpose.msra.mxu0 0.0
  %1110 = vmatprep.subr.mxu0 0.0
  %1111 = vmatpush1.xpose.msra.mxu0 0.0
  %1112 = vmatprep.subr.mxu0 0.0
  %1113 = vmatpush1.xpose.msra.mxu0 0.0
  %1114 = vmatprep.mubr.f32.mxu0 0.0
  %1115 = vmatmul.mubr.f32.gmra.mrb[0].mxu0 %v1046
  %v1116 = vpop.f32.mrb[0].mxu0
  %v1117 = vadd.f32 0.0, %v1116
  %v1118 = vpop.f32.mrb[0].mxu0
  %1119 = vdwg.mxu0
  %v1120 = vmul.f32 %v1117, 0.35355338
  %v1121 = vsel %vm199, %v1120, -inf
  %1122 = vmax.xlane.f32.xlu0 %v1121
  %v1123 = vpop.xlane.xlu0 %1122
  %v1124 = vsub.f32 %v1120, %v1123
  %v1125 = vmul.f32 %v1124, 1.442695
  %v1126 = vpow.pop %v1125
  %v1127 = vsel %vm199, %v1126, 0.0
  %1128 = vadd.xlane.f32.xlu0 %v1127
  %v1129 = vpop.xlane.xlu0 %1128
  %v1130 = vrcp.pop %v1129
  %v1131 = vmul.f32 %v1126, %v1130
  %1132 = vrot.lane.b32.xlu0 %v193, 56
  %v1133 = vpop.permute.xlu0 %1132
  %v1136 = vsel %vm199, %v1131, 0
  %1138 = vmatprep.subr.mxu0 0.0
  %1139 = vmatpush1.msra.mxu0 %v1133
  %1140 = vmatprep.subr.mxu0 0.0
  %1141 = vmatpush1.msra.mxu0 0.0
  %1142 = vmatprep.subr.mxu0 0.0
  %1143 = vmatpush1.msra.mxu0 0.0
  %1144 = vmatprep.subr.mxu0 0.0
  %1145 = vmatpush1.msra.mxu0 0.0
  %1146 = vmatprep.subr.mxu0 0.0
  %1147 = vmatpush1.msra.mxu0 0.0
  %1148 = vmatprep.subr.mxu0 0.0
  %1149 = vmatpush1.msra.mxu0 0.0
  %1150 = vmatprep.subr.mxu0 0.0
  %1151 = vmatpush1.msra.mxu0 0.0
  %1152 = vmatprep.subr.mxu0 0.0
  %1153 = vmatpush1.msra.mxu0 0.0
  %1154 = vmatprep.subr.mxu0 0.0
  %1155 = vmatpush1.msra.mxu0 0.0
  %1156 = vmatprep.subr.mxu0 0.0
  %1157 = vmatpush1.msra.mxu0 0.0
  %1158 = vmatprep.subr.mxu0 0.0
  %1159 = vmatpush1.msra.mxu0 0.0
  %1160 = vmatprep.subr.mxu0 0.0
  %1161 = vmatpush1.msra.mxu0 0.0
  %1162 = vmatprep.subr.mxu0 0.0
  %1163 = vmatpush1.msra.mxu0 0.0
  %1164 = vmatprep.subr.mxu0 0.0
  %1165 = vmatpush1.msra.mxu0 0.0
  %1166 = vmatprep.subr.mxu0 0.0
  %1167 = vmatpush1.msra.mxu0 0.0
  %1168 = vmatprep.subr.mxu0 0.0
  %1169 = vmatpush1.msra.mxu0 0.0
  %1170 = vmatprep.subr.mxu0 0.0
  %1171 = vmatpush1.msra.mxu0 0.0
  %1172 = vmatprep.subr.mxu0 0.0
  %1173 = vmatpush1.msra.mxu0 0.0
  %1174 = vmatprep.subr.mxu0 0.0
  %1175 = vmatpush1.msra.mxu0 0.0
  %1176 = vmatprep.subr.mxu0 0.0
  %1177 = vmatpush1.msra.mxu0 0.0
  %1178 = vmatprep.subr.mxu0 0.0
  %1179 = vmatpush1.msra.mxu0 0.0
  %1180 = vmatprep.subr.mxu0 0.0
  %1181 = vmatpush1.msra.mxu0 0.0
  %1182 = vmatprep.subr.mxu0 0.0
  %1183 = vmatpush1.msra.mxu0 0.0
  %1184 = vmatprep.subr.mxu0 0.0
  %1185 = vmatpush1.msra.mxu0 0.0
  %1186 = vmatprep.subr.mxu0 0.0
  %1187 = vmatpush1.msra.mxu0 0.0
  %1188 = vmatprep.subr.mxu0 0.0
  %1189 = vmatpush1.msra.mxu0 0.0
  %1190 = vmatprep.subr.mxu0 0.0
  %1191 = vmatpush1.msra.mxu0 0.0
  %1192 = vmatprep.subr.mxu0 0.0
  %1193 = vmatpush1.msra.mxu0 0.0
  %1194 = vmatprep.subr.mxu0 0.0
  %1195 = vmatpush1.msra.mxu0 0.0
  %1196 = vmatprep.subr.mxu0 0.0
  %1197 = vmatpush1.msra.mxu0 0.0
  %1198 = vmatprep.subr.mxu0 0.0
  %1199 = vmatpush1.msra.mxu0 0.0
  %1200 = vmatprep.subr.mxu0 0.0
  %1201 = vmatpush1.msra.mxu0 0.0
  %1202 = vmatprep.mubr.f32.mxu0 0.0
  %1203 = vmatmul.mubr.f32.gmra.mrb[0].mxu0 %v1136
  %v1204 = vpop.f32.mrb[0].mxu0
  %v1205 = vadd.f32 0.0, %v1204
  %v1206 = vpop.f32.mrb[0].mxu0
  %1207 = vdwg.mxu0
  %1208 = vrot.lane.b32.xlu0 %v193, 112
  %v1209 = vpop.permute.xlu0 %1208
  %1210 = vrot.lane.b32.xlu0 %v193, 80
  %v1211 = vpop.permute.xlu0 %1210
  %v1212 = vsel %vm199, %v1209, 0
  %v1214 = vsel %vm199, %v1211, 0
  %1216 = vmatprep.subr.mxu0 0.0
  %1217 = vmatpush1.xpose.msra.mxu0 %v1214
  %1218 = vmatprep.subr.mxu0 0.0
  %1219 = vmatpush1.xpose.msra.mxu0 0.0
  %1220 = vmatprep.subr.mxu0 0.0
  %1221 = vmatpush1.xpose.msra.mxu0 0.0
  %1222 = vmatprep.subr.mxu0 0.0
  %1223 = vmatpush1.xpose.msra.mxu0 0.0
  %1224 = vmatprep.subr.mxu0 0.0
  %1225 = vmatpush1.xpose.msra.mxu0 0.0
  %1226 = vmatprep.subr.mxu0 0.0
  %1227 = vmatpush1.xpose.msra.mxu0 0.0
  %1228 = vmatprep.subr.mxu0 0.0
  %1229 = vmatpush1.xpose.msra.mxu0 0.0
  %1230 = vmatprep.subr.mxu0 0.0
  %1231 = vmatpush1.xpose.msra.mxu0 0.0
  %1232 = vmatprep.subr.mxu0 0.0
  %1233 = vmatpush1.xpose.msra.mxu0 0.0
  %1234 = vmatprep.subr.mxu0 0.0
  %1235 = vmatpush1.xpose.msra.mxu0 0.0
  %1236 = vmatprep.subr.mxu0 0.0
  %1237 = vmatpush1.xpose.msra.mxu0 0.0
  %1238 = vmatprep.subr.mxu0 0.0
  %1239 = vmatpush1.xpose.msra.mxu0 0.0
  %1240 = vmatprep.subr.mxu0 0.0
  %1241 = vmatpush1.xpose.msra.mxu0 0.0
  %1242 = vmatprep.subr.mxu0 0.0
  %1243 = vmatpush1.xpose.msra.mxu0 0.0
  %1244 = vmatprep.subr.mxu0 0.0
  %1245 = vmatpush1.xpose.msra.mxu0 0.0
  %1246 = vmatprep.subr.mxu0 0.0
  %1247 = vmatpush1.xpose.msra.mxu0 0.0
  %1248 = vmatprep.subr.mxu0 0.0
  %1249 = vmatpush1.xpose.msra.mxu0 0.0
  %1250 = vmatprep.subr.mxu0 0.0
  %1251 = vmatpush1.xpose.msra.mxu0 0.0
  %1252 = vmatprep.subr.mxu0 0.0
  %1253 = vmatpush1.xpose.msra.mxu0 0.0
  %1254 = vmatprep.subr.mxu0 0.0
  %1255 = vmatpush1.xpose.msra.mxu0 0.0
  %1256 = vmatprep.subr.mxu0 0.0
  %1257 = vmatpush1.xpose.msra.mxu0 0.0
  %1258 = vmatprep.subr.mxu0 0.0
  %1259 = vmatpush1.xpose.msra.mxu0 0.0
  %1260 = vmatprep.subr.mxu0 0.0
  %1261 = vmatpush1.xpose.msra.mxu0 0.0
  %1262 = vmatprep.subr.mxu0 0.0
  %1263 = vmatpush1.xpose.msra.mxu0 0.0
  %1264 = vmatprep.subr.mxu0 0.0
  %1265 = vmatpush1.xpose.msra.mxu0 0.0
  %1266 = vmatprep.subr.mxu0 0.0
  %1267 = vmatpush1.xpose.msra.mxu0 0.0
  %1268 = vmatprep.subr.mxu0 0.0
  %1269 = vmatpush1.xpose.msra.mxu0 0.0
  %1270 = vmatprep.subr.mxu0 0.0
  %1271 = vmatpush1.xpose.msra.mxu0 0.0
  %1272 = vmatprep.subr.mxu0 0.0
  %1273 = vmatpush1.xpose.msra.mxu0 0.0
  %1274 = vmatprep.subr.mxu0 0.0
  %1275 = vmatpush1.xpose.msra.mxu0 0.0
  %1276 = vmatprep.subr.mxu0 0.0
  %1277 = vmatpush1.xpose.msra.mxu0 0.0
  %1278 = vmatprep.subr.mxu0 0.0
  %1279 = vmatpush1.xpose.msra.mxu0 0.0
  %1280 = vmatprep.mubr.f32.mxu0 0.0
  %1281 = vmatmul.mubr.f32.gmra.mrb[0].mxu0 %v1212
  %v1282 = vpop.f32.mrb[0].mxu0
  %v1283 = vadd.f32 0.0, %v1282
  %v1284 = vpop.f32.mrb[0].mxu0
  %1285 = vdwg.mxu0
  %v1286 = vmul.f32 %v1283, 0.35355338
  %v1287 = vsel %vm199, %v1286, -inf
  %1288 = vmax.xlane.f32.xlu0 %v1287
  %v1289 = vpop.xlane.xlu0 %1288
  %v1290 = vsub.f32 %v1286, %v1289
  %v1291 = vmul.f32 %v1290, 1.442695
  %v1292 = vpow.pop %v1291
  %v1293 = vsel %vm199, %v1292, 0.0
  %1294 = vadd.xlane.f32.xlu0 %v1293
  %v1295 = vpop.xlane.xlu0 %1294
  %v1296 = vrcp.pop %v1295
  %v1297 = vmul.f32 %v1292, %v1296
  %1298 = vrot.lane.b32.xlu0 %v193, 48
  %v1299 = vpop.permute.xlu0 %1298
  %v1302 = vsel %vm199, %v1297, 0
  %1304 = vmatprep.subr.mxu0 0.0
  %1305 = vmatpush1.msra.mxu0 %v1299
  %1306 = vmatprep.subr.mxu0 0.0
  %1307 = vmatpush1.msra.mxu0 0.0
  %1308 = vmatprep.subr.mxu0 0.0
  %1309 = vmatpush1.msra.mxu0 0.0
  %1310 = vmatprep.subr.mxu0 0.0
  %1311 = vmatpush1.msra.mxu0 0.0
  %1312 = vmatprep.subr.mxu0 0.0
  %1313 = vmatpush1.msra.mxu0 0.0
  %1314 = vmatprep.subr.mxu0 0.0
  %1315 = vmatpush1.msra.mxu0 0.0
  %1316 = vmatprep.subr.mxu0 0.0
  %1317 = vmatpush1.msra.mxu0 0.0
  %1318 = vmatprep.subr.mxu0 0.0
  %1319 = vmatpush1.msra.mxu0 0.0
  %1320 = vmatprep.subr.mxu0 0.0
  %1321 = vmatpush1.msra.mxu0 0.0
  %1322 = vmatprep.subr.mxu0 0.0
  %1323 = vmatpush1.msra.mxu0 0.0
  %1324 = vmatprep.subr.mxu0 0.0
  %1325 = vmatpush1.msra.mxu0 0.0
  %1326 = vmatprep.subr.mxu0 0.0
  %1327 = vmatpush1.msra.mxu0 0.0
  %1328 = vmatprep.subr.mxu0 0.0
  %1329 = vmatpush1.msra.mxu0 0.0
  %1330 = vmatprep.subr.mxu0 0.0
  %1331 = vmatpush1.msra.mxu0 0.0
  %1332 = vmatprep.subr.mxu0 0.0
  %1333 = vmatpush1.msra.mxu0 0.0
  %1334 = vmatprep.subr.mxu0 0.0
  %1335 = vmatpush1.msra.mxu0 0.0
  %1336 = vmatprep.subr.mxu0 0.0
  %1337 = vmatpush1.msra.mxu0 0.0
  %1338 = vmatprep.subr.mxu0 0.0
  %1339 = vmatpush1.msra.mxu0 0.0
  %1340 = vmatprep.subr.mxu0 0.0
  %1341 = vmatpush1.msra.mxu0 0.0
  %1342 = vmatprep.subr.mxu0 0.0
  %1343 = vmatpush1.msra.mxu0 0.0
  %1344 = vmatprep.subr.mxu0 0.0
  %1345 = vmatpush1.msra.mxu0 0.0
  %1346 = vmatprep.subr.mxu0 0.0
  %1347 = vmatpush1.msra.mxu0 0.0
  %1348 = vmatprep.subr.mxu0 0.0
  %1349 = vmatpush1.msra.mxu0 0.0
  %1350 = vmatprep.subr.mxu0 0.0
  %1351 = vmatpush1.msra.mxu0 0.0
  %1352 = vmatprep.subr.mxu0 0.0
  %1353 = vmatpush1.msra.mxu0 0.0
  %1354 = vmatprep.subr.mxu0 0.0
  %1355 = vmatpush1.msra.mxu0 0.0
  %1356 = vmatprep.subr.mxu0 0.0
  %1357 = vmatpush1.msra.mxu0 0.0
  %1358 = vmatprep.subr.mxu0 0.0
  %1359 = vmatpush1.msra.mxu0 0.0
  %1360 = vmatprep.subr.mxu0 0.0
  %1361 = vmatpush1.msra.mxu0 0.0
  %1362 = vmatprep.subr.mxu0 0.0
  %1363 = vmatpush1.msra.mxu0 0.0
  %1364 = vmatprep.subr.mxu0 0.0
  %1365 = vmatpush1.msra.mxu0 0.0
  %1366 = vmatprep.subr.mxu0 0.0
  %1367 = vmatpush1.msra.mxu0 0.0
  %1368 = vmatprep.mubr.f32.mxu0 0.0
  %1369 = vmatmul.mubr.f32.gmra.mrb[0].mxu0 %v1302
  %v1370 = vpop.f32.mrb[0].mxu0
  %v1371 = vadd.f32 0.0, %v1370
  %v1372 = vpop.f32.mrb[0].mxu0
  %1373 = vdwg.mxu0
  %1374 = vrot.lane.b32.xlu0 %v193, 104
  %v1375 = vpop.permute.xlu0 %1374
  %1376 = vrot.lane.b32.xlu0 %v193, 72
  %v1377 = vpop.permute.xlu0 %1376
  %v1378 = vsel %vm199, %v1375, 0
  %v1380 = vsel %vm199, %v1377, 0
  %1382 = vmatprep.subr.mxu0 0.0
  %1383 = vmatpush1.xpose.msra.mxu0 %v1380
  %1384 = vmatprep.subr.mxu0 0.0
  %1385 = vmatpush1.xpose.msra.mxu0 0.0
  %1386 = vmatprep.subr.mxu0 0.0
  %1387 = vmatpush1.xpose.msra.mxu0 0.0
  %1388 = vmatprep.subr.mxu0 0.0
  %1389 = vmatpush1.xpose.msra.mxu0 0.0
  %1390 = vmatprep.subr.mxu0 0.0
  %1391 = vmatpush1.xpose.msra.mxu0 0.0
  %1392 = vmatprep.subr.mxu0 0.0
  %1393 = vmatpush1.xpose.msra.mxu0 0.0
  %1394 = vmatprep.subr.mxu0 0.0
  %1395 = vmatpush1.xpose.msra.mxu0 0.0
  %1396 = vmatprep.subr.mxu0 0.0
  %1397 = vmatpush1.xpose.msra.mxu0 0.0
  %1398 = vmatprep.subr.mxu0 0.0
  %1399 = vmatpush1.xpose.msra.mxu0 0.0
  %1400 = vmatprep.subr.mxu0 0.0
  %1401 = vmatpush1.xpose.msra.mxu0 0.0
  %1402 = vmatprep.subr.mxu0 0.0
  %1403 = vmatpush1.xpose.msra.mxu0 0.0
  %1404 = vmatprep.subr.mxu0 0.0
  %1405 = vmatpush1.xpose.msra.mxu0 0.0
  %1406 = vmatprep.subr.mxu0 0.0
  %1407 = vmatpush1.xpose.msra.mxu0 0.0
  %1408 = vmatprep.subr.mxu0 0.0
  %1409 = vmatpush1.xpose.msra.mxu0 0.0
  %1410 = vmatprep.subr.mxu0 0.0
  %1411 = vmatpush1.xpose.msra.mxu0 0.0
  %1412 = vmatprep.subr.mxu0 0.0
  %1413 = vmatpush1.xpose.msra.mxu0 0.0
  %1414 = vmatprep.subr.mxu0 0.0
  %1415 = vmatpush1.xpose.msra.mxu0 0.0
  %1416 = vmatprep.subr.mxu0 0.0
  %1417 = vmatpush1.xpose.msra.mxu0 0.0
  %1418 = vmatprep.subr.mxu0 0.0
  %1419 = vmatpush1.xpose.msra.mxu0 0.0
  %1420 = vmatprep.subr.mxu0 0.0
  %1421 = vmatpush1.xpose.msra.mxu0 0.0
  %1422 = vmatprep.subr.mxu0 0.0
  %1423 = vmatpush1.xpose.msra.mxu0 0.0
  %1424 = vmatprep.subr.mxu0 0.0
  %1425 = vmatpush1.xpose.msra.mxu0 0.0
  %1426 = vmatprep.subr.mxu0 0.0
  %1427 = vmatpush1.xpose.msra.mxu0 0.0
  %1428 = vmatprep.subr.mxu0 0.0
  %1429 = vmatpush1.xpose.msra.mxu0 0.0
  %1430 = vmatprep.subr.mxu0 0.0
  %1431 = vmatpush1.xpose.msra.mxu0 0.0
  %1432 = vmatprep.subr.mxu0 0.0
  %1433 = vmatpush1.xpose.msra.mxu0 0.0
  %1434 = vmatprep.subr.mxu0 0.0
  %1435 = vmatpush1.xpose.msra.mxu0 0.0
  %1436 = vmatprep.subr.mxu0 0.0
  %1437 = vmatpush1.xpose.msra.mxu0 0.0
  %1438 = vmatprep.subr.mxu0 0.0
  %1439 = vmatpush1.xpose.msra.mxu0 0.0
  %1440 = vmatprep.subr.mxu0 0.0
  %1441 = vmatpush1.xpose.msra.mxu0 0.0
  %1442 = vmatprep.subr.mxu0 0.0
  %1443 = vmatpush1.xpose.msra.mxu0 0.0
  %1444 = vmatprep.subr.mxu0 0.0
  %1445 = vmatpush1.xpose.msra.mxu0 0.0
  %1446 = vmatprep.mubr.f32.mxu0 0.0
  %1447 = vmatmul.mubr.f32.gmra.mrb[0].mxu0 %v1378
  %v1448 = vpop.f32.mrb[0].mxu0
  %v1449 = vadd.f32 0.0, %v1448
  %v1450 = vpop.f32.mrb[0].mxu0
  %1451 = vdwg.mxu0
  %v1452 = vmul.f32 %v1449, 0.35355338
  %v1453 = vsel %vm199, %v1452, -inf
  %1454 = vmax.xlane.f32.xlu0 %v1453
  %v1455 = vpop.xlane.xlu0 %1454
  %v1456 = vsub.f32 %v1452, %v1455
  %v1457 = vmul.f32 %v1456, 1.442695
  %v1458 = vpow.pop %v1457
  %v1459 = vsel %vm199, %v1458, 0.0
  %1460 = vadd.xlane.f32.xlu0 %v1459
  %v1461 = vpop.xlane.xlu0 %1460
  %v1462 = vrcp.pop %v1461
  %v1463 = vmul.f32 %v1458, %v1462
  %1464 = vrot.lane.b32.xlu0 %v193, 40
  %v1465 = vpop.permute.xlu0 %1464
  %v1468 = vsel %vm199, %v1463, 0
  %1470 = vmatprep.subr.mxu0 0.0
  %1471 = vmatpush1.msra.mxu0 %v1465
  %1472 = vmatprep.subr.mxu0 0.0
  %1473 = vmatpush1.msra.mxu0 0.0
  %1474 = vmatprep.subr.mxu0 0.0
  %1475 = vmatpush1.msra.mxu0 0.0
  %1476 = vmatprep.subr.mxu0 0.0
  %1477 = vmatpush1.msra.mxu0 0.0
  %1478 = vmatprep.subr.mxu0 0.0
  %1479 = vmatpush1.msra.mxu0 0.0
  %1480 = vmatprep.subr.mxu0 0.0
  %1481 = vmatpush1.msra.mxu0 0.0
  %1482 = vmatprep.subr.mxu0 0.0
  %1483 = vmatpush1.msra.mxu0 0.0
  %1484 = vmatprep.subr.mxu0 0.0
  %1485 = vmatpush1.msra.mxu0 0.0
  %1486 = vmatprep.subr.mxu0 0.0
  %1487 = vmatpush1.msra.mxu0 0.0
  %1488 = vmatprep.subr.mxu0 0.0
  %1489 = vmatpush1.msra.mxu0 0.0
  %1490 = vmatprep.subr.mxu0 0.0
  %1491 = vmatpush1.msra.mxu0 0.0
  %1492 = vmatprep.subr.mxu0 0.0
  %1493 = vmatpush1.msra.mxu0 0.0
  %1494 = vmatprep.subr.mxu0 0.0
  %1495 = vmatpush1.msra.mxu0 0.0
  %1496 = vmatprep.subr.mxu0 0.0
  %1497 = vmatpush1.msra.mxu0 0.0
  %1498 = vmatprep.subr.mxu0 0.0
  %1499 = vmatpush1.msra.mxu0 0.0
  %1500 = vmatprep.subr.mxu0 0.0
  %1501 = vmatpush1.msra.mxu0 0.0
  %1502 = vmatprep.subr.mxu0 0.0
  %1503 = vmatpush1.msra.mxu0 0.0
  %1504 = vmatprep.subr.mxu0 0.0
  %1505 = vmatpush1.msra.mxu0 0.0
  %1506 = vmatprep.subr.mxu0 0.0
  %1507 = vmatpush1.msra.mxu0 0.0
  %1508 = vmatprep.subr.mxu0 0.0
  %1509 = vmatpush1.msra.mxu0 0.0
  %1510 = vmatprep.subr.mxu0 0.0
  %1511 = vmatpush1.msra.mxu0 0.0
  %1512 = vmatprep.subr.mxu0 0.0
  %1513 = vmatpush1.msra.mxu0 0.0
  %1514 = vmatprep.subr.mxu0 0.0
  %1515 = vmatpush1.msra.mxu0 0.0
  %1516 = vmatprep.subr.mxu0 0.0
  %1517 = vmatpush1.msra.mxu0 0.0
  %1518 = vmatprep.subr.mxu0 0.0
  %1519 = vmatpush1.msra.mxu0 0.0
  %1520 = vmatprep.subr.mxu0 0.0
  %1521 = vmatpush1.msra.mxu0 0.0
  %1522 = vmatprep.subr.mxu0 0.0
  %1523 = vmatpush1.msra.mxu0 0.0
  %1524 = vmatprep.subr.mxu0 0.0
  %1525 = vmatpush1.msra.mxu0 0.0
  %1526 = vmatprep.subr.mxu0 0.0
  %1527 = vmatpush1.msra.mxu0 0.0
  %1528 = vmatprep.subr.mxu0 0.0
  %1529 = vmatpush1.msra.mxu0 0.0
  %1530 = vmatprep.subr.mxu0 0.0
  %1531 = vmatpush1.msra.mxu0 0.0
  %1532 = vmatprep.subr.mxu0 0.0
  %1533 = vmatpush1.msra.mxu0 0.0
  %1534 = vmatprep.mubr.f32.mxu0 0.0
  %1535 = vmatmul.mubr.f32.gmra.mrb[0].mxu0 %v1468
  %v1536 = vpop.f32.mrb[0].mxu0
  %v1537 = vadd.f32 0.0, %v1536
  %v1538 = vpop.f32.mrb[0].mxu0
  %1539 = vdwg.mxu0
  %1541 = vrot.lane.b32.xlu0 %v1205, 8
  %v1542 = vpop.permute.xlu0 %1541
  %1545 = vrot.lane.b32.xlu0 %v1371, 16
  %v1546 = vpop.permute.xlu0 %1545
  %1549 = vrot.lane.b32.xlu0 %v1537, 24
  %v1550 = vpop.permute.xlu0 %1549
  %v1552 = vsel %vm199, %v1039, %v1542
  %v1553 = vsel %vm873, %v1552, %v1546
  %v1554 = vsel %vm875, %v1553, %v1550
  %v1555 = vld [vmem:[%s5] sm:$0xff]
  %v1556 = vld [vmem:[%s5 + $0x8] sm:$0xff]
  %v1557 = vld [vmem:[%s5 + $0x10] sm:$0xff]
  %v1558 = vld [vmem:[%s5 + $0x18] sm:$0xff]
  %v1559 = vld [vmem:[%s6] sm:$0x1]
  %v1561 = vlaneseq
  %v1562 = vshrl.u32 %v1561, 7
  %v1563 = vsub.s32 0, %v1562
  %v1564 = vrot.slane %v1559, %v1563
  %v1567 = vsel %vm60, %v876, 0
  %v1570 = vsel %vm60, %v1554, 0
  %1572 = vmatprep.subr.mxu0 0.0
  %1573 = vmatpush1.msra.mxu0 %v1555
  %1574 = vmatprep.subr.mxu0 0.0
  %1575 = vmatpush1.msra.mxu0 %v1556
  %1576 = vmatprep.subr.mxu0 0.0
  %1577 = vmatpush1.msra.mxu0 %v1557
  %1578 = vmatprep.subr.mxu0 0.0
  %1579 = vmatpush1.msra.mxu0 %v1558
  %1580 = vmatprep.subr.mxu0 0.0
  %1581 = vmatpush1.msra.mxu0 0.0
  %1582 = vmatprep.subr.mxu0 0.0
  %1583 = vmatpush1.msra.mxu0 0.0
  %1584 = vmatprep.subr.mxu0 0.0
  %1585 = vmatpush1.msra.mxu0 0.0
  %1586 = vmatprep.subr.mxu0 0.0
  %1587 = vmatpush1.msra.mxu0 0.0
  %1588 = vmatprep.subr.mxu0 0.0
  %1589 = vmatpush1.msra.mxu0 0.0
  %1590 = vmatprep.subr.mxu0 0.0
  %1591 = vmatpush1.msra.mxu0 0.0
  %1592 = vmatprep.subr.mxu0 0.0
  %1593 = vmatpush1.msra.mxu0 0.0
  %1594 = vmatprep.subr.mxu0 0.0
  %1595 = vmatpush1.msra.mxu0 0.0
  %1596 = vmatprep.subr.mxu0 0.0
  %1597 = vmatpush1.msra.mxu0 0.0
  %1598 = vmatprep.subr.mxu0 0.0
  %1599 = vmatpush1.msra.mxu0 0.0
  %1600 = vmatprep.subr.mxu0 0.0
  %1601 = vmatpush1.msra.mxu0 0.0
  %1602 = vmatprep.subr.mxu0 0.0
  %1603 = vmatpush1.msra.mxu0 0.0
  %1604 = vmatprep.subr.mxu0 0.0
  %1605 = vmatpush1.msra.mxu0 0.0
  %1606 = vmatprep.subr.mxu0 0.0
  %1607 = vmatpush1.msra.mxu0 0.0
  %1608 = vmatprep.subr.mxu0 0.0
  %1609 = vmatpush1.msra.mxu0 0.0
  %1610 = vmatprep.subr.mxu0 0.0
  %1611 = vmatpush1.msra.mxu0 0.0
  %1612 = vmatprep.subr.mxu0 0.0
  %1613 = vmatpush1.msra.mxu0 0.0
  %1614 = vmatprep.subr.mxu0 0.0
  %1615 = vmatpush1.msra.mxu0 0.0
  %1616 = vmatprep.subr.mxu0 0.0
  %1617 = vmatpush1.msra.mxu0 0.0
  %1618 = vmatprep.subr.mxu0 0.0
  %1619 = vmatpush1.msra.mxu0 0.0
  %1620 = vmatprep.subr.mxu0 0.0
  %1621 = vmatpush1.msra.mxu0 0.0
  %1622 = vmatprep.subr.mxu0 0.0
  %1623 = vmatpush1.msra.mxu0 0.0
  %1624 = vmatprep.subr.mxu0 0.0
  %1625 = vmatpush1.msra.mxu0 0.0
  %1626 = vmatprep.subr.mxu0 0.0
  %1627 = vmatpush1.msra.mxu0 0.0
  %1628 = vmatprep.subr.mxu0 0.0
  %1629 = vmatpush1.msra.mxu0 0.0
  %1630 = vmatprep.subr.mxu0 0.0
  %1631 = vmatpush1.msra.mxu0 0.0
  %1632 = vmatprep.subr.mxu0 0.0
  %1633 = vmatpush1.msra.mxu0 0.0
  %1634 = vmatprep.subr.mxu0 0.0
  %1635 = vmatpush1.msra.mxu0 0.0
  %1636 = vmatprep.mubr.f32.mxu0 0.0
  %1637 = vmatmul.mubr.f32.gmra.mrb[0].mxu0 %v1567
  %v1638 = vpop.f32.mrb[0].mxu0
  %v1639 = vadd.f32 %v1564, %v1638
  %v1640 = vpop.f32.mrb[0].mxu0
  %1641 = vmatprep.mubr.f32.mxu0 0.0
  %1642 = vmatmul.mubr.f32.gmra.mrb[0].mxu0 %v1570
  %v1643 = vpop.f32.mrb[0].mxu0
  %v1644 = vadd.f32 %v1564, %v1643
  %v1645 = vpop.f32.mrb[0].mxu0
  %1646 = vdwg.mxu0
  %v1647 = vadd.f32 %v1639, %v102
  %v1648 = vadd.f32 %v1644, %v103
  %v1649 = vld [vmem:[%s7] sm:$0x1]
  %v1650 = vld [vmem:[%s8] sm:$0x1]
  %v1651 = vsel %vm60, %v1647, 0.0
  %1652 = vadd.xlane.f32.xlu0 %v1651
  %v1653 = vpop.xlane.xlu0 %1652
  %v1654 = vsel %vm60, %v1648, 0.0
  %1655 = vadd.xlane.f32.xlu0 %v1654
  %v1656 = vpop.xlane.xlu0 %1655
  %v1657 = vmul.f32 %v1653, %v67
  %v1658 = vmul.f32 %v1656, %v67
  %v1659 = vsub.f32 %v1647, %v1657
  %v1660 = vsub.f32 %v1648, %v1658
  %v1661 = vmul.f32 %v1659, %v1659
  %v1662 = vmul.f32 %v1660, %v1660
  %v1663 = vsel %vm60, %v1661, 0.0
  %1664 = vadd.xlane.f32.xlu0 %v1663
  %v1665 = vpop.xlane.xlu0 %1664
  %v1666 = vsel %vm60, %v1662, 0.0
  %1667 = vadd.xlane.f32.xlu0 %v1666
  %v1668 = vpop.xlane.xlu0 %1667
  %v1669 = vmul.f32 %v1665, %v67
  %v1670 = vmul.f32 %v1668, %v67
  %v1671 = vadd.f32 %v1669, 1e-12
  %v1672 = vadd.f32 %v1670, 1e-12
  %v1673 = vrsqrt.pop %v1671
  %v1674 = vrsqrt.pop %v1672
  %v1675 = vmul.f32 %v1659, %v1673
  %v1676 = vmul.f32 %v1660, %v1674
  %v1678 = vlaneseq
  %v1679 = vshrl.u32 %v1678, 7
  %v1680 = vsub.s32 0, %v1679
  %v1681 = vrot.slane %v1649, %v1680
  %v1683 = vmul.f32 %v1675, %v1681
  %v1684 = vmul.f32 %v1676, %v1681
  %v1686 = vlaneseq
  %v1687 = vshrl.u32 %v1686, 7
  %v1688 = vsub.s32 0, %v1687
  %v1689 = vrot.slane %v1650, %v1688
  %v1691 = vadd.f32 %v1683, %v1689
  %v1692 = vadd.f32 %v1684, %v1689
  %v1693 = vld [vmem:[%s9] sm:$0xff]
  %v1694 = vld [vmem:[%s9 + $0x8] sm:$0xff]
  %v1695 = vld [vmem:[%s9 + $0x10] sm:$0xff]
  %v1696 = vld [vmem:[%s9 + $0x18] sm:$0xff]
  %v1697 = vld [vmem:[%s10] sm:$0x1]
  %v1699 = vlaneseq
  %v1700 = vshrl.u32 %v1699, 7
  %v1701 = vsub.s32 0, %v1700
  %v1702 = vrot.slane %v1697, %v1701
  %v1705 = vsel %vm60, %v1691, 0
  %v1708 = vsel %vm60, %v1692, 0
  %1710 = vmatprep.subr.mxu0 0.0
  %1711 = vmatpush1.msra.mxu0 %v1693
  %1712 = vmatprep.subr.mxu0 0.0
  %1713 = vmatpush1.msra.mxu0 %v1694
  %1714 = vmatprep.subr.mxu0 0.0
  %1715 = vmatpush1.msra.mxu0 %v1695
  %1716 = vmatprep.subr.mxu0 0.0
  %1717 = vmatpush1.msra.mxu0 %v1696
  %1718 = vmatprep.subr.mxu0 0.0
  %1719 = vmatpush1.msra.mxu0 0.0
  %1720 = vmatprep.subr.mxu0 0.0
  %1721 = vmatpush1.msra.mxu0 0.0
  %1722 = vmatprep.subr.mxu0 0.0
  %1723 = vmatpush1.msra.mxu0 0.0
  %1724 = vmatprep.subr.mxu0 0.0
  %1725 = vmatpush1.msra.mxu0 0.0
  %1726 = vmatprep.subr.mxu0 0.0
  %1727 = vmatpush1.msra.mxu0 0.0
  %1728 = vmatprep.subr.mxu0 0.0
  %1729 = vmatpush1.msra.mxu0 0.0
  %1730 = vmatprep.subr.mxu0 0.0
  %1731 = vmatpush1.msra.mxu0 0.0
  %1732 = vmatprep.subr.mxu0 0.0
  %1733 = vmatpush1.msra.mxu0 0.0
  %1734 = vmatprep.subr.mxu0 0.0
  %1735 = vmatpush1.msra.mxu0 0.0
  %1736 = vmatprep.subr.mxu0 0.0
  %1737 = vmatpush1.msra.mxu0 0.0
  %1738 = vmatprep.subr.mxu0 0.0
  %1739 = vmatpush1.msra.mxu0 0.0
  %1740 = vmatprep.subr.mxu0 0.0
  %1741 = vmatpush1.msra.mxu0 0.0
  %1742 = vmatprep.subr.mxu0 0.0
  %1743 = vmatpush1.msra.mxu0 0.0
  %1744 = vmatprep.subr.mxu0 0.0
  %1745 = vmatpush1.msra.mxu0 0.0
  %1746 = vmatprep.subr.mxu0 0.0
  %1747 = vmatpush1.msra.mxu0 0.0
  %1748 = vmatprep.subr.mxu0 0.0
  %1749 = vmatpush1.msra.mxu0 0.0
  %1750 = vmatprep.subr.mxu0 0.0
  %1751 = vmatpush1.msra.mxu0 0.0
  %1752 = vmatprep.subr.mxu0 0.0
  %1753 = vmatpush1.msra.mxu0 0.0
  %1754 = vmatprep.subr.mxu0 0.0
  %1755 = vmatpush1.msra.mxu0 0.0
  %1756 = vmatprep.subr.mxu0 0.0
  %1757 = vmatpush1.msra.mxu0 0.0
  %1758 = vmatprep.subr.mxu0 0.0
  %1759 = vmatpush1.msra.mxu0 0.0
  %1760 = vmatprep.subr.mxu0 0.0
  %1761 = vmatpush1.msra.mxu0 0.0
  %1762 = vmatprep.subr.mxu0 0.0
  %1763 = vmatpush1.msra.mxu0 0.0
  %1764 = vmatprep.subr.mxu0 0.0
  %1765 = vmatpush1.msra.mxu0 0.0
  %1766 = vmatprep.subr.mxu0 0.0
  %1767 = vmatpush1.msra.mxu0 0.0
  %1768 = vmatprep.subr.mxu0 0.0
  %1769 = vmatpush1.msra.mxu0 0.0
  %1770 = vmatprep.subr.mxu0 0.0
  %1771 = vmatpush1.msra.mxu0 0.0
  %1772 = vmatprep.subr.mxu0 0.0
  %1773 = vmatpush1.msra.mxu0 0.0
  %1774 = vmatprep.mubr.f32.mxu0 0.0
  %1775 = vmatmul.mubr.f32.gmra.mrb[0].mxu0 %v1705
  %v1776 = vpop.f32.mrb[0].mxu0
  %v1777 = vadd.f32 %v1702, %v1776
  %v1778 = vpop.f32.mrb[0].mxu0
  %1779 = vmatprep.mubr.f32.mxu0 0.0
  %1780 = vmatmul.mubr.f32.gmra.mrb[0].mxu0 %v1708
  %v1781 = vpop.f32.mrb[0].mxu0
  %v1782 = vadd.f32 %v1702, %v1781
  %v1783 = vpop.f32.mrb[0].mxu0
  %1784 = vdwg.mxu0
  %v1785 = vmul.f32 %v1777, 0.5
  %v1786 = vmul.f32 %v1782, 0.5
  %v1787 = vmul.f32 %v1777, 0.044715
  %v1788 = vmul.f32 %v1782, 0.044715
  %v1789 = vmul.f32 %v1787, %v1777
  %v1790 = vmul.f32 %v1788, %v1782
  %v1791 = vmul.f32 %v1789, %v1777
  %v1792 = vmul.f32 %v1790, %v1782
  %v1793 = vadd.f32 %v1777, %v1791
  %v1794 = vadd.f32 %v1782, %v1792
  %v1795 = vmul.f32 %v1793, 0.7978846
  %v1796 = vmul.f32 %v1794, 0.7978846
  %v1797 = vtanh.pop %v1795
  %v1798 = vtanh.pop %v1796
  %v1799 = vadd.f32 %v1797, 1.0
  %v1800 = vadd.f32 %v1798, 1.0
  %v1801 = vmul.f32 %v1785, %v1799
  %v1802 = vmul.f32 %v1786, %v1800
  %v1803 = vld [vmem:[%s11] sm:$0xff]
  %v1804 = vld [vmem:[%s11 + $0x8] sm:$0xff]
  %v1805 = vld [vmem:[%s11 + $0x10] sm:$0xff]
  %v1806 = vld [vmem:[%s11 + $0x18] sm:$0xff]
  %v1807 = vld [vmem:[%s11 + $0x20] sm:$0xff]
  %v1808 = vld [vmem:[%s11 + $0x28] sm:$0xff]
  %v1809 = vld [vmem:[%s11 + $0x30] sm:$0xff]
  %v1810 = vld [vmem:[%s11 + $0x38] sm:$0xff]
  %v1811 = vld [vmem:[%s12] sm:$0x1]
  %v1813 = vlaneseq
  %v1814 = vshrl.u32 %v1813, 7
  %v1815 = vsub.s32 0, %v1814
  %v1816 = vrot.slane %v1811, %v1815
  %vm1818 = vcmask 523264
  %v1820 = vsel %vm1818, %v1801, 0
  %v1823 = vsel %vm1818, %v1802, 0
  %1825 = vmatprep.subr.mxu0 0.0
  %1826 = vmatpush1.msra.mxu0 %v1803
  %1827 = vmatprep.subr.mxu0 0.0
  %1828 = vmatpush1.msra.mxu0 %v1804
  %1829 = vmatprep.subr.mxu0 0.0
  %1830 = vmatpush1.msra.mxu0 %v1805
  %1831 = vmatprep.subr.mxu0 0.0
  %1832 = vmatpush1.msra.mxu0 %v1806
  %1833 = vmatprep.subr.mxu0 0.0
  %1834 = vmatpush1.msra.mxu0 %v1807
  %1835 = vmatprep.subr.mxu0 0.0
  %1836 = vmatpush1.msra.mxu0 %v1808
  %1837 = vmatprep.subr.mxu0 0.0
  %1838 = vmatpush1.msra.mxu0 %v1809
  %1839 = vmatprep.subr.mxu0 0.0
  %1840 = vmatpush1.msra.mxu0 %v1810
  %1841 = vmatprep.subr.mxu0 0.0
  %1842 = vmatpush1.msra.mxu0 0.0
  %1843 = vmatprep.subr.mxu0 0.0
  %1844 = vmatpush1.msra.mxu0 0.0
  %1845 = vmatprep.subr.mxu0 0.0
  %1846 = vmatpush1.msra.mxu0 0.0
  %1847 = vmatprep.subr.mxu0 0.0
  %1848 = vmatpush1.msra.mxu0 0.0
  %1849 = vmatprep.subr.mxu0 0.0
  %1850 = vmatpush1.msra.mxu0 0.0
  %1851 = vmatprep.subr.mxu0 0.0
  %1852 = vmatpush1.msra.mxu0 0.0
  %1853 = vmatprep.subr.mxu0 0.0
  %1854 = vmatpush1.msra.mxu0 0.0
  %1855 = vmatprep.subr.mxu0 0.0
  %1856 = vmatpush1.msra.mxu0 0.0
  %1857 = vmatprep.subr.mxu0 0.0
  %1858 = vmatpush1.msra.mxu0 0.0
  %1859 = vmatprep.subr.mxu0 0.0
  %1860 = vmatpush1.msra.mxu0 0.0
  %1861 = vmatprep.subr.mxu0 0.0
  %1862 = vmatpush1.msra.mxu0 0.0
  %1863 = vmatprep.subr.mxu0 0.0
  %1864 = vmatpush1.msra.mxu0 0.0
  %1865 = vmatprep.subr.mxu0 0.0
  %1866 = vmatpush1.msra.mxu0 0.0
  %1867 = vmatprep.subr.mxu0 0.0
  %1868 = vmatpush1.msra.mxu0 0.0
  %1869 = vmatprep.subr.mxu0 0.0
  %1870 = vmatpush1.msra.mxu0 0.0
  %1871 = vmatprep.subr.mxu0 0.0
  %1872 = vmatpush1.msra.mxu0 0.0
  %1873 = vmatprep.subr.mxu0 0.0
  %1874 = vmatpush1.msra.mxu0 0.0
  %1875 = vmatprep.subr.mxu0 0.0
  %1876 = vmatpush1.msra.mxu0 0.0
  %1877 = vmatprep.subr.mxu0 0.0
  %1878 = vmatpush1.msra.mxu0 0.0
  %1879 = vmatprep.subr.mxu0 0.0
  %1880 = vmatpush1.msra.mxu0 0.0
  %1881 = vmatprep.subr.mxu0 0.0
  %1882 = vmatpush1.msra.mxu0 0.0
  %1883 = vmatprep.subr.mxu0 0.0
  %1884 = vmatpush1.msra.mxu0 0.0
  %1885 = vmatprep.subr.mxu0 0.0
  %1886 = vmatpush1.msra.mxu0 0.0
  %1887 = vmatprep.subr.mxu0 0.0
  %1888 = vmatpush1.msra.mxu0 0.0
  %1889 = vmatprep.mubr.f32.mxu0 0.0
  %1890 = vmatmul.mubr.f32.gmra.mrb[0].mxu0 %v1820
  %v1891 = vpop.f32.mrb[0].mxu0
  %v1892 = vadd.f32 %v1816, %v1891
  %v1893 = vpop.f32.mrb[0].mxu0
  %1894 = vmatprep.mubr.f32.mxu0 0.0
  %1895 = vmatmul.mubr.f32.gmra.mrb[0].mxu0 %v1823
  %v1896 = vpop.f32.mrb[0].mxu0
  %v1897 = vadd.f32 %v1816, %v1896
  %v1898 = vpop.f32.mrb[0].mxu0
  %1899 = vdwg.mxu0
  %v1900 = vadd.f32 %v1892, %v1691
  %v1901 = vadd.f32 %v1897, %v1692
  %v1902 = vld [vmem:[%s13] sm:$0x1]
  %v1903 = vld [vmem:[%s14] sm:$0x1]
  %v1904 = vsel %vm60, %v1900, 0.0
  %1905 = vadd.xlane.f32.xlu0 %v1904
  %v1906 = vpop.xlane.xlu0 %1905
  %v1907 = vsel %vm60, %v1901, 0.0
  %1908 = vadd.xlane.f32.xlu0 %v1907
  %v1909 = vpop.xlane.xlu0 %1908
  %v1910 = vmul.f32 %v1906, %v67
  %v1911 = vmul.f32 %v1909, %v67
  %v1912 = vsub.f32 %v1900, %v1910
  %v1913 = vsub.f32 %v1901, %v1911
  %v1914 = vmul.f32 %v1912, %v1912
  %v1915 = vmul.f32 %v1913, %v1913
  %v1916 = vsel %vm60, %v1914, 0.0
  %1917 = vadd.xlane.f32.xlu0 %v1916
  %v1918 = vpop.xlane.xlu0 %1917
  %v1919 = vsel %vm60, %v1915, 0.0
  %1920 = vadd.xlane.f32.xlu0 %v1919
  %v1921 = vpop.xlane.xlu0 %1920
  %v1922 = vmul.f32 %v1918, %v67
  %v1923 = vmul.f32 %v1921, %v67
  %v1924 = vadd.f32 %v1922, 1e-12
  %v1925 = vadd.f32 %v1923, 1e-12
  %v1926 = vrsqrt.pop %v1924
  %v1927 = vrsqrt.pop %v1925
  %v1928 = vmul.f32 %v1912, %v1926
  %v1929 = vmul.f32 %v1913, %v1927
  %v1931 = vlaneseq
  %v1932 = vshrl.u32 %v1931, 7
  %v1933 = vsub.s32 0, %v1932
  %v1934 = vrot.slane %v1902, %v1933
  %v1936 = vmul.f32 %v1928, %v1934
  %v1937 = vmul.f32 %v1929, %v1934
  %v1939 = vlaneseq
  %v1940 = vshrl.u32 %v1939, 7
  %v1941 = vsub.s32 0, %v1940
  %v1942 = vrot.slane %v1903, %v1941
  %v1944 = vadd.f32 %v1936, %v1942
  %v1945 = vadd.f32 %v1937, %v1942
  %s1946 = scalar_lea.vmem %s3, 32
  %v1947 = vld [vmem:[%s1946] sm:$0xff]
  %v1948 = vld [vmem:[%s1946 + $0x8] sm:$0xff]
  %v1949 = vld [vmem:[%s1946 + $0x10] sm:$0xff]
  %v1950 = vld [vmem:[%s1946 + $0x18] sm:$0xff]
  %s1951 = scalar_lea.vmem %s4, 1
  %v1952 = vld [vmem:[%s1951] sm:$0x1]
  %v1954 = vlaneseq
  %v1955 = vshrl.u32 %v1954, 7
  %v1956 = vsub.s32 0, %v1955
  %v1957 = vrot.slane %v1952, %v1956
  %v1960 = vsel %vm60, %v1944, 0
  %v1963 = vsel %vm60, %v1945, 0
  %1965 = vmatprep.subr.mxu0 0.0
  %1966 = vmatpush1.msra.mxu0 %v1947
  %1967 = vmatprep.subr.mxu0 0.0
  %1968 = vmatpush1.msra.mxu0 %v1948
  %1969 = vmatprep.subr.mxu0 0.0
  %1970 = vmatpush1.msra.mxu0 %v1949
  %1971 = vmatprep.subr.mxu0 0.0
  %1972 = vmatpush1.msra.mxu0 %v1950
  %1973 = vmatprep.subr.mxu0 0.0
  %1974 = vmatpush1.msra.mxu0 0.0
  %1975 = vmatprep.subr.mxu0 0.0
  %1976 = vmatpush1.msra.mxu0 0.0
  %1977 = vmatprep.subr.mxu0 0.0
  %1978 = vmatpush1.msra.mxu0 0.0
  %1979 = vmatprep.subr.mxu0 0.0
  %1980 = vmatpush1.msra.mxu0 0.0
  %1981 = vmatprep.subr.mxu0 0.0
  %1982 = vmatpush1.msra.mxu0 0.0
  %1983 = vmatprep.subr.mxu0 0.0
  %1984 = vmatpush1.msra.mxu0 0.0
  %1985 = vmatprep.subr.mxu0 0.0
  %1986 = vmatpush1.msra.mxu0 0.0
  %1987 = vmatprep.subr.mxu0 0.0
  %1988 = vmatpush1.msra.mxu0 0.0
  %1989 = vmatprep.subr.mxu0 0.0
  %1990 = vmatpush1.msra.mxu0 0.0
  %1991 = vmatprep.subr.mxu0 0.0
  %1992 = vmatpush1.msra.mxu0 0.0
  %1993 = vmatprep.subr.mxu0 0.0
  %1994 = vmatpush1.msra.mxu0 0.0
  %1995 = vmatprep.subr.mxu0 0.0
  %1996 = vmatpush1.msra.mxu0 0.0
  %1997 = vmatprep.subr.mxu0 0.0
  %1998 = vmatpush1.msra.mxu0 0.0
  %1999 = vmatprep.subr.mxu0 0.0
  %2000 = vmatpush1.msra.mxu0 0.0
  %2001 = vmatprep.subr.mxu0 0.0
  %2002 = vmatpush1.msra.mxu0 0.0
  %2003 = vmatprep.subr.mxu0 0.0
  %2004 = vmatpush1.msra.mxu0 0.0
  %2005 = vmatprep.subr.mxu0 0.0
  %2006 = vmatpush1.msra.mxu0 0.0
  %2007 = vmatprep.subr.mxu0 0.0
  %2008 = vmatpush1.msra.mxu0 0.0
  %2009 = vmatprep.subr.mxu0 0.0
  %2010 = vmatpush1.msra.mxu0 0.0
  %2011 = vmatprep.subr.mxu0 0.0
  %2012 = vmatpush1.msra.mxu0 0.0
  %2013 = vmatprep.subr.mxu0 0.0
  %2014 = vmatpush1.msra.mxu0 0.0
  %2015 = vmatprep.subr.mxu0 0.0
  %2016 = vmatpush1.msra.mxu0 0.0
  %2017 = vmatprep.subr.mxu0 0.0
  %2018 = vmatpush1.msra.mxu0 0.0
  %2019 = vmatprep.subr.mxu0 0.0
  %2020 = vmatpush1.msra.mxu0 0.0
  %2021 = vmatprep.subr.mxu0 0.0
  %2022 = vmatpush1.msra.mxu0 0.0
  %2023 = vmatprep.subr.mxu0 0.0
  %2024 = vmatpush1.msra.mxu0 0.0
  %2025 = vmatprep.subr.mxu0 0.0
  %2026 = vmatpush1.msra.mxu0 0.0
  %2027 = vmatprep.subr.mxu0 0.0
  %2028 = vmatpush1.msra.mxu0 0.0
  %2029 = vmatprep.mubr.f32.mxu0 0.0
  %2030 = vmatmul.mubr.f32.gmra.mrb[0].mxu0 %v1960
  %v2031 = vpop.f32.mrb[0].mxu0
  %v2032 = vadd.f32 %v1957, %v2031
  %v2033 = vpop.f32.mrb[0].mxu0
  %2034 = vmatprep.mubr.f32.mxu0 0.0
  %2035 = vmatmul.mubr.f32.gmra.mrb[0].mxu0 %v1963
  %v2036 = vpop.f32.mrb[0].mxu0
  %v2037 = vadd.f32 %v1957, %v2036
  %v2038 = vpop.f32.mrb[0].mxu0
  %2039 = vdwg.mxu0
  %2041 = vrot.lane.b32.xlu0 %v2032, 96
  %v2042 = vpop.permute.xlu0 %2041
  %v2043 = vsel %vm199, %v2032, 0
  %v2045 = vsel %vm199, %v2042, 0
  %2047 = vmatprep.subr.mxu0 0.0
  %2048 = vmatpush1.xpose.msra.mxu0 %v2045
  %2049 = vmatprep.subr.mxu0 0.0
  %2050 = vmatpush1.xpose.msra.mxu0 0.0
  %2051 = vmatprep.subr.mxu0 0.0
  %2052 = vmatpush1.xpose.msra.mxu0 0.0
  %2053 = vmatprep.subr.mxu0 0.0
  %2054 = vmatpush1.xpose.msra.mxu0 0.0
  %2055 = vmatprep.subr.mxu0 0.0
  %2056 = vmatpush1.xpose.msra.mxu0 0.0
  %2057 = vmatprep.subr.mxu0 0.0
  %2058 = vmatpush1.xpose.msra.mxu0 0.0
  %2059 = vmatprep.subr.mxu0 0.0
  %2060 = vmatpush1.xpose.msra.mxu0 0.0
  %2061 = vmatprep.subr.mxu0 0.0
  %2062 = vmatpush1.xpose.msra.mxu0 0.0
  %2063 = vmatprep.subr.mxu0 0.0
  %2064 = vmatpush1.xpose.msra.mxu0 0.0
  %2065 = vmatprep.subr.mxu0 0.0
  %2066 = vmatpush1.xpose.msra.mxu0 0.0
  %2067 = vmatprep.subr.mxu0 0.0
  %2068 = vmatpush1.xpose.msra.mxu0 0.0
  %2069 = vmatprep.subr.mxu0 0.0
  %2070 = vmatpush1.xpose.msra.mxu0 0.0
  %2071 = vmatprep.subr.mxu0 0.0
  %2072 = vmatpush1.xpose.msra.mxu0 0.0
  %2073 = vmatprep.subr.mxu0 0.0
  %2074 = vmatpush1.xpose.msra.mxu0 0.0
  %2075 = vmatprep.subr.mxu0 0.0
  %2076 = vmatpush1.xpose.msra.mxu0 0.0
  %2077 = vmatprep.subr.mxu0 0.0
  %2078 = vmatpush1.xpose.msra.mxu0 0.0
  %2079 = vmatprep.subr.mxu0 0.0
  %2080 = vmatpush1.xpose.msra.mxu0 0.0
  %2081 = vmatprep.subr.mxu0 0.0
  %2082 = vmatpush1.xpose.msra.mxu0 0.0
  %2083 = vmatprep.subr.mxu0 0.0
  %2084 = vmatpush1.xpose.msra.mxu0 0.0
  %2085 = vmatprep.subr.mxu0 0.0
  %2086 = vmatpush1.xpose.msra.mxu0 0.0
  %2087 = vmatprep.subr.mxu0 0.0
  %2088 = vmatpush1.xpose.msra.mxu0 0.0
  %2089 = vmatprep.subr.mxu0 0.0
  %2090 = vmatpush1.xpose.msra.mxu0 0.0
  %2091 = vmatprep.subr.mxu0 0.0
  %2092 = vmatpush1.xpose.msra.mxu0 0.0
  %2093 = vmatprep.subr.mxu0 0.0
  %2094 = vmatpush1.xpose.msra.mxu0 0.0
  %2095 = vmatprep.subr.mxu0 0.0
  %2096 = vmatpush1.xpose.msra.mxu0 0.0
  %2097 = vmatprep.subr.mxu0 0.0
  %2098 = vmatpush1.xpose.msra.mxu0 0.0
  %2099 = vmatprep.subr.mxu0 0.0
  %2100 = vmatpush1.xpose.msra.mxu0 0.0
  %2101 = vmatprep.subr.mxu0 0.0
  %2102 = vmatpush1.xpose.msra.mxu0 0.0
  %2103 = vmatprep.subr.mxu0 0.0
  %2104 = vmatpush1.xpose.msra.mxu0 0.0
  %2105 = vmatprep.subr.mxu0 0.0
  %2106 = vmatpush1.xpose.msra.mxu0 0.0
  %2107 = vmatprep.subr.mxu0 0.0
  %2108 = vmatpush1.xpose.msra.mxu0 0.0
  %2109 = vmatprep.subr.mxu0 0.0
  %2110 = vmatpush1.xpose.msra.mxu0 0.0
  %2111 = vmatprep.mubr.f32.mxu0 0.0
  %2112 = vmatmul.mubr.f32.gmra.mrb[0].mxu0 %v2043
  %v2113 = vpop.f32.mrb[0].mxu0
  %v2114 = vadd.f32 0.0, %v2113
  %v2115 = vpop.f32.mrb[0].mxu0
  %2116 = vdwg.mxu0
  %v2117 = vmul.f32 %v2114, 0.35355338
  %v2118 = vsel %vm199, %v2117, -inf
  %2119 = vmax.xlane.f32.xlu0 %v2118
  %v2120 = vpop.xlane.xlu0 %2119
  %v2121 = vsub.f32 %v2117, %v2120
  %v2122 = vmul.f32 %v2121, 1.442695
  %v2123 = vpow.pop %v2122
  %v2124 = vsel %vm199, %v2123, 0.0
  %2125 = vadd.xlane.f32.xlu0 %v2124
  %v2126 = vpop.xlane.xlu0 %2125
  %v2127 = vrcp.pop %v2126
  %v2128 = vmul.f32 %v2123, %v2127
  %2129 = vrot.lane.b32.xlu0 %v2032, 64
  %v2130 = vpop.permute.xlu0 %2129
  %v2133 = vsel %vm199, %v2128, 0
  %2135 = vmatprep.subr.mxu0 0.0
  %2136 = vmatpush1.msra.mxu0 %v2130
  %2137 = vmatprep.subr.mxu0 0.0
  %2138 = vmatpush1.msra.mxu0 0.0
  %2139 = vmatprep.subr.mxu0 0.0
  %2140 = vmatpush1.msra.mxu0 0.0
  %2141 = vmatprep.subr.mxu0 0.0
  %2142 = vmatpush1.msra.mxu0 0.0
  %2143 = vmatprep.subr.mxu0 0.0
  %2144 = vmatpush1.msra.mxu0 0.0
  %2145 = vmatprep.subr.mxu0 0.0
  %2146 = vmatpush1.msra.mxu0 0.0
  %2147 = vmatprep.subr.mxu0 0.0
  %2148 = vmatpush1.msra.mxu0 0.0
  %2149 = vmatprep.subr.mxu0 0.0
  %2150 = vmatpush1.msra.mxu0 0.0
  %2151 = vmatprep.subr.mxu0 0.0
  %2152 = vmatpush1.msra.mxu0 0.0
  %2153 = vmatprep.subr.mxu0 0.0
  %2154 = vmatpush1.msra.mxu0 0.0
  %2155 = vmatprep.subr.mxu0 0.0
  %2156 = vmatpush1.msra.mxu0 0.0
  %2157 = vmatprep.subr.mxu0 0.0
  %2158 = vmatpush1.msra.mxu0 0.0
  %2159 = vmatprep.subr.mxu0 0.0
  %2160 = vmatpush1.msra.mxu0 0.0
  %2161 = vmatprep.subr.mxu0 0.0
  %2162 = vmatpush1.msra.mxu0 0.0
  %2163 = vmatprep.subr.mxu0 0.0
  %2164 = vmatpush1.msra.mxu0 0.0
  %2165 = vmatprep.subr.mxu0 0.0
  %2166 = vmatpush1.msra.mxu0 0.0
  %2167 = vmatprep.subr.mxu0 0.0
  %2168 = vmatpush1.msra.mxu0 0.0
  %2169 = vmatprep.subr.mxu0 0.0
  %2170 = vmatpush1.msra.mxu0 0.0
  %2171 = vmatprep.subr.mxu0 0.0
  %2172 = vmatpush1.msra.mxu0 0.0
  %2173 = vmatprep.subr.mxu0 0.0
  %2174 = vmatpush1.msra.mxu0 0.0
  %2175 = vmatprep.subr.mxu0 0.0
  %2176 = vmatpush1.msra.mxu0 0.0
  %2177 = vmatprep.subr.mxu0 0.0
  %2178 = vmatpush1.msra.mxu0 0.0
  %2179 = vmatprep.subr.mxu0 0.0
  %2180 = vmatpush1.msra.mxu0 0.0
  %2181 = vmatprep.subr.mxu0 0.0
  %2182 = vmatpush1.msra.mxu0 0.0
  %2183 = vmatprep.subr.mxu0 0.0
  %2184 = vmatpush1.msra.mxu0 0.0
  %2185 = vmatprep.subr.mxu0 0.0
  %2186 = vmatpush1.msra.mxu0 0.0
  %2187 = vmatprep.subr.mxu0 0.0
  %2188 = vmatpush1.msra.mxu0 0.0
  %2189 = vmatprep.subr.mxu0 0.0
  %2190 = vmatpush1.msra.mxu0 0.0
  %2191 = vmatprep.subr.mxu0 0.0
  %2192 = vmatpush1.msra.mxu0 0.0
  %2193 = vmatprep.subr.mxu0 0.0
  %2194 = vmatpush1.msra.mxu0 0.0
  %2195 = vmatprep.subr.mxu0 0.0
  %2196 = vmatpush1.msra.mxu0 0.0
  %2197 = vmatprep.subr.mxu0 0.0
  %2198 = vmatpush1.msra.mxu0 0.0
  %2199 = vmatprep.mubr.f32.mxu0 0.0
  %2200 = vmatmul.mubr.f32.gmra.mrb[0].mxu0 %v2133
  %v2201 = vpop.f32.mrb[0].mxu0
  %v2202 = vadd.f32 0.0, %v2201
  %v2203 = vpop.f32.mrb[0].mxu0
  %2204 = vdwg.mxu0
  %2205 = vrot.lane.b32.xlu0 %v2032, 120
  %v2206 = vpop.permute.xlu0 %2205
  %2207 = vrot.lane.b32.xlu0 %v2032, 88
  %v2208 = vpop.permute.xlu0 %2207
  %v2209 = vsel %vm199, %v2206, 0
  %v2211 = vsel %vm199, %v2208, 0
  %2213 = vmatprep.subr.mxu0 0.0
  %2214 = vmatpush1.xpose.msra.mxu0 %v2211
  %2215 = vmatprep.subr.mxu0 0.0
  %2216 = vmatpush1.xpose.msra.mxu0 0.0
  %2217 = vmatprep.subr.mxu0 0.0
  %2218 = vmatpush1.xpose.msra.mxu0 0.0
  %2219 = vmatprep.subr.mxu0 0.0
  %2220 = vmatpush1.xpose.msra.mxu0 0.0
  %2221 = vmatprep.subr.mxu0 0.0
  %2222 = vmatpush1.xpose.msra.mxu0 0.0
  %2223 = vmatprep.subr.mxu0 0.0
  %2224 = vmatpush1.xpose.msra.mxu0 0.0
  %2225 = vmatprep.subr.mxu0 0.0
  %2226 = vmatpush1.xpose.msra.mxu0 0.0
  %2227 = vmatprep.subr.mxu0 0.0
  %2228 = vmatpush1.xpose.msra.mxu0 0.0
  %2229 = vmatprep.subr.mxu0 0.0
  %2230 = vmatpush1.xpose.msra.mxu0 0.0
  %2231 = vmatprep.subr.mxu0 0.0
  %2232 = vmatpush1.xpose.msra.mxu0 0.0
  %2233 = vmatprep.subr.mxu0 0.0
  %2234 = vmatpush1.xpose.msra.mxu0 0.0
  %2235 = vmatprep.subr.mxu0 0.0
  %2236 = vmatpush1.xpose.msra.mxu0 0.0
  %2237 = vmatprep.subr.mxu0 0.0
  %2238 = vmatpush1.xpose.msra.mxu0 0.0
  %2239 = vmatprep.subr.mxu0 0.0
  %2240 = vmatpush1.xpose.msra.mxu0 0.0
  %2241 = vmatprep.subr.mxu0 0.0
  %2242 = vmatpush1.xpose.msra.mxu0 0.0
  %2243 = vmatprep.subr.mxu0 0.0
  %2244 = vmatpush1.xpose.msra.mxu0 0.0
  %2245 = vmatprep.subr.mxu0 0.0
  %2246 = vmatpush1.xpose.msra.mxu0 0.0
  %2247 = vmatprep.subr.mxu0 0.0
  %2248 = vmatpush1.xpose.msra.mxu0 0.0
  %2249 = vmatprep.subr.mxu0 0.0
  %2250 = vmatpush1.xpose.msra.mxu0 0.0
  %2251 = vmatprep.subr.mxu0 0.0
  %2252 = vmatpush1.xpose.msra.mxu0 0.0
  %2253 = vmatprep.subr.mxu0 0.0
  %2254 = vmatpush1.xpose.msra.mxu0 0.0
  %2255 = vmatprep.subr.mxu0 0.0
  %2256 = vmatpush1.xpose.msra.mxu0 0.0
  %2257 = vmatprep.subr.mxu0 0.0
  %2258 = vmatpush1.xpose.msra.mxu0 0.0
  %2259 = vmatprep.subr.mxu0 0.0
  %2260 = vmatpush1.xpose.msra.mxu0 0.0
  %2261 = vmatprep.subr.mxu0 0.0
  %2262 = vmatpush1.xpose.msra.mxu0 0.0
  %2263 = vmatprep.subr.mxu0 0.0
  %2264 = vmatpush1.xpose.msra.mxu0 0.0
  %2265 = vmatprep.subr.mxu0 0.0
  %2266 = vmatpush1.xpose.msra.mxu0 0.0
  %2267 = vmatprep.subr.mxu0 0.0
  %2268 = vmatpush1.xpose.msra.mxu0 0.0
  %2269 = vmatprep.subr.mxu0 0.0
  %2270 = vmatpush1.xpose.msra.mxu0 0.0
  %2271 = vmatprep.subr.mxu0 0.0
  %2272 = vmatpush1.xpose.msra.mxu0 0.0
  %2273 = vmatprep.subr.mxu0 0.0
  %2274 = vmatpush1.xpose.msra.mxu0 0.0
  %2275 = vmatprep.subr.mxu0 0.0
  %2276 = vmatpush1.xpose.msra.mxu0 0.0
  %2277 = vmatprep.mubr.f32.mxu0 0.0
  %2278 = vmatmul.mubr.f32.gmra.mrb[0].mxu0 %v2209
  %v2279 = vpop.f32.mrb[0].mxu0
  %v2280 = vadd.f32 0.0, %v2279
  %v2281 = vpop.f32.mrb[0].mxu0
  %2282 = vdwg.mxu0
  %v2283 = vmul.f32 %v2280, 0.35355338
  %v2284 = vsel %vm199, %v2283, -inf
  %2285 = vmax.xlane.f32.xlu0 %v2284
  %v2286 = vpop.xlane.xlu0 %2285
  %v2287 = vsub.f32 %v2283, %v2286
  %v2288 = vmul.f32 %v2287, 1.442695
  %v2289 = vpow.pop %v2288
  %v2290 = vsel %vm199, %v2289, 0.0
  %2291 = vadd.xlane.f32.xlu0 %v2290
  %v2292 = vpop.xlane.xlu0 %2291
  %v2293 = vrcp.pop %v2292
  %v2294 = vmul.f32 %v2289, %v2293
  %2295 = vrot.lane.b32.xlu0 %v2032, 56
  %v2296 = vpop.permute.xlu0 %2295
  %v2299 = vsel %vm199, %v2294, 0
  %2301 = vmatprep.subr.mxu0 0.0
  %2302 = vmatpush1.msra.mxu0 %v2296
  %2303 = vmatprep.subr.mxu0 0.0
  %2304 = vmatpush1.msra.mxu0 0.0
  %2305 = vmatprep.subr.mxu0 0.0
  %2306 = vmatpush1.msra.mxu0 0.0
  %2307 = vmatprep.subr.mxu0 0.0
  %2308 = vmatpush1.msra.mxu0 0.0
  %2309 = vmatprep.subr.mxu0 0.0
  %2310 = vmatpush1.msra.mxu0 0.0
  %2311 = vmatprep.subr.mxu0 0.0
  %2312 = vmatpush1.msra.mxu0 0.0
  %2313 = vmatprep.subr.mxu0 0.0
  %2314 = vmatpush1.msra.mxu0 0.0
  %2315 = vmatprep.subr.mxu0 0.0
  %2316 = vmatpush1.msra.mxu0 0.0
  %2317 = vmatprep.subr.mxu0 0.0
  %2318 = vmatpush1.msra.mxu0 0.0
  %2319 = vmatprep.subr.mxu0 0.0
  %2320 = vmatpush1.msra.mxu0 0.0
  %2321 = vmatprep.subr.mxu0 0.0
  %2322 = vmatpush1.msra.mxu0 0.0
  %2323 = vmatprep.subr.mxu0 0.0
  %2324 = vmatpush1.msra.mxu0 0.0
  %2325 = vmatprep.subr.mxu0 0.0
  %2326 = vmatpush1.msra.mxu0 0.0
  %2327 = vmatprep.subr.mxu0 0.0
  %2328 = vmatpush1.msra.mxu0 0.0
  %2329 = vmatprep.subr.mxu0 0.0
  %2330 = vmatpush1.msra.mxu0 0.0
  %2331 = vmatprep.subr.mxu0 0.0
  %2332 = vmatpush1.msra.mxu0 0.0
  %2333 = vmatprep.subr.mxu0 0.0
  %2334 = vmatpush1.msra.mxu0 0.0
  %2335 = vmatprep.subr.mxu0 0.0
  %2336 = vmatpush1.msra.mxu0 0.0
  %2337 = vmatprep.subr.mxu0 0.0
  %2338 = vmatpush1.msra.mxu0 0.0
  %2339 = vmatprep.subr.mxu0 0.0
  %2340 = vmatpush1.msra.mxu0 0.0
  %2341 = vmatprep.subr.mxu0 0.0
  %2342 = vmatpush1.msra.mxu0 0.0
  %2343 = vmatprep.subr.mxu0 0.0
  %2344 = vmatpush1.msra.mxu0 0.0
  %2345 = vmatprep.subr.mxu0 0.0
  %2346 = vmatpush1.msra.mxu0 0.0
  %2347 = vmatprep.subr.mxu0 0.0
  %2348 = vmatpush1.msra.mxu0 0.0
  %2349 = vmatprep.subr.mxu0 0.0
  %2350 = vmatpush1.msra.mxu0 0.0
  %2351 = vmatprep.subr.mxu0 0.0
  %2352 = vmatpush1.msra.mxu0 0.0
  %2353 = vmatprep.subr.mxu0 0.0
  %2354 = vmatpush1.msra.mxu0 0.0
  %2355 = vmatprep.subr.mxu0 0.0
  %2356 = vmatpush1.msra.mxu0 0.0
  %2357 = vmatprep.subr.mxu0 0.0
  %2358 = vmatpush1.msra.mxu0 0.0
  %2359 = vmatprep.subr.mxu0 0.0
  %2360 = vmatpush1.msra.mxu0 0.0
  %2361 = vmatprep.subr.mxu0 0.0
  %2362 = vmatpush1.msra.mxu0 0.0
  %2363 = vmatprep.subr.mxu0 0.0
  %2364 = vmatpush1.msra.mxu0 0.0
  %2365 = vmatprep.mubr.f32.mxu0 0.0
  %2366 = vmatmul.mubr.f32.gmra.mrb[0].mxu0 %v2299
  %v2367 = vpop.f32.mrb[0].mxu0
  %v2368 = vadd.f32 0.0, %v2367
  %v2369 = vpop.f32.mrb[0].mxu0
  %2370 = vdwg.mxu0
  %2371 = vrot.lane.b32.xlu0 %v2032, 112
  %v2372 = vpop.permute.xlu0 %2371
  %2373 = vrot.lane.b32.xlu0 %v2032, 80
  %v2374 = vpop.permute.xlu0 %2373
  %v2375 = vsel %vm199, %v2372, 0
  %v2377 = vsel %vm199, %v2374, 0
  %2379 = vmatprep.subr.mxu0 0.0
  %2380 = vmatpush1.xpose.msra.mxu0 %v2377
  %2381 = vmatprep.subr.mxu0 0.0
  %2382 = vmatpush1.xpose.msra.mxu0 0.0
  %2383 = vmatprep.subr.mxu0 0.0
  %2384 = vmatpush1.xpose.msra.mxu0 0.0
  %2385 = vmatprep.subr.mxu0 0.0
  %2386 = vmatpush1.xpose.msra.mxu0 0.0
  %2387 = vmatprep.subr.mxu0 0.0
  %2388 = vmatpush1.xpose.msra.mxu0 0.0
  %2389 = vmatprep.subr.mxu0 0.0
  %2390 = vmatpush1.xpose.msra.mxu0 0.0
  %2391 = vmatprep.subr.mxu0 0.0
  %2392 = vmatpush1.xpose.msra.mxu0 0.0
  %2393 = vmatprep.subr.mxu0 0.0
  %2394 = vmatpush1.xpose.msra.mxu0 0.0
  %2395 = vmatprep.subr.mxu0 0.0
  %2396 = vmatpush1.xpose.msra.mxu0 0.0
  %2397 = vmatprep.subr.mxu0 0.0
  %2398 = vmatpush1.xpose.msra.mxu0 0.0
  %2399 = vmatprep.subr.mxu0 0.0
  %2400 = vmatpush1.xpose.msra.mxu0 0.0
  %2401 = vmatprep.subr.mxu0 0.0
  %2402 = vmatpush1.xpose.msra.mxu0 0.0
  %2403 = vmatprep.subr.mxu0 0.0
  %2404 = vmatpush1.xpose.msra.mxu0 0.0
  %2405 = vmatprep.subr.mxu0 0.0
  %2406 = vmatpush1.xpose.msra.mxu0 0.0
  %2407 = vmatprep.subr.mxu0 0.0
  %2408 = vmatpush1.xpose.msra.mxu0 0.0
  %2409 = vmatprep.subr.mxu0 0.0
  %2410 = vmatpush1.xpose.msra.mxu0 0.0
  %2411 = vmatprep.subr.mxu0 0.0
  %2412 = vmatpush1.xpose.msra.mxu0 0.0
  %2413 = vmatprep.subr.mxu0 0.0
  %2414 = vmatpush1.xpose.msra.mxu0 0.0
  %2415 = vmatprep.subr.mxu0 0.0
  %2416 = vmatpush1.xpose.msra.mxu0 0.0
  %2417 = vmatprep.subr.mxu0 0.0
  %2418 = vmatpush1.xpose.msra.mxu0 0.0
  %2419 = vmatprep.subr.mxu0 0.0
  %2420 = vmatpush1.xpose.msra.mxu0 0.0
  %2421 = vmatprep.subr.mxu0 0.0
  %2422 = vmatpush1.xpose.msra.mxu0 0.0
  %2423 = vmatprep.subr.mxu0 0.0
  %2424 = vmatpush1.xpose.msra.mxu0 0.0
  %2425 = vmatprep.subr.mxu0 0.0
  %2426 = vmatpush1.xpose.msra.mxu0 0.0
  %2427 = vmatprep.subr.mxu0 0.0
  %2428 = vmatpush1.xpose.msra.mxu0 0.0
  %2429 = vmatprep.subr.mxu0 0.0
  %2430 = vmatpush1.xpose.msra.mxu0 0.0
  %2431 = vmatprep.subr.mxu0 0.0
  %2432 = vmatpush1.xpose.msra.mxu0 0.0
  %2433 = vmatprep.subr.mxu0 0.0
  %2434 = vmatpush1.xpose.msra.mxu0 0.0
  %2435 = vmatprep.subr.mxu0 0.0
  %2436 = vmatpush1.xpose.msra.mxu0 0.0
  %2437 = vmatprep.subr.mxu0 0.0
  %2438 = vmatpush1.xpose.msra.mxu0 0.0
  %2439 = vmatprep.subr.mxu0 0.0
  %2440 = vmatpush1.xpose.msra.mxu0 0.0
  %2441 = vmatprep.subr.mxu0 0.0
  %2442 = vmatpush1.xpose.msra.mxu0 0.0
  %2443 = vmatprep.mubr.f32.mxu0 0.0
  %2444 = vmatmul.mubr.f32.gmra.mrb[0].mxu0 %v2375
  %v2445 = vpop.f32.mrb[0].mxu0
  %v2446 = vadd.f32 0.0, %v2445
  %v2447 = vpop.f32.mrb[0].mxu0
  %2448 = vdwg.mxu0
  %v2449 = vmul.f32 %v2446, 0.35355338
  %v2450 = vsel %vm199, %v2449, -inf
  %2451 = vmax.xlane.f32.xlu0 %v2450
  %v2452 = vpop.xlane.xlu0 %2451
  %v2453 = vsub.f32 %v2449, %v2452
  %v2454 = vmul.f32 %v2453, 1.442695
  %v2455 = vpow.pop %v2454
  %v2456 = vsel %vm199, %v2455, 0.0
  %2457 = vadd.xlane.f32.xlu0 %v2456
  %v2458 = vpop.xlane.xlu0 %2457
  %v2459 = vrcp.pop %v2458
  %v2460 = vmul.f32 %v2455, %v2459
  %2461 = vrot.lane.b32.xlu0 %v2032, 48
  %v2462 = vpop.permute.xlu0 %2461
  %v2465 = vsel %vm199, %v2460, 0
  %2467 = vmatprep.subr.mxu0 0.0
  %2468 = vmatpush1.msra.mxu0 %v2462
  %2469 = vmatprep.subr.mxu0 0.0
  %2470 = vmatpush1.msra.mxu0 0.0
  %2471 = vmatprep.subr.mxu0 0.0
  %2472 = vmatpush1.msra.mxu0 0.0
  %2473 = vmatprep.subr.mxu0 0.0
  %2474 = vmatpush1.msra.mxu0 0.0
  %2475 = vmatprep.subr.mxu0 0.0
  %2476 = vmatpush1.msra.mxu0 0.0
  %2477 = vmatprep.subr.mxu0 0.0
  %2478 = vmatpush1.msra.mxu0 0.0
  %2479 = vmatprep.subr.mxu0 0.0
  %2480 = vmatpush1.msra.mxu0 0.0
  %2481 = vmatprep.subr.mxu0 0.0
  %2482 = vmatpush1.msra.mxu0 0.0
  %2483 = vmatprep.subr.mxu0 0.0
  %2484 = vmatpush1.msra.mxu0 0.0
  %2485 = vmatprep.subr.mxu0 0.0
  %2486 = vmatpush1.msra.mxu0 0.0
  %2487 = vmatprep.subr.mxu0 0.0
  %2488 = vmatpush1.msra.mxu0 0.0
  %2489 = vmatprep.subr.mxu0 0.0
  %2490 = vmatpush1.msra.mxu0 0.0
  %2491 = vmatprep.subr.mxu0 0.0
  %2492 = vmatpush1.msra.mxu0 0.0
  %2493 = vmatprep.subr.mxu0 0.0
  %2494 = vmatpush1.msra.mxu0 0.0
  %2495 = vmatprep.subr.mxu0 0.0
  %2496 = vmatpush1.msra.mxu0 0.0
  %2497 = vmatprep.subr.mxu0 0.0
  %2498 = vmatpush1.msra.mxu0 0.0
  %2499 = vmatprep.subr.mxu0 0.0
  %2500 = vmatpush1.msra.mxu0 0.0
  %2501 = vmatprep.subr.mxu0 0.0
  %2502 = vmatpush1.msra.mxu0 0.0
  %2503 = vmatprep.subr.mxu0 0.0
  %2504 = vmatpush1.msra.mxu0 0.0
  %2505 = vmatprep.subr.mxu0 0.0
  %2506 = vmatpush1.msra.mxu0 0.0
  %2507 = vmatprep.subr.mxu0 0.0
  %2508 = vmatpush1.msra.mxu0 0.0
  %2509 = vmatprep.subr.mxu0 0.0
  %2510 = vmatpush1.msra.mxu0 0.0
  %2511 = vmatprep.subr.mxu0 0.0
  %2512 = vmatpush1.msra.mxu0 0.0
  %2513 = vmatprep.subr.mxu0 0.0
  %2514 = vmatpush1.msra.mxu0 0.0
  %2515 = vmatprep.subr.mxu0 0.0
  %2516 = vmatpush1.msra.mxu0 0.0
  %2517 = vmatprep.subr.mxu0 0.0
  %2518 = vmatpush1.msra.mxu0 0.0
  %2519 = vmatprep.subr.mxu0 0.0
  %2520 = vmatpush1.msra.mxu0 0.0
  %2521 = vmatprep.subr.mxu0 0.0
  %2522 = vmatpush1.msra.mxu0 0.0
  %2523 = vmatprep.subr.mxu0 0.0
  %2524 = vmatpush1.msra.mxu0 0.0
  %2525 = vmatprep.subr.mxu0 0.0
  %2526 = vmatpush1.msra.mxu0 0.0
  %2527 = vmatprep.subr.mxu0 0.0
  %2528 = vmatpush1.msra.mxu0 0.0
  %2529 = vmatprep.subr.mxu0 0.0
  %2530 = vmatpush1.msra.mxu0 0.0
  %2531 = vmatprep.mubr.f32.mxu0 0.0
  %2532 = vmatmul.mubr.f32.gmra.mrb[0].mxu0 %v2465
  %v2533 = vpop.f32.mrb[0].mxu0
  %v2534 = vadd.f32 0.0, %v2533
  %v2535 = vpop.f32.mrb[0].mxu0
  %2536 = vdwg.mxu0
  %2537 = vrot.lane.b32.xlu0 %v2032, 104
  %v2538 = vpop.permute.xlu0 %2537
  %2539 = vrot.lane.b32.xlu0 %v2032, 72
  %v2540 = vpop.permute.xlu0 %2539
  %v2541 = vsel %vm199, %v2538, 0
  %v2543 = vsel %vm199, %v2540, 0
  %2545 = vmatprep.subr.mxu0 0.0
  %2546 = vmatpush1.xpose.msra.mxu0 %v2543
  %2547 = vmatprep.subr.mxu0 0.0
  %2548 = vmatpush1.xpose.msra.mxu0 0.0
  %2549 = vmatprep.subr.mxu0 0.0
  %2550 = vmatpush1.xpose.msra.mxu0 0.0
  %2551 = vmatprep.subr.mxu0 0.0
  %2552 = vmatpush1.xpose.msra.mxu0 0.0
  %2553 = vmatprep.subr.mxu0 0.0
  %2554 = vmatpush1.xpose.msra.mxu0 0.0
  %2555 = vmatprep.subr.mxu0 0.0
  %2556 = vmatpush1.xpose.msra.mxu0 0.0
  %2557 = vmatprep.subr.mxu0 0.0
  %2558 = vmatpush1.xpose.msra.mxu0 0.0
  %2559 = vmatprep.subr.mxu0 0.0
  %2560 = vmatpush1.xpose.msra.mxu0 0.0
  %2561 = vmatprep.subr.mxu0 0.0
  %2562 = vmatpush1.xpose.msra.mxu0 0.0
  %2563 = vmatprep.subr.mxu0 0.0
  %2564 = vmatpush1.xpose.msra.mxu0 0.0
  %2565 = vmatprep.subr.mxu0 0.0
  %2566 = vmatpush1.xpose.msra.mxu0 0.0
  %2567 = vmatprep.subr.mxu0 0.0
  %2568 = vmatpush1.xpose.msra.mxu0 0.0
  %2569 = vmatprep.subr.mxu0 0.0
  %2570 = vmatpush1.xpose.msra.mxu0 0.0
  %2571 = vmatprep.subr.mxu0 0.0
  %2572 = vmatpush1.xpose.msra.mxu0 0.0
  %2573 = vmatprep.subr.mxu0 0.0
  %2574 = vmatpush1.xpose.msra.mxu0 0.0
  %2575 = vmatprep.subr.mxu0 0.0
  %2576 = vmatpush1.xpose.msra.mxu0 0.0
  %2577 = vmatprep.subr.mxu0 0.0
  %2578 = vmatpush1.xpose.msra.mxu0 0.0
  %2579 = vmatprep.subr.mxu0 0.0
  %2580 = vmatpush1.xpose.msra.mxu0 0.0
  %2581 = vmatprep.subr.mxu0 0.0
  %2582 = vmatpush1.xpose.msra.mxu0 0.0
  %2583 = vmatprep.subr.mxu0 0.0
  %2584 = vmatpush1.xpose.msra.mxu0 0.0
  %2585 = vmatprep.subr.mxu0 0.0
  %2586 = vmatpush1.xpose.msra.mxu0 0.0
  %2587 = vmatprep.subr.mxu0 0.0
  %2588 = vmatpush1.xpose.msra.mxu0 0.0
  %2589 = vmatprep.subr.mxu0 0.0
  %2590 = vmatpush1.xpose.msra.mxu0 0.0
  %2591 = vmatprep.subr.mxu0 0.0
  %2592 = vmatpush1.xpose.msra.mxu0 0.0
  %2593 = vmatprep.subr.mxu0 0.0
  %2594 = vmatpush1.xpose.msra.mxu0 0.0
  %2595 = vmatprep.subr.mxu0 0.0
  %2596 = vmatpush1.xpose.msra.mxu0 0.0
  %2597 = vmatprep.subr.mxu0 0.0
  %2598 = vmatpush1.xpose.msra.mxu0 0.0
  %2599 = vmatprep.subr.mxu0 0.0
  %2600 = vmatpush1.xpose.msra.mxu0 0.0
  %2601 = vmatprep.subr.mxu0 0.0
  %2602 = vmatpush1.xpose.msra.mxu0 0.0
  %2603 = vmatprep.subr.mxu0 0.0
  %2604 = vmatpush1.xpose.msra.mxu0 0.0
  %2605 = vmatprep.subr.mxu0 0.0
  %2606 = vmatpush1.xpose.msra.mxu0 0.0
  %2607 = vmatprep.subr.mxu0 0.0
  %2608 = vmatpush1.xpose.msra.mxu0 0.0
  %2609 = vmatprep.mubr.f32.mxu0 0.0
  %2610 = vmatmul.mubr.f32.gmra.mrb[0].mxu0 %v2541
  %v2611 = vpop.f32.mrb[0].mxu0
  %v2612 = vadd.f32 0.0, %v2611
  %v2613 = vpop.f32.mrb[0].mxu0
  %2614 = vdwg.mxu0
  %v2615 = vmul.f32 %v2612, 0.35355338
  %v2616 = vsel %vm199, %v2615, -inf
  %2617 = vmax.xlane.f32.xlu0 %v2616
  %v2618 = vpop.xlane.xlu0 %2617
  %v2619 = vsub.f32 %v2615, %v2618
  %v2620 = vmul.f32 %v2619, 1.442695
  %v2621 = vpow.pop %v2620
  %v2622 = vsel %vm199, %v2621, 0.0
  %2623 = vadd.xlane.f32.xlu0 %v2622
  %v2624 = vpop.xlane.xlu0 %2623
  %v2625 = vrcp.pop %v2624
  %v2626 = vmul.f32 %v2621, %v2625
  %2627 = vrot.lane.b32.xlu0 %v2032, 40
  %v2628 = vpop.permute.xlu0 %2627
  %v2631 = vsel %vm199, %v2626, 0
  %2633 = vmatprep.subr.mxu0 0.0
  %2634 = vmatpush1.msra.mxu0 %v2628
  %2635 = vmatprep.subr.mxu0 0.0
  %2636 = vmatpush1.msra.mxu0 0.0
  %2637 = vmatprep.subr.mxu0 0.0
  %2638 = vmatpush1.msra.mxu0 0.0
  %2639 = vmatprep.subr.mxu0 0.0
  %2640 = vmatpush1.msra.mxu0 0.0
  %2641 = vmatprep.subr.mxu0 0.0
  %2642 = vmatpush1.msra.mxu0 0.0
  %2643 = vmatprep.subr.mxu0 0.0
  %2644 = vmatpush1.msra.mxu0 0.0
  %2645 = vmatprep.subr.mxu0 0.0
  %2646 = vmatpush1.msra.mxu0 0.0
  %2647 = vmatprep.subr.mxu0 0.0
  %2648 = vmatpush1.msra.mxu0 0.0
  %2649 = vmatprep.subr.mxu0 0.0
  %2650 = vmatpush1.msra.mxu0 0.0
  %2651 = vmatprep.subr.mxu0 0.0
  %2652 = vmatpush1.msra.mxu0 0.0
  %2653 = vmatprep.subr.mxu0 0.0
  %2654 = vmatpush1.msra.mxu0 0.0
  %2655 = vmatprep.subr.mxu0 0.0
  %2656 = vmatpush1.msra.mxu0 0.0
  %2657 = vmatprep.subr.mxu0 0.0
  %2658 = vmatpush1.msra.mxu0 0.0
  %2659 = vmatprep.subr.mxu0 0.0
  %2660 = vmatpush1.msra.mxu0 0.0
  %2661 = vmatprep.subr.mxu0 0.0
  %2662 = vmatpush1.msra.mxu0 0.0
  %2663 = vmatprep.subr.mxu0 0.0
  %2664 = vmatpush1.msra.mxu0 0.0
  %2665 = vmatprep.subr.mxu0 0.0
  %2666 = vmatpush1.msra.mxu0 0.0
  %2667 = vmatprep.subr.mxu0 0.0
  %2668 = vmatpush1.msra.mxu0 0.0
  %2669 = vmatprep.subr.mxu0 0.0
  %2670 = vmatpush1.msra.mxu0 0.0
  %2671 = vmatprep.subr.mxu0 0.0
  %2672 = vmatpush1.msra.mxu0 0.0
  %2673 = vmatprep.subr.mxu0 0.0
  %2674 = vmatpush1.msra.mxu0 0.0
  %2675 = vmatprep.subr.mxu0 0.0
  %2676 = vmatpush1.msra.mxu0 0.0
  %2677 = vmatprep.subr.mxu0 0.0
  %2678 = vmatpush1.msra.mxu0 0.0
  %2679 = vmatprep.subr.mxu0 0.0
  %2680 = vmatpush1.msra.mxu0 0.0
  %2681 = vmatprep.subr.mxu0 0.0
  %2682 = vmatpush1.msra.mxu0 0.0
  %2683 = vmatprep.subr.mxu0 0.0
  %2684 = vmatpush1.msra.mxu0 0.0
  %2685 = vmatprep.subr.mxu0 0.0
  %2686 = vmatpush1.msra.mxu0 0.0
  %2687 = vmatprep.subr.mxu0 0.0
  %2688 = vmatpush1.msra.mxu0 0.0
  %2689 = vmatprep.subr.mxu0 0.0
  %2690 = vmatpush1.msra.mxu0 0.0
  %2691 = vmatprep.subr.mxu0 0.0
  %2692 = vmatpush1.msra.mxu0 0.0
  %2693 = vmatprep.subr.mxu0 0.0
  %2694 = vmatpush1.msra.mxu0 0.0
  %2695 = vmatprep.subr.mxu0 0.0
  %2696 = vmatpush1.msra.mxu0 0.0
  %2697 = vmatprep.mubr.f32.mxu0 0.0
  %2698 = vmatmul.mubr.f32.gmra.mrb[0].mxu0 %v2631
  %v2699 = vpop.f32.mrb[0].mxu0
  %v2700 = vadd.f32 0.0, %v2699
  %v2701 = vpop.f32.mrb[0].mxu0
  %2702 = vdwg.mxu0
  %2704 = vrot.lane.b32.xlu0 %v2368, 8
  %v2705 = vpop.permute.xlu0 %2704
  %2708 = vrot.lane.b32.xlu0 %v2534, 16
  %v2709 = vpop.permute.xlu0 %2708
  %2712 = vrot.lane.b32.xlu0 %v2700, 24
  %v2713 = vpop.permute.xlu0 %2712
  %v2715 = vsel %vm199, %v2202, %v2705
  %v2716 = vsel %vm873, %v2715, %v2709
  %v2717 = vsel %vm875, %v2716, %v2713
  %2719 = vrot.lane.b32.xlu0 %v2037, 96
  %v2720 = vpop.permute.xlu0 %2719
  %v2721 = vsel %vm199, %v2037, 0
  %v2723 = vsel %vm199, %v2720, 0
  %2725 = vmatprep.subr.mxu0 0.0
  %2726 = vmatpush1.xpose.msra.mxu0 %v2723
  %2727 = vmatprep.subr.mxu0 0.0
  %2728 = vmatpush1.xpose.msra.mxu0 0.0
  %2729 = vmatprep.subr.mxu0 0.0
  %2730 = vmatpush1.xpose.msra.mxu0 0.0
  %2731 = vmatprep.subr.mxu0 0.0
  %2732 = vmatpush1.xpose.msra.mxu0 0.0
  %2733 = vmatprep.subr.mxu0 0.0
  %2734 = vmatpush1.xpose.msra.mxu0 0.0
  %2735 = vmatprep.subr.mxu0 0.0
  %2736 = vmatpush1.xpose.msra.mxu0 0.0
  %2737 = vmatprep.subr.mxu0 0.0
  %2738 = vmatpush1.xpose.msra.mxu0 0.0
  %2739 = vmatprep.subr.mxu0 0.0
  %2740 = vmatpush1.xpose.msra.mxu0 0.0
  %2741 = vmatprep.subr.mxu0 0.0
  %2742 = vmatpush1.xpose.msra.mxu0 0.0
  %2743 = vmatprep.subr.mxu0 0.0
  %2744 = vmatpush1.xpose.msra.mxu0 0.0
  %2745 = vmatprep.subr.mxu0 0.0
  %2746 = vmatpush1.xpose.msra.mxu0 0.0
  %2747 = vmatprep.subr.mxu0 0.0
  %2748 = vmatpush1.xpose.msra.mxu0 0.0
  %2749 = vmatprep.subr.mxu0 0.0
  %2750 = vmatpush1.xpose.msra.mxu0 0.0
  %2751 = vmatprep.subr.mxu0 0.0
  %2752 = vmatpush1.xpose.msra.mxu0 0.0
  %2753 = vmatprep.subr.mxu0 0.0
  %2754 = vmatpush1.xpose.msra.mxu0 0.0
  %2755 = vmatprep.subr.mxu0 0.0
  %2756 = vmatpush1.xpose.msra.mxu0 0.0
  %2757 = vmatprep.subr.mxu0 0.0
  %2758 = vmatpush1.xpose.msra.mxu0 0.0
  %2759 = vmatprep.subr.mxu0 0.0
  %2760 = vmatpush1.xpose.msra.mxu0 0.0
  %2761 = vmatprep.subr.mxu0 0.0
  %2762 = vmatpush1.xpose.msra.mxu0 0.0
  %2763 = vmatprep.subr.mxu0 0.0
  %2764 = vmatpush1.xpose.msra.mxu0 0.0
  %2765 = vmatprep.subr.mxu0 0.0
  %2766 = vmatpush1.xpose.msra.mxu0 0.0
  %2767 = vmatprep.subr.mxu0 0.0
  %2768 = vmatpush1.xpose.msra.mxu0 0.0
  %2769 = vmatprep.subr.mxu0 0.0
  %2770 = vmatpush1.xpose.msra.mxu0 0.0
  %2771 = vmatprep.subr.mxu0 0.0
  %2772 = vmatpush1.xpose.msra.mxu0 0.0
  %2773 = vmatprep.subr.mxu0 0.0
  %2774 = vmatpush1.xpose.msra.mxu0 0.0
  %2775 = vmatprep.subr.mxu0 0.0
  %2776 = vmatpush1.xpose.msra.mxu0 0.0
  %2777 = vmatprep.subr.mxu0 0.0
  %2778 = vmatpush1.xpose.msra.mxu0 0.0
  %2779 = vmatprep.subr.mxu0 0.0
  %2780 = vmatpush1.xpose.msra.mxu0 0.0
  %2781 = vmatprep.subr.mxu0 0.0
  %2782 = vmatpush1.xpose.msra.mxu0 0.0
  %2783 = vmatprep.subr.mxu0 0.0
  %2784 = vmatpush1.xpose.msra.mxu0 0.0
  %2785 = vmatprep.subr.mxu0 0.0
  %2786 = vmatpush1.xpose.msra.mxu0 0.0
  %2787 = vmatprep.subr.mxu0 0.0
  %2788 = vmatpush1.xpose.msra.mxu0 0.0
  %2789 = vmatprep.mubr.f32.mxu0 0.0
  %2790 = vmatmul.mubr.f32.gmra.mrb[0].mxu0 %v2721
  %v2791 = vpop.f32.mrb[0].mxu0
  %v2792 = vadd.f32 0.0, %v2791
  %v2793 = vpop.f32.mrb[0].mxu0
  %2794 = vdwg.mxu0
  %v2795 = vmul.f32 %v2792, 0.35355338
  %v2796 = vsel %vm199, %v2795, -inf
  %2797 = vmax.xlane.f32.xlu0 %v2796
  %v2798 = vpop.xlane.xlu0 %2797
  %v2799 = vsub.f32 %v2795, %v2798
  %v2800 = vmul.f32 %v2799, 1.442695
  %v2801 = vpow.pop %v2800
  %v2802 = vsel %vm199, %v2801, 0.0
  %2803 = vadd.xlane.f32.xlu0 %v2802
  %v2804 = vpop.xlane.xlu0 %2803
  %v2805 = vrcp.pop %v2804
  %v2806 = vmul.f32 %v2801, %v2805
  %2807 = vrot.lane.b32.xlu0 %v2037, 64
  %v2808 = vpop.permute.xlu0 %2807
  %v2811 = vsel %vm199, %v2806, 0
  %2813 = vmatprep.subr.mxu0 0.0
  %2814 = vmatpush1.msra.mxu0 %v2808
  %2815 = vmatprep.subr.mxu0 0.0
  %2816 = vmatpush1.msra.mxu0 0.0
  %2817 = vmatprep.subr.mxu0 0.0
  %2818 = vmatpush1.msra.mxu0 0.0
  %2819 = vmatprep.subr.mxu0 0.0
  %2820 = vmatpush1.msra.mxu0 0.0
  %2821 = vmatprep.subr.mxu0 0.0
  %2822 = vmatpush1.msra.mxu0 0.0
  %2823 = vmatprep.subr.mxu0 0.0
  %2824 = vmatpush1.msra.mxu0 0.0
  %2825 = vmatprep.subr.mxu0 0.0
  %2826 = vmatpush1.msra.mxu0 0.0
  %2827 = vmatprep.subr.mxu0 0.0
  %2828 = vmatpush1.msra.mxu0 0.0
  %2829 = vmatprep.subr.mxu0 0.0
  %2830 = vmatpush1.msra.mxu0 0.0
  %2831 = vmatprep.subr.mxu0 0.0
  %2832 = vmatpush1.msra.mxu0 0.0
  %2833 = vmatprep.subr.mxu0 0.0
  %2834 = vmatpush1.msra.mxu0 0.0
  %2835 = vmatprep.subr.mxu0 0.0
  %2836 = vmatpush1.msra.mxu0 0.0
  %2837 = vmatprep.subr.mxu0 0.0
  %2838 = vmatpush1.msra.mxu0 0.0
  %2839 = vmatprep.subr.mxu0 0.0
  %2840 = vmatpush1.msra.mxu0 0.0
  %2841 = vmatprep.subr.mxu0 0.0
  %2842 = vmatpush1.msra.mxu0 0.0
  %2843 = vmatprep.subr.mxu0 0.0
  %2844 = vmatpush1.msra.mxu0 0.0
  %2845 = vmatprep.subr.mxu0 0.0
  %2846 = vmatpush1.msra.mxu0 0.0
  %2847 = vmatprep.subr.mxu0 0.0
  %2848 = vmatpush1.msra.mxu0 0.0
  %2849 = vmatprep.subr.mxu0 0.0
  %2850 = vmatpush1.msra.mxu0 0.0
  %2851 = vmatprep.subr.mxu0 0.0
  %2852 = vmatpush1.msra.mxu0 0.0
  %2853 = vmatprep.subr.mxu0 0.0
  %2854 = vmatpush1.msra.mxu0 0.0
  %2855 = vmatprep.subr.mxu0 0.0
  %2856 = vmatpush1.msra.mxu0 0.0
  %2857 = vmatprep.subr.mxu0 0.0
  %2858 = vmatpush1.msra.mxu0 0.0
  %2859 = vmatprep.subr.mxu0 0.0
  %2860 = vmatpush1.msra.mxu0 0.0
  %2861 = vmatprep.subr.mxu0 0.0
  %2862 = vmatpush1.msra.mxu0 0.0
  %2863 = vmatprep.subr.mxu0 0.0
  %2864 = vmatpush1.msra.mxu0 0.0
  %2865 = vmatprep.subr.mxu0 0.0
  %2866 = vmatpush1.msra.mxu0 0.0
  %2867 = vmatprep.subr.mxu0 0.0
  %2868 = vmatpush1.msra.mxu0 0.0
  %2869 = vmatprep.subr.mxu0 0.0
  %2870 = vmatpush1.msra.mxu0 0.0
  %2871 = vmatprep.subr.mxu0 0.0
  %2872 = vmatpush1.msra.mxu0 0.0
  %2873 = vmatprep.subr.mxu0 0.0
  %2874 = vmatpush1.msra.mxu0 0.0
  %2875 = vmatprep.subr.mxu0 0.0
  %2876 = vmatpush1.msra.mxu0 0.0
  %2877 = vmatprep.mubr.f32.mxu0 0.0
  %2878 = vmatmul.mubr.f32.gmra.mrb[0].mxu0 %v2811
  %v2879 = vpop.f32.mrb[0].mxu0
  %v2880 = vadd.f32 0.0, %v2879
  %v2881 = vpop.f32.mrb[0].mxu0
  %2882 = vdwg.mxu0
  %2883 = vrot.lane.b32.xlu0 %v2037, 120
  %v2884 = vpop.permute.xlu0 %2883
  %2885 = vrot.lane.b32.xlu0 %v2037, 88
  %v2886 = vpop.permute.xlu0 %2885
  %v2887 = vsel %vm199, %v2884, 0
  %v2889 = vsel %vm199, %v2886, 0
  %2891 = vmatprep.subr.mxu0 0.0
  %2892 = vmatpush1.xpose.msra.mxu0 %v2889
  %2893 = vmatprep.subr.mxu0 0.0
  %2894 = vmatpush1.xpose.msra.mxu0 0.0
  %2895 = vmatprep.subr.mxu0 0.0
  %2896 = vmatpush1.xpose.msra.mxu0 0.0
  %2897 = vmatprep.subr.mxu0 0.0
  %2898 = vmatpush1.xpose.msra.mxu0 0.0
  %2899 = vmatprep.subr.mxu0 0.0
  %2900 = vmatpush1.xpose.msra.mxu0 0.0
  %2901 = vmatprep.subr.mxu0 0.0
  %2902 = vmatpush1.xpose.msra.mxu0 0.0
  %2903 = vmatprep.subr.mxu0 0.0
  %2904 = vmatpush1.xpose.msra.mxu0 0.0
  %2905 = vmatprep.subr.mxu0 0.0
  %2906 = vmatpush1.xpose.msra.mxu0 0.0
  %2907 = vmatprep.subr.mxu0 0.0
  %2908 = vmatpush1.xpose.msra.mxu0 0.0
  %2909 = vmatprep.subr.mxu0 0.0
  %2910 = vmatpush1.xpose.msra.mxu0 0.0
  %2911 = vmatprep.subr.mxu0 0.0
  %2912 = vmatpush1.xpose.msra.mxu0 0.0
  %2913 = vmatprep.subr.mxu0 0.0
  %2914 = vmatpush1.xpose.msra.mxu0 0.0
  %2915 = vmatprep.subr.mxu0 0.0
  %2916 = vmatpush1.xpose.msra.mxu0 0.0
  %2917 = vmatprep.subr.mxu0 0.0
  %2918 = vmatpush1.xpose.msra.mxu0 0.0
  %2919 = vmatprep.subr.mxu0 0.0
  %2920 = vmatpush1.xpose.msra.mxu0 0.0
  %2921 = vmatprep.subr.mxu0 0.0
  %2922 = vmatpush1.xpose.msra.mxu0 0.0
  %2923 = vmatprep.subr.mxu0 0.0
  %2924 = vmatpush1.xpose.msra.mxu0 0.0
  %2925 = vmatprep.subr.mxu0 0.0
  %2926 = vmatpush1.xpose.msra.mxu0 0.0
  %2927 = vmatprep.subr.mxu0 0.0
  %2928 = vmatpush1.xpose.msra.mxu0 0.0
  %2929 = vmatprep.subr.mxu0 0.0
  %2930 = vmatpush1.xpose.msra.mxu0 0.0
  %2931 = vmatprep.subr.mxu0 0.0
  %2932 = vmatpush1.xpose.msra.mxu0 0.0
  %2933 = vmatprep.subr.mxu0 0.0
  %2934 = vmatpush1.xpose.msra.mxu0 0.0
  %2935 = vmatprep.subr.mxu0 0.0
  %2936 = vmatpush1.xpose.msra.mxu0 0.0
  %2937 = vmatprep.subr.mxu0 0.0
  %2938 = vmatpush1.xpose.msra.mxu0 0.0
  %2939 = vmatprep.subr.mxu0 0.0
  %2940 = vmatpush1.xpose.msra.mxu0 0.0
  %2941 = vmatprep.subr.mxu0 0.0
  %2942 = vmatpush1.xpose.msra.mxu0 0.0
  %2943 = vmatprep.subr.mxu0 0.0
  %2944 = vmatpush1.xpose.msra.mxu0 0.0
  %2945 = vmatprep.subr.mxu0 0.0
  %2946 = vmatpush1.xpose.msra.mxu0 0.0
  %2947 = vmatprep.subr.mxu0 0.0
  %2948 = vmatpush1.xpose.msra.mxu0 0.0
  %2949 = vmatprep.subr.mxu0 0.0
  %2950 = vmatpush1.xpose.msra.mxu0 0.0
  %2951 = vmatprep.subr.mxu0 0.0
  %2952 = vmatpush1.xpose.msra.mxu0 0.0
  %2953 = vmatprep.subr.mxu0 0.0
  %2954 = vmatpush1.xpose.msra.mxu0 0.0
  %2955 = vmatprep.mubr.f32.mxu0 0.0
  %2956 = vmatmul.mubr.f32.gmra.mrb[0].mxu0 %v2887
  %v2957 = vpop.f32.mrb[0].mxu0
  %v2958 = vadd.f32 0.0, %v2957
  %v2959 = vpop.f32.mrb[0].mxu0
  %2960 = vdwg.mxu0
  %v2961 = vmul.f32 %v2958, 0.35355338
  %v2962 = vsel %vm199, %v2961, -inf
  %2963 = vmax.xlane.f32.xlu0 %v2962
  %v2964 = vpop.xlane.xlu0 %2963
  %v2965 = vsub.f32 %v2961, %v2964
  %v2966 = vmul.f32 %v2965, 1.442695
  %v2967 = vpow.pop %v2966
  %v2968 = vsel %vm199, %v2967, 0.0
  %2969 = vadd.xlane.f32.xlu0 %v2968
  %v2970 = vpop.xlane.xlu0 %2969
  %v2971 = vrcp.pop %v2970
  %v2972 = vmul.f32 %v2967, %v2971
  %2973 = vrot.lane.b32.xlu0 %v2037, 56
  %v2974 = vpop.permute.xlu0 %2973
  %v2977 = vsel %vm199, %v2972, 0
  %2979 = vmatprep.subr.mxu0 0.0
  %2980 = vmatpush1.msra.mxu0 %v2974
  %2981 = vmatprep.subr.mxu0 0.0
  %2982 = vmatpush1.msra.mxu0 0.0
  %2983 = vmatprep.subr.mxu0 0.0
  %2984 = vmatpush1.msra.mxu0 0.0
  %2985 = vmatprep.subr.mxu0 0.0
  %2986 = vmatpush1.msra.mxu0 0.0
  %2987 = vmatprep.subr.mxu0 0.0
  %2988 = vmatpush1.msra.mxu0 0.0
  %2989 = vmatprep.subr.mxu0 0.0
  %2990 = vmatpush1.msra.mxu0 0.0
  %2991 = vmatprep.subr.mxu0 0.0
  %2992 = vmatpush1.msra.mxu0 0.0
  %2993 = vmatprep.subr.mxu0 0.0
  %2994 = vmatpush1.msra.mxu0 0.0
  %2995 = vmatprep.subr.mxu0 0.0
  %2996 = vmatpush1.msra.mxu0 0.0
  %2997 = vmatprep.subr.mxu0 0.0
  %2998 = vmatpush1.msra.mxu0 0.0
  %2999 = vmatprep.subr.mxu0 0.0
  %3000 = vmatpush1.msra.mxu0 0.0
  %3001 = vmatprep.subr.mxu0 0.0
  %3002 = vmatpush1.msra.mxu0 0.0
  %3003 = vmatprep.subr.mxu0 0.0
  %3004 = vmatpush1.msra.mxu0 0.0
  %3005 = vmatprep.subr.mxu0 0.0
  %3006 = vmatpush1.msra.mxu0 0.0
  %3007 = vmatprep.subr.mxu0 0.0
  %3008 = vmatpush1.msra.mxu0 0.0
  %3009 = vmatprep.subr.mxu0 0.0
  %3010 = vmatpush1.msra.mxu0 0.0
  %3011 = vmatprep.subr.mxu0 0.0
  %3012 = vmatpush1.msra.mxu0 0.0
  %3013 = vmatprep.subr.mxu0 0.0
  %3014 = vmatpush1.msra.mxu0 0.0
  %3015 = vmatprep.subr.mxu0 0.0
  %3016 = vmatpush1.msra.mxu0 0.0
  %3017 = vmatprep.subr.mxu0 0.0
  %3018 = vmatpush1.msra.mxu0 0.0
  %3019 = vmatprep.subr.mxu0 0.0
  %3020 = vmatpush1.msra.mxu0 0.0
  %3021 = vmatprep.subr.mxu0 0.0
  %3022 = vmatpush1.msra.mxu0 0.0
  %3023 = vmatprep.subr.mxu0 0.0
  %3024 = vmatpush1.msra.mxu0 0.0
  %3025 = vmatprep.subr.mxu0 0.0
  %3026 = vmatpush1.msra.mxu0 0.0
  %3027 = vmatprep.subr.mxu0 0.0
  %3028 = vmatpush1.msra.mxu0 0.0
  %3029 = vmatprep.subr.mxu0 0.0
  %3030 = vmatpush1.msra.mxu0 0.0
  %3031 = vmatprep.subr.mxu0 0.0
  %3032 = vmatpush1.msra.mxu0 0.0
  %3033 = vmatprep.subr.mxu0 0.0
  %3034 = vmatpush1.msra.mxu0 0.0
  %3035 = vmatprep.subr.mxu0 0.0
  %3036 = vmatpush1.msra.mxu0 0.0
  %3037 = vmatprep.subr.mxu0 0.0
  %3038 = vmatpush1.msra.mxu0 0.0
  %3039 = vmatprep.subr.mxu0 0.0
  %3040 = vmatpush1.msra.mxu0 0.0
  %3041 = vmatprep.subr.mxu0 0.0
  %3042 = vmatpush1.msra.mxu0 0.0
  %3043 = vmatprep.mubr.f32.mxu0 0.0
  %3044 = vmatmul.mubr.f32.gmra.mrb[0].mxu0 %v2977
  %v3045 = vpop.f32.mrb[0].mxu0
  %v3046 = vadd.f32 0.0, %v3045
  %v3047 = vpop.f32.mrb[0].mxu0
  %3048 = vdwg.mxu0
  %3049 = vrot.lane.b32.xlu0 %v2037, 112
  %v3050 = vpop.permute.xlu0 %3049
  %3051 = vrot.lane.b32.xlu0 %v2037, 80
  %v3052 = vpop.permute.xlu0 %3051
  %v3053 = vsel %vm199, %v3050, 0
  %v3055 = vsel %vm199, %v3052, 0
  %3057 = vmatprep.subr.mxu0 0.0
  %3058 = vmatpush1.xpose.msra.mxu0 %v3055
  %3059 = vmatprep.subr.mxu0 0.0
  %3060 = vmatpush1.xpose.msra.mxu0 0.0
  %3061 = vmatprep.subr.mxu0 0.0
  %3062 = vmatpush1.xpose.msra.mxu0 0.0
  %3063 = vmatprep.subr.mxu0 0.0
  %3064 = vmatpush1.xpose.msra.mxu0 0.0
  %3065 = vmatprep.subr.mxu0 0.0
  %3066 = vmatpush1.xpose.msra.mxu0 0.0
  %3067 = vmatprep.subr.mxu0 0.0
  %3068 = vmatpush1.xpose.msra.mxu0 0.0
  %3069 = vmatprep.subr.mxu0 0.0
  %3070 = vmatpush1.xpose.msra.mxu0 0.0
  %3071 = vmatprep.subr.mxu0 0.0
  %3072 = vmatpush1.xpose.msra.mxu0 0.0
  %3073 = vmatprep.subr.mxu0 0.0
  %3074 = vmatpush1.xpose.msra.mxu0 0.0
  %3075 = vmatprep.subr.mxu0 0.0
  %3076 = vmatpush1.xpose.msra.mxu0 0.0
  %3077 = vmatprep.subr.mxu0 0.0
  %3078 = vmatpush1.xpose.msra.mxu0 0.0
  %3079 = vmatprep.subr.mxu0 0.0
  %3080 = vmatpush1.xpose.msra.mxu0 0.0
  %3081 = vmatprep.subr.mxu0 0.0
  %3082 = vmatpush1.xpose.msra.mxu0 0.0
  %3083 = vmatprep.subr.mxu0 0.0
  %3084 = vmatpush1.xpose.msra.mxu0 0.0
  %3085 = vmatprep.subr.mxu0 0.0
  %3086 = vmatpush1.xpose.msra.mxu0 0.0
  %3087 = vmatprep.subr.mxu0 0.0
  %3088 = vmatpush1.xpose.msra.mxu0 0.0
  %3089 = vmatprep.subr.mxu0 0.0
  %3090 = vmatpush1.xpose.msra.mxu0 0.0
  %3091 = vmatprep.subr.mxu0 0.0
  %3092 = vmatpush1.xpose.msra.mxu0 0.0
  %3093 = vmatprep.subr.mxu0 0.0
  %3094 = vmatpush1.xpose.msra.mxu0 0.0
  %3095 = vmatprep.subr.mxu0 0.0
  %3096 = vmatpush1.xpose.msra.mxu0 0.0
  %3097 = vmatprep.subr.mxu0 0.0
  %3098 = vmatpush1.xpose.msra.mxu0 0.0
  %3099 = vmatprep.subr.mxu0 0.0
  %3100 = vmatpush1.xpose.msra.mxu0 0.0
  %3101 = vmatprep.subr.mxu0 0.0
  %3102 = vmatpush1.xpose.msra.mxu0 0.0
  %3103 = vmatprep.subr.mxu0 0.0
  %3104 = vmatpush1.xpose.msra.mxu0 0.0
  %3105 = vmatprep.subr.mxu0 0.0
  %3106 = vmatpush1.xpose.msra.mxu0 0.0
  %3107 = vmatprep.subr.mxu0 0.0
  %3108 = vmatpush1.xpose.msra.mxu0 0.0
  %3109 = vmatprep.subr.mxu0 0.0
  %3110 = vmatpush1.xpose.msra.mxu0 0.0
  %3111 = vmatprep.subr.mxu0 0.0
  %3112 = vmatpush1.xpose.msra.mxu0 0.0
  %3113 = vmatprep.subr.mxu0 0.0
  %3114 = vmatpush1.xpose.msra.mxu0 0.0
  %3115 = vmatprep.subr.mxu0 0.0
  %3116 = vmatpush1.xpose.msra.mxu0 0.0
  %3117 = vmatprep.subr.mxu0 0.0
  %3118 = vmatpush1.xpose.msra.mxu0 0.0
  %3119 = vmatprep.subr.mxu0 0.0
  %3120 = vmatpush1.xpose.msra.mxu0 0.0
  %3121 = vmatprep.mubr.f32.mxu0 0.0
  %3122 = vmatmul.mubr.f32.gmra.mrb[0].mxu0 %v3053
  %v3123 = vpop.f32.mrb[0].mxu0
  %v3124 = vadd.f32 0.0, %v3123
  %v3125 = vpop.f32.mrb[0].mxu0
  %3126 = vdwg.mxu0
  %v3127 = vmul.f32 %v3124, 0.35355338
  %v3128 = vsel %vm199, %v3127, -inf
  %3129 = vmax.xlane.f32.xlu0 %v3128
  %v3130 = vpop.xlane.xlu0 %3129
  %v3131 = vsub.f32 %v3127, %v3130
  %v3132 = vmul.f32 %v3131, 1.442695
  %v3133 = vpow.pop %v3132
  %v3134 = vsel %vm199, %v3133, 0.0
  %3135 = vadd.xlane.f32.xlu0 %v3134
  %v3136 = vpop.xlane.xlu0 %3135
  %v3137 = vrcp.pop %v3136
  %v3138 = vmul.f32 %v3133, %v3137
  %3139 = vrot.lane.b32.xlu0 %v2037, 48
  %v3140 = vpop.permute.xlu0 %3139
  %v3143 = vsel %vm199, %v3138, 0
  %3145 = vmatprep.subr.mxu0 0.0
  %3146 = vmatpush1.msra.mxu0 %v3140
  %3147 = vmatprep.subr.mxu0 0.0
  %3148 = vmatpush1.msra.mxu0 0.0
  %3149 = vmatprep.subr.mxu0 0.0
  %3150 = vmatpush1.msra.mxu0 0.0
  %3151 = vmatprep.subr.mxu0 0.0
  %3152 = vmatpush1.msra.mxu0 0.0
  %3153 = vmatprep.subr.mxu0 0.0
  %3154 = vmatpush1.msra.mxu0 0.0
  %3155 = vmatprep.subr.mxu0 0.0
  %3156 = vmatpush1.msra.mxu0 0.0
  %3157 = vmatprep.subr.mxu0 0.0
  %3158 = vmatpush1.msra.mxu0 0.0
  %3159 = vmatprep.subr.mxu0 0.0
  %3160 = vmatpush1.msra.mxu0 0.0
  %3161 = vmatprep.subr.mxu0 0.0
  %3162 = vmatpush1.msra.mxu0 0.0
  %3163 = vmatprep.subr.mxu0 0.0
  %3164 = vmatpush1.msra.mxu0 0.0
  %3165 = vmatprep.subr.mxu0 0.0
  %3166 = vmatpush1.msra.mxu0 0.0
  %3167 = vmatprep.subr.mxu0 0.0
  %3168 = vmatpush1.msra.mxu0 0.0
  %3169 = vmatprep.subr.mxu0 0.0
  %3170 = vmatpush1.msra.mxu0 0.0
  %3171 = vmatprep.subr.mxu0 0.0
  %3172 = vmatpush1.msra.mxu0 0.0
  %3173 = vmatprep.subr.mxu0 0.0
  %3174 = vmatpush1.msra.mxu0 0.0
  %3175 = vmatprep.subr.mxu0 0.0
  %3176 = vmatpush1.msra.mxu0 0.0
  %3177 = vmatprep.subr.mxu0 0.0
  %3178 = vmatpush1.msra.mxu0 0.0
  %3179 = vmatprep.subr.mxu0 0.0
  %3180 = vmatpush1.msra.mxu0 0.0
  %3181 = vmatprep.subr.mxu0 0.0
  %3182 = vmatpush1.msra.mxu0 0.0
  %3183 = vmatprep.subr.mxu0 0.0
  %3184 = vmatpush1.msra.mxu0 0.0
  %3185 = vmatprep.subr.mxu0 0.0
  %3186 = vmatpush1.msra.mxu0 0.0
  %3187 = vmatprep.subr.mxu0 0.0
  %3188 = vmatpush1.msra.mxu0 0.0
  %3189 = vmatprep.subr.mxu0 0.0
  %3190 = vmatpush1.msra.mxu0 0.0
  %3191 = vmatprep.subr.mxu0 0.0
  %3192 = vmatpush1.msra.mxu0 0.0
  %3193 = vmatprep.subr.mxu0 0.0
  %3194 = vmatpush1.msra.mxu0 0.0
  %3195 = vmatprep.subr.mxu0 0.0
  %3196 = vmatpush1.msra.mxu0 0.0
  %3197 = vmatprep.subr.mxu0 0.0
  %3198 = vmatpush1.msra.mxu0 0.0
  %3199 = vmatprep.subr.mxu0 0.0
  %3200 = vmatpush1.msra.mxu0 0.0
  %3201 = vmatprep.subr.mxu0 0.0
  %3202 = vmatpush1.msra.mxu0 0.0
  %3203 = vmatprep.subr.mxu0 0.0
  %3204 = vmatpush1.msra.mxu0 0.0
  %3205 = vmatprep.subr.mxu0 0.0
  %3206 = vmatpush1.msra.mxu0 0.0
  %3207 = vmatprep.subr.mxu0 0.0
  %3208 = vmatpush1.msra.mxu0 0.0
  %3209 = vmatprep.mubr.f32.mxu0 0.0
  %3210 = vmatmul.mubr.f32.gmra.mrb[0].mxu0 %v3143
  %v3211 = vpop.f32.mrb[0].mxu0
  %v3212 = vadd.f32 0.0, %v3211
  %v3213 = vpop.f32.mrb[0].mxu0
  %3214 = vdwg.mxu0
  %3215 = vrot.lane.b32.xlu0 %v2037, 104
  %v3216 = vpop.permute.xlu0 %3215
  %3217 = vrot.lane.b32.xlu0 %v2037, 72
  %v3218 = vpop.permute.xlu0 %3217
  %v3219 = vsel %vm199, %v3216, 0
  %v3221 = vsel %vm199, %v3218, 0
  %3223 = vmatprep.subr.mxu0 0.0
  %3224 = vmatpush1.xpose.msra.mxu0 %v3221
  %3225 = vmatprep.subr.mxu0 0.0
  %3226 = vmatpush1.xpose.msra.mxu0 0.0
  %3227 = vmatprep.subr.mxu0 0.0
  %3228 = vmatpush1.xpose.msra.mxu0 0.0
  %3229 = vmatprep.subr.mxu0 0.0
  %3230 = vmatpush1.xpose.msra.mxu0 0.0
  %3231 = vmatprep.subr.mxu0 0.0
  %3232 = vmatpush1.xpose.msra.mxu0 0.0
  %3233 = vmatprep.subr.mxu0 0.0
  %3234 = vmatpush1.xpose.msra.mxu0 0.0
  %3235 = vmatprep.subr.mxu0 0.0
  %3236 = vmatpush1.xpose.msra.mxu0 0.0
  %3237 = vmatprep.subr.mxu0 0.0
  %3238 = vmatpush1.xpose.msra.mxu0 0.0
  %3239 = vmatprep.subr.mxu0 0.0
  %3240 = vmatpush1.xpose.msra.mxu0 0.0
  %3241 = vmatprep.subr.mxu0 0.0
  %3242 = vmatpush1.xpose.msra.mxu0 0.0
  %3243 = vmatprep.subr.mxu0 0.0
  %3244 = vmatpush1.xpose.msra.mxu0 0.0
  %3245 = vmatprep.subr.mxu0 0.0
  %3246 = vmatpush1.xpose.msra.mxu0 0.0
  %3247 = vmatprep.subr.mxu0 0.0
  %3248 = vmatpush1.xpose.msra.mxu0 0.0
  %3249 = vmatprep.subr.mxu0 0.0
  %3250 = vmatpush1.xpose.msra.mxu0 0.0
  %3251 = vmatprep.subr.mxu0 0.0
  %3252 = vmatpush1.xpose.msra.mxu0 0.0
  %3253 = vmatprep.subr.mxu0 0.0
  %3254 = vmatpush1.xpose.msra.mxu0 0.0
  %3255 = vmatprep.subr.mxu0 0.0
  %3256 = vmatpush1.xpose.msra.mxu0 0.0
  %3257 = vmatprep.subr.mxu0 0.0
  %3258 = vmatpush1.xpose.msra.mxu0 0.0
  %3259 = vmatprep.subr.mxu0 0.0
  %3260 = vmatpush1.xpose.msra.mxu0 0.0
  %3261 = vmatprep.subr.mxu0 0.0
  %3262 = vmatpush1.xpose.msra.mxu0 0.0
  %3263 = vmatprep.subr.mxu0 0.0
  %3264 = vmatpush1.xpose.msra.mxu0 0.0
  %3265 = vmatprep.subr.mxu0 0.0
  %3266 = vmatpush1.xpose.msra.mxu0 0.0
  %3267 = vmatprep.subr.mxu0 0.0
  %3268 = vmatpush1.xpose.msra.mxu0 0.0
  %3269 = vmatprep.subr.mxu0 0.0
  %3270 = vmatpush1.xpose.msra.mxu0 0.0
  %3271 = vmatprep.subr.mxu0 0.0
  %3272 = vmatpush1.xpose.msra.mxu0 0.0
  %3273 = vmatprep.subr.mxu0 0.0
  %3274 = vmatpush1.xpose.msra.mxu0 0.0
  %3275 = vmatprep.subr.mxu0 0.0
  %3276 = vmatpush1.xpose.msra.mxu0 0.0
  %3277 = vmatprep.subr.mxu0 0.0
  %3278 = vmatpush1.xpose.msra.mxu0 0.0
  %3279 = vmatprep.subr.mxu0 0.0
  %3280 = vmatpush1.xpose.msra.mxu0 0.0
  %3281 = vmatprep.subr.mxu0 0.0
  %3282 = vmatpush1.xpose.msra.mxu0 0.0
  %3283 = vmatprep.subr.mxu0 0.0
  %3284 = vmatpush1.xpose.msra.mxu0 0.0
  %3285 = vmatprep.subr.mxu0 0.0
  %3286 = vmatpush1.xpose.msra.mxu0 0.0
  %3287 = vmatprep.mubr.f32.mxu0 0.0
  %3288 = vmatmul.mubr.f32.gmra.mrb[0].mxu0 %v3219
  %v3289 = vpop.f32.mrb[0].mxu0
  %v3290 = vadd.f32 0.0, %v3289
  %v3291 = vpop.f32.mrb[0].mxu0
  %3292 = vdwg.mxu0
  %v3293 = vmul.f32 %v3290, 0.35355338
  %v3294 = vsel %vm199, %v3293, -inf
  %3295 = vmax.xlane.f32.xlu0 %v3294
  %v3296 = vpop.xlane.xlu0 %3295
  %v3297 = vsub.f32 %v3293, %v3296
  %v3298 = vmul.f32 %v3297, 1.442695
  %v3299 = vpow.pop %v3298
  %v3300 = vsel %vm199, %v3299, 0.0
  %3301 = vadd.xlane.f32.xlu0 %v3300
  %v3302 = vpop.xlane.xlu0 %3301
  %v3303 = vrcp.pop %v3302
  %v3304 = vmul.f32 %v3299, %v3303
  %3305 = vrot.lane.b32.xlu0 %v2037, 40
  %v3306 = vpop.permute.xlu0 %3305
  %v3309 = vsel %vm199, %v3304, 0
  %3311 = vmatprep.subr.mxu0 0.0
  %3312 = vmatpush1.msra.mxu0 %v3306
  %3313 = vmatprep.subr.mxu0 0.0
  %3314 = vmatpush1.msra.mxu0 0.0
  %3315 = vmatprep.subr.mxu0 0.0
  %3316 = vmatpush1.msra.mxu0 0.0
  %3317 = vmatprep.subr.mxu0 0.0
  %3318 = vmatpush1.msra.mxu0 0.0
  %3319 = vmatprep.subr.mxu0 0.0
  %3320 = vmatpush1.msra.mxu0 0.0
  %3321 = vmatprep.subr.mxu0 0.0
  %3322 = vmatpush1.msra.mxu0 0.0
  %3323 = vmatprep.subr.mxu0 0.0
  %3324 = vmatpush1.msra.mxu0 0.0
  %3325 = vmatprep.subr.mxu0 0.0
  %3326 = vmatpush1.msra.mxu0 0.0
  %3327 = vmatprep.subr.mxu0 0.0
  %3328 = vmatpush1.msra.mxu0 0.0
  %3329 = vmatprep.subr.mxu0 0.0
  %3330 = vmatpush1.msra.mxu0 0.0
  %3331 = vmatprep.subr.mxu0 0.0
  %3332 = vmatpush1.msra.mxu0 0.0
  %3333 = vmatprep.subr.mxu0 0.0
  %3334 = vmatpush1.msra.mxu0 0.0
  %3335 = vmatprep.subr.mxu0 0.0
  %3336 = vmatpush1.msra.mxu0 0.0
  %3337 = vmatprep.subr.mxu0 0.0
  %3338 = vmatpush1.msra.mxu0 0.0
  %3339 = vmatprep.subr.mxu0 0.0
  %3340 = vmatpush1.msra.mxu0 0.0
  %3341 = vmatprep.subr.mxu0 0.0
  %3342 = vmatpush1.msra.mxu0 0.0
  %3343 = vmatprep.subr.mxu0 0.0
  %3344 = vmatpush1.msra.mxu0 0.0
  %3345 = vmatprep.subr.mxu0 0.0
  %3346 = vmatpush1.msra.mxu0 0.0
  %3347 = vmatprep.subr.mxu0 0.0
  %3348 = vmatpush1.msra.mxu0 0.0
  %3349 = vmatprep.subr.mxu0 0.0
  %3350 = vmatpush1.msra.mxu0 0.0
  %3351 = vmatprep.subr.mxu0 0.0
  %3352 = vmatpush1.msra.mxu0 0.0
  %3353 = vmatprep.subr.mxu0 0.0
  %3354 = vmatpush1.msra.mxu0 0.0
  %3355 = vmatprep.subr.mxu0 0.0
  %3356 = vmatpush1.msra.mxu0 0.0
  %3357 = vmatprep.subr.mxu0 0.0
  %3358 = vmatpush1.msra.mxu0 0.0
  %3359 = vmatprep.subr.mxu0 0.0
  %3360 = vmatpush1.msra.mxu0 0.0
  %3361 = vmatprep.subr.mxu0 0.0
  %3362 = vmatpush1.msra.mxu0 0.0
  %3363 = vmatprep.subr.mxu0 0.0
  %3364 = vmatpush1.msra.mxu0 0.0
  %3365 = vmatprep.subr.mxu0 0.0
  %3366 = vmatpush1.msra.mxu0 0.0
  %3367 = vmatprep.subr.mxu0 0.0
  %3368 = vmatpush1.msra.mxu0 0.0
  %3369 = vmatprep.subr.mxu0 0.0
  %3370 = vmatpush1.msra.mxu0 0.0
  %3371 = vmatprep.subr.mxu0 0.0
  %3372 = vmatpush1.msra.mxu0 0.0
  %3373 = vmatprep.subr.mxu0 0.0
  %3374 = vmatpush1.msra.mxu0 0.0
  %3375 = vmatprep.mubr.f32.mxu0 0.0
  %3376 = vmatmul.mubr.f32.gmra.mrb[0].mxu0 %v3309
  %v3377 = vpop.f32.mrb[0].mxu0
  %v3378 = vadd.f32 0.0, %v3377
  %v3379 = vpop.f32.mrb[0].mxu0
  %3380 = vdwg.mxu0
  %3382 = vrot.lane.b32.xlu0 %v3046, 8
  %v3383 = vpop.permute.xlu0 %3382
  %3386 = vrot.lane.b32.xlu0 %v3212, 16
  %v3387 = vpop.permute.xlu0 %3386
  %3390 = vrot.lane.b32.xlu0 %v3378, 24
  %v3391 = vpop.permute.xlu0 %3390
  %v3393 = vsel %vm199, %v2880, %v3383
  %v3394 = vsel %vm873, %v3393, %v3387
  %v3395 = vsel %vm875, %v3394, %v3391
  %s3396 = scalar_lea.vmem %s5, 32
  %v3397 = vld [vmem:[%s3396] sm:$0xff]
  %v3398 = vld [vmem:[%s3396 + $0x8] sm:$0xff]
  %v3399 = vld [vmem:[%s3396 + $0x10] sm:$0xff]
  %v3400 = vld [vmem:[%s3396 + $0x18] sm:$0xff]
  %s3401 = scalar_lea.vmem %s6, 1
  %v3402 = vld [vmem:[%s3401] sm:$0x1]
  %v3404 = vlaneseq
  %v3405 = vshrl.u32 %v3404, 7
  %v3406 = vsub.s32 0, %v3405
  %v3407 = vrot.slane %v3402, %v3406
  %v3410 = vsel %vm60, %v2717, 0
  %v3413 = vsel %vm60, %v3395, 0
  %3415 = vmatprep.subr.mxu0 0.0
  %3416 = vmatpush1.msra.mxu0 %v3397
  %3417 = vmatprep.subr.mxu0 0.0
  %3418 = vmatpush1.msra.mxu0 %v3398
  %3419 = vmatprep.subr.mxu0 0.0
  %3420 = vmatpush1.msra.mxu0 %v3399
  %3421 = vmatprep.subr.mxu0 0.0
  %3422 = vmatpush1.msra.mxu0 %v3400
  %3423 = vmatprep.subr.mxu0 0.0
  %3424 = vmatpush1.msra.mxu0 0.0
  %3425 = vmatprep.subr.mxu0 0.0
  %3426 = vmatpush1.msra.mxu0 0.0
  %3427 = vmatprep.subr.mxu0 0.0
  %3428 = vmatpush1.msra.mxu0 0.0
  %3429 = vmatprep.subr.mxu0 0.0
  %3430 = vmatpush1.msra.mxu0 0.0
  %3431 = vmatprep.subr.mxu0 0.0
  %3432 = vmatpush1.msra.mxu0 0.0
  %3433 = vmatprep.subr.mxu0 0.0
  %3434 = vmatpush1.msra.mxu0 0.0
  %3435 = vmatprep.subr.mxu0 0.0
  %3436 = vmatpush1.msra.mxu0 0.0
  %3437 = vmatprep.subr.mxu0 0.0
  %3438 = vmatpush1.msra.mxu0 0.0
  %3439 = vmatprep.subr.mxu0 0.0
  %3440 = vmatpush1.msra.mxu0 0.0
  %3441 = vmatprep.subr.mxu0 0.0
  %3442 = vmatpush1.msra.mxu0 0.0
  %3443 = vmatprep.subr.mxu0 0.0
  %3444 = vmatpush1.msra.mxu0 0.0
  %3445 = vmatprep.subr.mxu0 0.0
  %3446 = vmatpush1.msra.mxu0 0.0
  %3447 = vmatprep.subr.mxu0 0.0
  %3448 = vmatpush1.msra.mxu0 0.0
  %3449 = vmatprep.subr.mxu0 0.0
  %3450 = vmatpush1.msra.mxu0 0.0
  %3451 = vmatprep.subr.mxu0 0.0
  %3452 = vmatpush1.msra.mxu0 0.0
  %3453 = vmatprep.subr.mxu0 0.0
  %3454 = vmatpush1.msra.mxu0 0.0
  %3455 = vmatprep.subr.mxu0 0.0
  %3456 = vmatpush1.msra.mxu0 0.0
  %3457 = vmatprep.subr.mxu0 0.0
  %3458 = vmatpush1.msra.mxu0 0.0
  %3459 = vmatprep.subr.mxu0 0.0
  %3460 = vmatpush1.msra.mxu0 0.0
  %3461 = vmatprep.subr.mxu0 0.0
  %3462 = vmatpush1.msra.mxu0 0.0
  %3463 = vmatprep.subr.mxu0 0.0
  %3464 = vmatpush1.msra.mxu0 0.0
  %3465 = vmatprep.subr.mxu0 0.0
  %3466 = vmatpush1.msra.mxu0 0.0
  %3467 = vmatprep.subr.mxu0 0.0
  %3468 = vmatpush1.msra.mxu0 0.0
  %3469 = vmatprep.subr.mxu0 0.0
  %3470 = vmatpush1.msra.mxu0 0.0
  %3471 = vmatprep.subr.mxu0 0.0
  %3472 = vmatpush1.msra.mxu0 0.0
  %3473 = vmatprep.subr.mxu0 0.0
  %3474 = vmatpush1.msra.mxu0 0.0
  %3475 = vmatprep.subr.mxu0 0.0
  %3476 = vmatpush1.msra.mxu0 0.0
  %3477 = vmatprep.subr.mxu0 0.0
  %3478 = vmatpush1.msra.mxu0 0.0
  %3479 = vmatprep.mubr.f32.mxu0 0.0
  %3480 = vmatmul.mubr.f32.gmra.mrb[0].mxu0 %v3410
  %v3481 = vpop.f32.mrb[0].mxu0
  %v3482 = vadd.f32 %v3407, %v3481
  %v3483 = vpop.f32.mrb[0].mxu0
  %3484 = vmatprep.mubr.f32.mxu0 0.0
  %3485 = vmatmul.mubr.f32.gmra.mrb[0].mxu0 %v3413
  %v3486 = vpop.f32.mrb[0].mxu0
  %v3487 = vadd.f32 %v3407, %v3486
  %v3488 = vpop.f32.mrb[0].mxu0
  %3489 = vdwg.mxu0
  %v3490 = vadd.f32 %v3482, %v1944
  %v3491 = vadd.f32 %v3487, %v1945
  %s3492 = scalar_lea.vmem %s7, 1
  %v3493 = vld [vmem:[%s3492] sm:$0x1]
  %s3494 = scalar_lea.vmem %s8, 1
  %v3495 = vld [vmem:[%s3494] sm:$0x1]
  %v3496 = vsel %vm60, %v3490, 0.0
  %3497 = vadd.xlane.f32.xlu0 %v3496
  %v3498 = vpop.xlane.xlu0 %3497
  %v3499 = vsel %vm60, %v3491, 0.0
  %3500 = vadd.xlane.f32.xlu0 %v3499
  %v3501 = vpop.xlane.xlu0 %3500
  %v3502 = vmul.f32 %v3498, %v67
  %v3503 = vmul.f32 %v3501, %v67
  %v3504 = vsub.f32 %v3490, %v3502
  %v3505 = vsub.f32 %v3491, %v3503
  %v3506 = vmul.f32 %v3504, %v3504
  %v3507 = vmul.f32 %v3505, %v3505
  %v3508 = vsel %vm60, %v3506, 0.0
  %3509 = vadd.xlane.f32.xlu0 %v3508
  %v3510 = vpop.xlane.xlu0 %3509
  %v3511 = vsel %vm60, %v3507, 0.0
  %3512 = vadd.xlane.f32.xlu0 %v3511
  %v3513 = vpop.xlane.xlu0 %3512
  %v3514 = vmul.f32 %v3510, %v67
  %v3515 = vmul.f32 %v3513, %v67
  %v3516 = vadd.f32 %v3514, 1e-12
  %v3517 = vadd.f32 %v3515, 1e-12
  %v3518 = vrsqrt.pop %v3516
  %v3519 = vrsqrt.pop %v3517
  %v3520 = vmul.f32 %v3504, %v3518
  %v3521 = vmul.f32 %v3505, %v3519
  %v3523 = vlaneseq
  %v3524 = vshrl.u32 %v3523, 7
  %v3525 = vsub.s32 0, %v3524
  %v3526 = vrot.slane %v3493, %v3525
  %v3528 = vmul.f32 %v3520, %v3526
  %v3529 = vmul.f32 %v3521, %v3526
  %v3531 = vlaneseq
  %v3532 = vshrl.u32 %v3531, 7
  %v3533 = vsub.s32 0, %v3532
  %v3534 = vrot.slane %v3495, %v3533
  %v3536 = vadd.f32 %v3528, %v3534
  %v3537 = vadd.f32 %v3529, %v3534
  %s3538 = scalar_lea.vmem %s9, 32
  %v3539 = vld [vmem:[%s3538] sm:$0xff]
  %v3540 = vld [vmem:[%s3538 + $0x8] sm:$0xff]
  %v3541 = vld [vmem:[%s3538 + $0x10] sm:$0xff]
  %v3542 = vld [vmem:[%s3538 + $0x18] sm:$0xff]
  %s3543 = scalar_lea.vmem %s10, 1
  %v3544 = vld [vmem:[%s3543] sm:$0x1]
  %v3546 = vlaneseq
  %v3547 = vshrl.u32 %v3546, 7
  %v3548 = vsub.s32 0, %v3547
  %v3549 = vrot.slane %v3544, %v3548
  %v3552 = vsel %vm60, %v3536, 0
  %v3555 = vsel %vm60, %v3537, 0
  %3557 = vmatprep.subr.mxu0 0.0
  %3558 = vmatpush1.msra.mxu0 %v3539
  %3559 = vmatprep.subr.mxu0 0.0
  %3560 = vmatpush1.msra.mxu0 %v3540
  %3561 = vmatprep.subr.mxu0 0.0
  %3562 = vmatpush1.msra.mxu0 %v3541
  %3563 = vmatprep.subr.mxu0 0.0
  %3564 = vmatpush1.msra.mxu0 %v3542
  %3565 = vmatprep.subr.mxu0 0.0
  %3566 = vmatpush1.msra.mxu0 0.0
  %3567 = vmatprep.subr.mxu0 0.0
  %3568 = vmatpush1.msra.mxu0 0.0
  %3569 = vmatprep.subr.mxu0 0.0
  %3570 = vmatpush1.msra.mxu0 0.0
  %3571 = vmatprep.subr.mxu0 0.0
  %3572 = vmatpush1.msra.mxu0 0.0
  %3573 = vmatprep.subr.mxu0 0.0
  %3574 = vmatpush1.msra.mxu0 0.0
  %3575 = vmatprep.subr.mxu0 0.0
  %3576 = vmatpush1.msra.mxu0 0.0
  %3577 = vmatprep.subr.mxu0 0.0
  %3578 = vmatpush1.msra.mxu0 0.0
  %3579 = vmatprep.subr.mxu0 0.0
  %3580 = vmatpush1.msra.mxu0 0.0
  %3581 = vmatprep.subr.mxu0 0.0
  %3582 = vmatpush1.msra.mxu0 0.0
  %3583 = vmatprep.subr.mxu0 0.0
  %3584 = vmatpush1.msra.mxu0 0.0
  %3585 = vmatprep.subr.mxu0 0.0
  %3586 = vmatpush1.msra.mxu0 0.0
  %3587 = vmatprep.subr.mxu0 0.0
  %3588 = vmatpush1.msra.mxu0 0.0
  %3589 = vmatprep.subr.mxu0 0.0
  %3590 = vmatpush1.msra.mxu0 0.0
  %3591 = vmatprep.subr.mxu0 0.0
  %3592 = vmatpush1.msra.mxu0 0.0
  %3593 = vmatprep.subr.mxu0 0.0
  %3594 = vmatpush1.msra.mxu0 0.0
  %3595 = vmatprep.subr.mxu0 0.0
  %3596 = vmatpush1.msra.mxu0 0.0
  %3597 = vmatprep.subr.mxu0 0.0
  %3598 = vmatpush1.msra.mxu0 0.0
  %3599 = vmatprep.subr.mxu0 0.0
  %3600 = vmatpush1.msra.mxu0 0.0
  %3601 = vmatprep.subr.mxu0 0.0
  %3602 = vmatpush1.msra.mxu0 0.0
  %3603 = vmatprep.subr.mxu0 0.0
  %3604 = vmatpush1.msra.mxu0 0.0
  %3605 = vmatprep.subr.mxu0 0.0
  %3606 = vmatpush1.msra.mxu0 0.0
  %3607 = vmatprep.subr.mxu0 0.0
  %3608 = vmatpush1.msra.mxu0 0.0
  %3609 = vmatprep.subr.mxu0 0.0
  %3610 = vmatpush1.msra.mxu0 0.0
  %3611 = vmatprep.subr.mxu0 0.0
  %3612 = vmatpush1.msra.mxu0 0.0
  %3613 = vmatprep.subr.mxu0 0.0
  %3614 = vmatpush1.msra.mxu0 0.0
  %3615 = vmatprep.subr.mxu0 0.0
  %3616 = vmatpush1.msra.mxu0 0.0
  %3617 = vmatprep.subr.mxu0 0.0
  %3618 = vmatpush1.msra.mxu0 0.0
  %3619 = vmatprep.subr.mxu0 0.0
  %3620 = vmatpush1.msra.mxu0 0.0
  %3621 = vmatprep.mubr.f32.mxu0 0.0
  %3622 = vmatmul.mubr.f32.gmra.mrb[0].mxu0 %v3552
  %v3623 = vpop.f32.mrb[0].mxu0
  %v3624 = vadd.f32 %v3549, %v3623
  %v3625 = vpop.f32.mrb[0].mxu0
  %3626 = vmatprep.mubr.f32.mxu0 0.0
  %3627 = vmatmul.mubr.f32.gmra.mrb[0].mxu0 %v3555
  %v3628 = vpop.f32.mrb[0].mxu0
  %v3629 = vadd.f32 %v3549, %v3628
  %v3630 = vpop.f32.mrb[0].mxu0
  %3631 = vdwg.mxu0
  %v3632 = vmul.f32 %v3624, 0.5
  %v3633 = vmul.f32 %v3629, 0.5
  %v3634 = vmul.f32 %v3624, 0.044715
  %v3635 = vmul.f32 %v3629, 0.044715
  %v3636 = vmul.f32 %v3634, %v3624
  %v3637 = vmul.f32 %v3635, %v3629
  %v3638 = vmul.f32 %v3636, %v3624
  %v3639 = vmul.f32 %v3637, %v3629
  %v3640 = vadd.f32 %v3624, %v3638
  %v3641 = vadd.f32 %v3629, %v3639
  %v3642 = vmul.f32 %v3640, 0.7978846
  %v3643 = vmul.f32 %v3641, 0.7978846
  %v3644 = vtanh.pop %v3642
  %v3645 = vtanh.pop %v3643
  %v3646 = vadd.f32 %v3644, 1.0
  %v3647 = vadd.f32 %v3645, 1.0
  %v3648 = vmul.f32 %v3632, %v3646
  %v3649 = vmul.f32 %v3633, %v3647
  %s3650 = scalar_lea.vmem %s11, 64
  %v3651 = vld [vmem:[%s3650] sm:$0xff]
  %v3652 = vld [vmem:[%s3650 + $0x8] sm:$0xff]
  %v3653 = vld [vmem:[%s3650 + $0x10] sm:$0xff]
  %v3654 = vld [vmem:[%s3650 + $0x18] sm:$0xff]
  %v3655 = vld [vmem:[%s3650 + $0x20] sm:$0xff]
  %v3656 = vld [vmem:[%s3650 + $0x28] sm:$0xff]
  %v3657 = vld [vmem:[%s3650 + $0x30] sm:$0xff]
  %v3658 = vld [vmem:[%s3650 + $0x38] sm:$0xff]
  %s3659 = scalar_lea.vmem %s12, 1
  %v3660 = vld [vmem:[%s3659] sm:$0x1]
  %v3662 = vlaneseq
  %v3663 = vshrl.u32 %v3662, 7
  %v3664 = vsub.s32 0, %v3663
  %v3665 = vrot.slane %v3660, %v3664
  %v3668 = vsel %vm1818, %v3648, 0
  %v3671 = vsel %vm1818, %v3649, 0
  %3673 = vmatprep.subr.mxu0 0.0
  %3674 = vmatpush1.msra.mxu0 %v3651
  %3675 = vmatprep.subr.mxu0 0.0
  %3676 = vmatpush1.msra.mxu0 %v3652
  %3677 = vmatprep.subr.mxu0 0.0
  %3678 = vmatpush1.msra.mxu0 %v3653
  %3679 = vmatprep.subr.mxu0 0.0
  %3680 = vmatpush1.msra.mxu0 %v3654
  %3681 = vmatprep.subr.mxu0 0.0
  %3682 = vmatpush1.msra.mxu0 %v3655
  %3683 = vmatprep.subr.mxu0 0.0
  %3684 = vmatpush1.msra.mxu0 %v3656
  %3685 = vmatprep.subr.mxu0 0.0
  %3686 = vmatpush1.msra.mxu0 %v3657
  %3687 = vmatprep.subr.mxu0 0.0
  %3688 = vmatpush1.msra.mxu0 %v3658
  %3689 = vmatprep.subr.mxu0 0.0
  %3690 = vmatpush1.msra.mxu0 0.0
  %3691 = vmatprep.subr.mxu0 0.0
  %3692 = vmatpush1.msra.mxu0 0.0
  %3693 = vmatprep.subr.mxu0 0.0
  %3694 = vmatpush1.msra.mxu0 0.0
  %3695 = vmatprep.subr.mxu0 0.0
  %3696 = vmatpush1.msra.mxu0 0.0
  %3697 = vmatprep.subr.mxu0 0.0
  %3698 = vmatpush1.msra.mxu0 0.0
  %3699 = vmatprep.subr.mxu0 0.0
  %3700 = vmatpush1.msra.mxu0 0.0
  %3701 = vmatprep.subr.mxu0 0.0
  %3702 = vmatpush1.msra.mxu0 0.0
  %3703 = vmatprep.subr.mxu0 0.0
  %3704 = vmatpush1.msra.mxu0 0.0
  %3705 = vmatprep.subr.mxu0 0.0
  %3706 = vmatpush1.msra.mxu0 0.0
  %3707 = vmatprep.subr.mxu0 0.0
  %3708 = vmatpush1.msra.mxu0 0.0
  %3709 = vmatprep.subr.mxu0 0.0
  %3710 = vmatpush1.msra.mxu0 0.0
  %3711 = vmatprep.subr.mxu0 0.0
  %3712 = vmatpush1.msra.mxu0 0.0
  %3713 = vmatprep.subr.mxu0 0.0
  %3714 = vmatpush1.msra.mxu0 0.0
  %3715 = vmatprep.subr.mxu0 0.0
  %3716 = vmatpush1.msra.mxu0 0.0
  %3717 = vmatprep.subr.mxu0 0.0
  %3718 = vmatpush1.msra.mxu0 0.0
  %3719 = vmatprep.subr.mxu0 0.0
  %3720 = vmatpush1.msra.mxu0 0.0
  %3721 = vmatprep.subr.mxu0 0.0
  %3722 = vmatpush1.msra.mxu0 0.0
  %3723 = vmatprep.subr.mxu0 0.0
  %3724 = vmatpush1.msra.mxu0 0.0
  %3725 = vmatprep.subr.mxu0 0.0
  %3726 = vmatpush1.msra.mxu0 0.0
  %3727 = vmatprep.subr.mxu0 0.0
  %3728 = vmatpush1.msra.mxu0 0.0
  %3729 = vmatprep.subr.mxu0 0.0
  %3730 = vmatpush1.msra.mxu0 0.0
  %3731 = vmatprep.subr.mxu0 0.0
  %3732 = vmatpush1.msra.mxu0 0.0
  %3733 = vmatprep.subr.mxu0 0.0
  %3734 = vmatpush1.msra.mxu0 0.0
  %3735 = vmatprep.subr.mxu0 0.0
  %3736 = vmatpush1.msra.mxu0 0.0
  %3737 = vmatprep.mubr.f32.mxu0 0.0
  %3738 = vmatmul.mubr.f32.gmra.mrb[0].mxu0 %v3668
  %v3739 = vpop.f32.mrb[0].mxu0
  %v3740 = vadd.f32 %v3665, %v3739
  %v3741 = vpop.f32.mrb[0].mxu0
  %3742 = vmatprep.mubr.f32.mxu0 0.0
  %3743 = vmatmul.mubr.f32.gmra.mrb[0].mxu0 %v3671
  %v3744 = vpop.f32.mrb[0].mxu0
  %v3745 = vadd.f32 %v3665, %v3744
  %v3746 = vpop.f32.mrb[0].mxu0
  %3747 = vdwg.mxu0
  %v3748 = vadd.f32 %v3740, %v3536
  %v3749 = vadd.f32 %v3745, %v3537
  %s3750 = scalar_lea.vmem %s13, 1
  %v3751 = vld [vmem:[%s3750] sm:$0x1]
  %s3752 = scalar_lea.vmem %s14, 1
  %v3753 = vld [vmem:[%s3752] sm:$0x1]
  %v3754 = vsel %vm60, %v3748, 0.0
  %3755 = vadd.xlane.f32.xlu0 %v3754
  %v3756 = vpop.xlane.xlu0 %3755
  %v3757 = vsel %vm60, %v3749, 0.0
  %3758 = vadd.xlane.f32.xlu0 %v3757
  %v3759 = vpop.xlane.xlu0 %3758
  %v3760 = vmul.f32 %v3756, %v67
  %v3761 = vmul.f32 %v3759, %v67
  %v3762 = vsub.f32 %v3748, %v3760
  %v3763 = vsub.f32 %v3749, %v3761
  %v3764 = vmul.f32 %v3762, %v3762
  %v3765 = vmul.f32 %v3763, %v3763
  %v3766 = vsel %vm60, %v3764, 0.0
  %3767 = vadd.xlane.f32.xlu0 %v3766
  %v3768 = vpop.xlane.xlu0 %3767
  %v3769 = vsel %vm60, %v3765, 0.0
  %3770 = vadd.xlane.f32.xlu0 %v3769
  %v3771 = vpop.xlane.xlu0 %3770
  %v3772 = vmul.f32 %v3768, %v67
  %v3773 = vmul.f32 %v3771, %v67
  %v3774 = vadd.f32 %v3772, 1e-12
  %v3775 = vadd.f32 %v3773, 1e-12
  %v3776 = vrsqrt.pop %v3774
  %v3777 = vrsqrt.pop %v3775
  %v3778 = vmul.f32 %v3762, %v3776
  %v3779 = vmul.f32 %v3763, %v3777
  %v3781 = vlaneseq
  %v3782 = vshrl.u32 %v3781, 7
  %v3783 = vsub.s32 0, %v3782
  %v3784 = vrot.slane %v3751, %v3783
  %v3786 = vmul.f32 %v3778, %v3784
  %v3787 = vmul.f32 %v3779, %v3784
  %v3789 = vlaneseq
  %v3790 = vshrl.u32 %v3789, 7
  %v3791 = vsub.s32 0, %v3790
  %v3792 = vrot.slane %v3753, %v3791
  %v3794 = vadd.f32 %v3786, %v3792
  %v3795 = vadd.f32 %v3787, %v3792
  %v3796 = vld [vmem:[%s15] sm:$0xff]
  %v3797 = vld [vmem:[%s15 + $0x8] sm:$0xff]
  %v3798 = vld [vmem:[%s15 + $0x10] sm:$0xff]
  %v3799 = vld [vmem:[%s15 + $0x18] sm:$0xff]
  %v3800 = vld [vmem:[%s16] sm:$0x1]
  %v3802 = vlaneseq
  %v3803 = vshrl.u32 %v3802, 7
  %v3804 = vsub.s32 0, %v3803
  %v3805 = vrot.slane %v3800, %v3804
  %v3808 = vsel %vm60, %v3794, 0
  %v3811 = vsel %vm60, %v3795, 0
  %3813 = vmatprep.subr.mxu0 0.0
  %3814 = vmatpush1.msra.mxu0 %v3796
  %3815 = vmatprep.subr.mxu0 0.0
  %3816 = vmatpush1.msra.mxu0 %v3797
  %3817 = vmatprep.subr.mxu0 0.0
  %3818 = vmatpush1.msra.mxu0 %v3798
  %3819 = vmatprep.subr.mxu0 0.0
  %3820 = vmatpush1.msra.mxu0 %v3799
  %3821 = vmatprep.subr.mxu0 0.0
  %3822 = vmatpush1.msra.mxu0 0.0
  %3823 = vmatprep.subr.mxu0 0.0
  %3824 = vmatpush1.msra.mxu0 0.0
  %3825 = vmatprep.subr.mxu0 0.0
  %3826 = vmatpush1.msra.mxu0 0.0
  %3827 = vmatprep.subr.mxu0 0.0
  %3828 = vmatpush1.msra.mxu0 0.0
  %3829 = vmatprep.subr.mxu0 0.0
  %3830 = vmatpush1.msra.mxu0 0.0
  %3831 = vmatprep.subr.mxu0 0.0
  %3832 = vmatpush1.msra.mxu0 0.0
  %3833 = vmatprep.subr.mxu0 0.0
  %3834 = vmatpush1.msra.mxu0 0.0
  %3835 = vmatprep.subr.mxu0 0.0
  %3836 = vmatpush1.msra.mxu0 0.0
  %3837 = vmatprep.subr.mxu0 0.0
  %3838 = vmatpush1.msra.mxu0 0.0
  %3839 = vmatprep.subr.mxu0 0.0
  %3840 = vmatpush1.msra.mxu0 0.0
  %3841 = vmatprep.subr.mxu0 0.0
  %3842 = vmatpush1.msra.mxu0 0.0
  %3843 = vmatprep.subr.mxu0 0.0
  %3844 = vmatpush1.msra.mxu0 0.0
  %3845 = vmatprep.subr.mxu0 0.0
  %3846 = vmatpush1.msra.mxu0 0.0
  %3847 = vmatprep.subr.mxu0 0.0
  %3848 = vmatpush1.msra.mxu0 0.0
  %3849 = vmatprep.subr.mxu0 0.0
  %3850 = vmatpush1.msra.mxu0 0.0
  %3851 = vmatprep.subr.mxu0 0.0
  %3852 = vmatpush1.msra.mxu0 0.0
  %3853 = vmatprep.subr.mxu0 0.0
  %3854 = vmatpush1.msra.mxu0 0.0
  %3855 = vmatprep.subr.mxu0 0.0
  %3856 = vmatpush1.msra.mxu0 0.0
  %3857 = vmatprep.subr.mxu0 0.0
  %3858 = vmatpush1.msra.mxu0 0.0
  %3859 = vmatprep.subr.mxu0 0.0
  %3860 = vmatpush1.msra.mxu0 0.0
  %3861 = vmatprep.subr.mxu0 0.0
  %3862 = vmatpush1.msra.mxu0 0.0
  %3863 = vmatprep.subr.mxu0 0.0
  %3864 = vmatpush1.msra.mxu0 0.0
  %3865 = vmatprep.subr.mxu0 0.0
  %3866 = vmatpush1.msra.mxu0 0.0
  %3867 = vmatprep.subr.mxu0 0.0
  %3868 = vmatpush1.msra.mxu0 0.0
  %3869 = vmatprep.subr.mxu0 0.0
  %3870 = vmatpush1.msra.mxu0 0.0
  %3871 = vmatprep.subr.mxu0 0.0
  %3872 = vmatpush1.msra.mxu0 0.0
  %3873 = vmatprep.subr.mxu0 0.0
  %3874 = vmatpush1.msra.mxu0 0.0
  %3875 = vmatprep.subr.mxu0 0.0
  %3876 = vmatpush1.msra.mxu0 0.0
  %3877 = vmatprep.mubr.f32.mxu0 0.0
  %3878 = vmatmul.mubr.f32.gmra.mrb[0].mxu0 %v3808
  %v3879 = vpop.f32.mrb[0].mxu0
  %v3880 = vadd.f32 %v3805, %v3879
  %v3881 = vpop.f32.mrb[0].mxu0
  %3882 = vmatprep.mubr.f32.mxu0 0.0
  %3883 = vmatmul.mubr.f32.gmra.mrb[0].mxu0 %v3811
  %v3884 = vpop.f32.mrb[0].mxu0
  %v3885 = vadd.f32 %v3805, %v3884
  %v3886 = vpop.f32.mrb[0].mxu0
  %3887 = vdwg.mxu0
  %3888 = vst [vmem:[%s17] sm:$0xff] %v3880
  %3889 = vst [vmem:[%s17 + $0x8] sm:$0xff] %v3885
  // Predicated region
  $region70: #{bert_tagger_forward.1} parent=0 // pred_check
    _
  $region71: #{bert_tagger_forward.1} parent=0 // pred_check_branch
    %3891 = sbr.rel (0) target = $region73
  $region72: #{bert_tagger_forward.1} parent=0 // pred_region
    _
  $region73: #{bert_tagger_forward.1} parent=0 // pred_fallthru
    _
  // Predicated region
  $region74: #{bert_tagger_forward.1} parent=0 // pred_check
    _
  $region75: #{bert_tagger_forward.1} parent=0 // pred_check_branch
    %3893 = sbr.rel (0) target = $region77
  $region76: #{bert_tagger_forward.1} parent=0 // pred_region
    _
  $region77: #{bert_tagger_forward.1} parent=0 // pred_fallthru
    _

</llo_original>
